<compile_context>
chip_gen: v5e
topology: v5e:2x2
jax: 0.10.0
libtpu: 0.0.40
codegen_flags: <defaults>
</compile_context>

<pallas_src>
import math

import jax
import jax.numpy as jnp
from jax.experimental import pallas as pl
from jax.experimental.pallas import tpu as pltpu

F32 = jnp.float32

# ---------------- small-shape configuration (downscaled from the module) -----
D = 32            # temporal_embedding_dim (770 in the original)
NUM_HEADS = 4     # encoder_heads (11 in the original; must divide D)
NUM_LAYERS = 2    # encoder_layers
FF = D            # dim_feedforward = temporal_embedding_dim
RGB_DIM = 16      # rgb_embedding_dim (1000)
BELIEF_DIM = 4    # belief_emb feature dim
ID_EMB = 2        # knowledge_encoder.id_embedding_dim (24)
OD_DIM = 2 * ID_EMB          # belief_opendrive = [road_emb, junction_emb]
TRAJ_DIM = BELIEF_DIM + OD_DIM  # traj_dim (54)
SPEECH_DIM = 16   # speech_embedding_dim (1024)
OBJ_TOKENS, OBJ_FEAT = 8, 16  # obj_def_detr (300, 256) -> flattened input
NUM_ROADS, NUM_JUNCS = 12, 8
MAX_POS = 64
LN_EPS = 1e-5

# ---------------- fused decoder head layout ----------------------------------
HEAD_DIMS = (("belief", 5), ("phys_type", 6), ("phys_angle", 1),
             ("dor_move", 16), ("dor_type", 5), ("dor_slot", 69),
             ("wiz_move", 16), ("wiz_type", 5), ("wiz_slot", 69))
DEC_TOTAL = sum(d for _, d in HEAD_DIMS)   # 192
DEC_PAD = 256                              # pad to 2 full vregs -> unmasked stores
_offs, _o = [], 0
for _name, _d in HEAD_DIMS:
    _offs.append((_o, _d))
    _o += _d
DEC_SLICES = tuple(_offs)
ANGLE_COL = DEC_SLICES[2][0]               # column that gets 180 * tanh


# ------------------------------ Pallas kernel --------------------------------
def _exact_gelu(x):
    # PyTorch nn.GELU default = exact (erf-based) GELU.
    return 0.5 * x * (1.0 + jax.lax.erf(x * (1.0 / math.sqrt(2.0))))


def _toto_fused_kernel(nheads, eps, angle_col, proj_off, n_win, n_sp, n_obj):
    """Fused: EmbEncoder projections + enc_layernorm + L encoder layers + decoder."""

    def layernorm(v, g, b):
        mu = jnp.mean(v, axis=-1, keepdims=True)
        var = jnp.mean(jnp.square(v - mu), axis=-1, keepdims=True)
        return (v - mu) * jax.lax.rsqrt(var + eps) * g + b

    def proj(x_ref, w_ref, b_ref):
        y = jnp.dot(x_ref[...], w_ref[...],
                    preferred_element_type=jnp.float32) + b_ref[...]
        return _exact_gelu(y)

    def kernel(base_ref,
               xw_ref, ww_ref, bw_ref,           # window_emb_layer
               xs_ref, ws_ref, bs_ref,           # speech_layer
               xo_ref, wobj_ref, bobj_ref,       # obj_def_detr_layer
               g0_ref, b0_ref,                   # enc_layernorm
               wqkv_ref, bqkv_ref, wao_ref, bao_ref,
               g1_ref, be1_ref, w1_ref, b1_ref, w2_ref, b2_ref,
               g2_ref, be2_ref,
               wdec_ref, bdec_ref,               # fused ActionDecoder heads
               o_ref, x_sc, attn_sc):
        l = pl.program_id(0)
        S, Dm = x_sc.shape
        hd = Dm // nheads
        scale = 1.0 / math.sqrt(hd)

        # --- grid step 0: EmbEncoder projections + sequence assembly + enc LN
        @pl.when(l == 0)
        def _():
            a = proj_off
            b = a + n_win
            c = b + n_sp
            x_sc[0:a, :] = base_ref[0:a, :]
            x_sc[a:b, :] = base_ref[a:b, :] + proj(xw_ref, ww_ref, bw_ref)
            x_sc[b:c, :] = base_ref[b:c, :] + proj(xs_ref, ws_ref, bs_ref)
            x_sc[c:S, :] = base_ref[c:S, :] + proj(xo_ref, wobj_ref, bobj_ref)
            # TOTO.enc_layernorm applied once, before the first layer.
            x_sc[...] = layernorm(x_sc[...], g0_ref[...], b0_ref[...])

        x = x_sc[...]

        # --- one post-LN nn.TransformerEncoderLayer per grid step -----------
        # fused QKV projection: one [S, D] @ [D, 3D] matmul
        qkv = jnp.dot(x, wqkv_ref[0],
                      preferred_element_type=jnp.float32) + bqkv_ref[0]

        # per-head softmax attention; head outputs written straight into a
        # [S, D] VMEM scratch slice (no concatenate -> no lane relayout).
        for h in range(nheads):
            qh = qkv[:, h * hd:(h + 1) * hd]
            kh = qkv[:, Dm + h * hd:Dm + (h + 1) * hd]
            vh = qkv[:, 2 * Dm + h * hd:2 * Dm + (h + 1) * hd]
            s = jnp.dot(qh, kh.T, preferred_element_type=jnp.float32) * scale
            s = s - jnp.max(s, axis=-1, keepdims=True)
            p = jnp.exp(s)
            p = p * pl.reciprocal(jnp.sum(p, axis=-1, keepdims=True), approx=True)
            attn_sc[:, h * hd:(h + 1) * hd] = jnp.dot(
                p, vh, preferred_element_type=jnp.float32)

        attn = jnp.dot(attn_sc[...], wao_ref[0],
                       preferred_element_type=jnp.float32) + bao_ref[0]

        # residual + LayerNorm 1
        x = layernorm(x + attn, g1_ref[0], be1_ref[0])

        # feed-forward (ReLU, PyTorch default activation); dropout = identity
        h1 = jnp.maximum(
            jnp.dot(x, w1_ref[0], preferred_element_type=jnp.float32) + b1_ref[0],
            0.0)
        ff = jnp.dot(h1, w2_ref[0], preferred_element_type=jnp.float32) + b2_ref[0]

        # residual + LayerNorm 2
        x = layernorm(x + ff, g2_ref[0], be2_ref[0])
        x_sc[...] = x

        # --- last grid step: fused ActionDecoder on the final token ---------
        @pl.when(l == pl.num_programs(0) - 1)
        def _():
            frame = x[S - 1:S, :]                       # enc_out[[-1], :]
            y = jnp.dot(frame, wdec_ref[...],
                        preferred_element_type=jnp.float32) + bdec_ref[...]
            col = jax.lax.broadcasted_iota(jnp.int32, y.shape, 1)
            y = jnp.where(col == angle_col, 180.0 * jnp.tanh(y), y)
            o_ref[...] = y.astype(o_ref.dtype)

    return kernel


def pallas_toto_fused(base, window_in, w_win, b_win, speech_in, w_sp, b_sp,
                      obj_flat, w_obj, b_obj, enc_ln, trunk, dec_w, dec_b,
                      nheads=NUM_HEADS, eps=LN_EPS):
    S, Dm = base.shape
    n_win = window_in.shape[0]
    n_sp = speech_in.shape[0]
    n_obj = obj_flat.shape[0]
    proj_off = S - (n_win + n_sp + n_obj)
    L = trunk["wqkv"].shape[0]
    g0, b0 = enc_ln

    def rep(shape):       # same (full-array) block every layer
        zeros = (0,) * len(shape)
        return pl.BlockSpec(tuple(shape), lambda l, zeros=zeros: zeros)

    def per_layer(shape):  # leading axis indexed by the layer grid axis
        nrest = len(shape) - 1
        return pl.BlockSpec((1,) + tuple(shape[1:]),
                            lambda l, nrest=nrest: (l,) + (0,) * nrest)

    rep_args = [base,
                window_in, w_win, b_win.reshape(1, -1),
                speech_in, w_sp, b_sp.reshape(1, -1),
                obj_flat, w_obj, b_obj.reshape(1, -1),
                g0.reshape(1, Dm), b0.reshape(1, Dm)]
    layer_args = [trunk["wqkv"], trunk["bqkv"], trunk["wo"], trunk["bo"],
                  trunk["ln1_g"], trunk["ln1_b"],
                  trunk["w1"], trunk["b1"], trunk["w2"], trunk["b2"],
                  trunk["ln2_g"], trunk["ln2_b"]]
    tail_args = [dec_w, dec_b.reshape(1, -1)]

    in_specs = ([rep(a.shape) for a in rep_args]
                + [per_layer(a.shape) for a in layer_args]
                + [rep(a.shape) for a in tail_args])

    return pl.pallas_call(
        _toto_fused_kernel(nheads, eps, ANGLE_COL, proj_off, n_win, n_sp, n_obj),
        out_shape=jax.ShapeDtypeStruct((1, dec_w.shape[1]), F32),
        grid=(L,),
        in_specs=in_specs,
        out_specs=rep((1, dec_w.shape[1])),
        scratch_shapes=[pltpu.VMEM((S, Dm), F32),   # activation carry across layers
                        pltpu.VMEM((S, Dm), F32)],  # per-head attention assembly
        compiler_params=pltpu.CompilerParams(
            dimension_semantics=("arbitrary",)),
    )(*rep_args, *layer_args, *tail_args)


# ------------------------------ plain-JAX glue --------------------------------
def make_pos_table(max_len, d):
    pos = jnp.arange(max_len, dtype=F32)[:, None]
    i = jnp.arange(0, d, 2, dtype=F32)[None, :]
    div = jnp.exp(-math.log(10000.0) * i / d)
    pe = jnp.zeros((max_len, d), F32)
    pe = pe.at[:, 0::2].set(jnp.sin(pos * div))
    pe = pe.at[:, 1::2].set(jnp.cos(pos * div))
    return pe


def pos_encode(pe, x, idx):
    # TODO(synk): PosEncoding class source not provided; assumed standard
    # additive sinusoidal positional encoding indexed at the given positions.
    idx = jnp.asarray(idx, dtype=jnp.int32)
    return x + pe[idx]


def init_linear(key, din, dout):
    k1, k2 = jax.random.split(key)
    lim = 1.0 / math.sqrt(din)
    w = jax.random.uniform(k1, (din, dout), F32, -lim, lim)
    b = jax.random.uniform(k2, (dout,), F32, -lim, lim)
    return w, b


def init_params(key):
    keys = iter(jax.random.split(key, 64))
    p = {}
    # TODO(synk): OpenDriveEncoder / RoadEncoder / JunctionEncoder sources not
    # provided; id_encoder is modeled as two embedding-table lookups + concat.
    p["road_table"] = 0.02 * jax.random.normal(next(keys), (NUM_ROADS, ID_EMB), F32)
    p["junc_table"] = 0.02 * jax.random.normal(next(keys), (NUM_JUNCS, ID_EMB), F32)

    p["obj_def_detr_layer"] = init_linear(next(keys), OBJ_TOKENS * OBJ_FEAT, D)
    p["window_emb_layer"] = init_linear(next(keys), RGB_DIM + TRAJ_DIM, D)
    p["speech_layer"] = init_linear(next(keys), SPEECH_DIM, D)
    # plan_layer / objective_layer exist in the module but their outputs are
    # discarded in the default ablation -> dead code, not materialized.
    p["enc_layernorm"] = (jnp.ones((D,), F32), jnp.zeros((D,), F32))

    # ---- trunk: per-layer weights stacked along a leading layer axis ----
    wqkv, bqkv, wo, bo = [], [], [], []
    ln1g, ln1b, ln2g, ln2b = [], [], [], []
    w1s, b1s, w2s, b2s = [], [], [], []
    for _ in range(NUM_LAYERS):
        wq, bq = init_linear(next(keys), D, D)
        wk, bk = init_linear(next(keys), D, D)
        wv, bv = init_linear(next(keys), D, D)
        wo_l, bo_l = init_linear(next(keys), D, D)
        w1_l, b1_l = init_linear(next(keys), D, FF)
        w2_l, b2_l = init_linear(next(keys), FF, D)
        wqkv.append(jnp.concatenate([wq, wk, wv], axis=1))        # (D, 3D)
        bqkv.append(jnp.concatenate([bq, bk, bv])[None, :])        # (1, 3D)
        wo.append(wo_l)
        bo.append(bo_l[None, :])
        w1s.append(w1_l)
        b1s.append(b1_l[None, :])
        w2s.append(w2_l)
        b2s.append(b2_l[None, :])
        ln1g.append(jnp.ones((1, D), F32))
        ln1b.append(jnp.zeros((1, D), F32))
        ln2g.append(jnp.ones((1, D), F32))
        ln2b.append(jnp.zeros((1, D), F32))
    p["trunk"] = {
        "wqkv": jnp.stack(wqkv), "bqkv": jnp.stack(bqkv),
        "wo": jnp.stack(wo), "bo": jnp.stack(bo),
        "ln1_g": jnp.stack(ln1g), "ln1_b": jnp.stack(ln1b),
        "w1": jnp.stack(w1s), "b1": jnp.stack(b1s),
        "w2": jnp.stack(w2s), "b2": jnp.stack(b2s),
        "ln2_g": jnp.stack(ln2g), "ln2_b": jnp.stack(ln2b),
    }

    # ---- decoder: 9 heads fused into one [D, DEC_PAD] weight (lane-dense) ----
    ws, bs = [], []
    for _name, dout in HEAD_DIMS:
        w, b = init_linear(next(keys), D, dout)
        ws.append(w)
        bs.append(b)
    w_cat = jnp.concatenate(ws, axis=1)            # (D, 192)
    b_cat = jnp.concatenate(bs)                    # (192,)
    p["decoder_w"] = jnp.zeros((D, DEC_PAD), F32).at[:, :DEC_TOTAL].set(w_cat)
    p["decoder_b"] = jnp.zeros((DEC_PAD,), F32).at[:DEC_TOTAL].set(b_cat)

    p["pos_table"] = make_pos_table(MAX_POS, D)
    return p


def toto_forward(params, obj_def_detr, rgb_emb, knowledge_emb, speech_emb,
                 dlg_history, dlg_move_history, act_history, belief_emb,
                 belief_road, belief_junc, event):
    pe = params["pos_table"]

    # ---- KnowledgeEncoder.id_encoder (belief_opendrive) ----
    road_e = params["road_table"][belief_road]
    junc_e = params["junc_table"][belief_junc]
    belief_opendrive = jnp.concatenate([road_e, junc_e], axis=1)

    # ---- EmbEncoder (default ablation branch) inputs ----
    obj_flat = obj_def_detr.reshape(obj_def_detr.shape[0], -1)   # nn.Flatten
    window_in = jnp.concatenate([belief_emb, belief_opendrive, rgb_emb], axis=1)
    speech_in = speech_emb[None, :]

    # rows that need no projection are finished here; projection rows carry
    # only their positional-encoding contribution (the kernel adds the
    # projected embeddings in grid step 0).
    knowledge = pos_encode(pe, knowledge_emb, [0])
    act_emb = pos_encode(pe, act_history, event["act_history_idx"])
    dlg_emb = pos_encode(pe, dlg_history, event["dialog_history_idx"])
    dlg_move_emb = pos_encode(pe, dlg_move_history, event["dialog_move_idx"])
    win_pe = pe[jnp.asarray(event["rgb_idx"], jnp.int32)]
    sp_pe = pe[jnp.asarray([event["frame"]], jnp.int32)]
    obj_zero = jnp.zeros((obj_flat.shape[0], D), F32)   # obj rows: projection only

    # detailed_plan['junctions'] / ['objective'] are None and the default
    # ablation discards plan_enc / objective anyway -> dead branches removed.
    base = jnp.concatenate(
        [knowledge, act_emb, dlg_emb, dlg_move_emb, win_pe, sp_pe, obj_zero], axis=0)

    # ---- whole TOTO trunk + decoder in one fused kernel ----
    dec = pallas_toto_fused(
        base,
        window_in, *params["window_emb_layer"],
        speech_in, *params["speech_layer"],
        obj_flat, *params["obj_def_detr_layer"],
        params["enc_layernorm"], params["trunk"],
        params["decoder_w"], params["decoder_b"])

    # frame_emb = enc_out[[-1], :] handled in-kernel (S > 0, zero-length branch unused)
    return tuple(dec[:, s:s + n] for s, n in DEC_SLICES)


if __name__ == "__main__":
    key = jax.random.PRNGKey(0)
    pkey, *ikeys = jax.random.split(key, 12)
    params = init_params(pkey)

    obj_def_detr = jax.random.normal(ikeys[0], (2, OBJ_TOKENS, OBJ_FEAT), F32)
    rgb_emb = jax.random.normal(ikeys[1], (2, RGB_DIM), F32)
    knowledge_emb = jax.random.normal(ikeys[2], (3, D), F32)
    speech_emb = jax.random.normal(ikeys[3], (SPEECH_DIM,), F32)
    dlg_history = jax.random.normal(ikeys[4], (2, D), F32)
    dlg_move_history = jax.random.normal(ikeys[5], (2, D), F32)
    act_history = jax.random.normal(ikeys[6], (2, D), F32)
    belief_emb = jax.random.normal(ikeys[7], (2, BELIEF_DIM), F32)
    belief_road = jnp.array([1, 3], jnp.int32)
    belief_junc = jnp.array([0, 2], jnp.int32)
    event = {
        "rgb_idx": [0, 1],
        "act_history_idx": [0, 1],
        "dialog_history_idx": [0, 1],
        "dialog_move_idx": [0, 1],
        "frame": 1,
        "detailed_plan": {"junctions": None, "objective": None},
    }

    outs = toto_forward(params, obj_def_detr, rgb_emb, knowledge_emb, speech_emb,
                        dlg_history, dlg_move_history, act_history, belief_emb,
                        belief_road, belief_junc, event)
    jax.block_until_ready(outs)
    expected = [(1, 5), (1, 6), (1, 1), (1, 16), (1, 5), (1, 69), (1, 16), (1, 5), (1, 69)]
    assert [tuple(o.shape) for o in outs] == expected
    print("KERNEL_OK")
</pallas_src>

<mosaic_0001>
module attributes {stable_mosaic.version = 11 : i64} {
  func.func @kernel(%arg0: i32, %arg1: memref<14x32xf32, #tpu.memory_space<vmem>>, %arg2: memref<2x24xf32, #tpu.memory_space<vmem>>, %arg3: memref<24x32xf32, #tpu.memory_space<vmem>>, %arg4: memref<1x32xf32, #tpu.memory_space<vmem>>, %arg5: memref<1x16xf32, #tpu.memory_space<vmem>>, %arg6: memref<16x32xf32, #tpu.memory_space<vmem>>, %arg7: memref<1x32xf32, #tpu.memory_space<vmem>>, %arg8: memref<2x128xf32, #tpu.memory_space<vmem>>, %arg9: memref<128x32xf32, #tpu.memory_space<vmem>>, %arg10: memref<1x32xf32, #tpu.memory_space<vmem>>, %arg11: memref<1x32xf32, #tpu.memory_space<vmem>>, %arg12: memref<1x32xf32, #tpu.memory_space<vmem>>, %arg13: memref<1x32x96xf32, #tpu.memory_space<vmem>>, %arg14: memref<1x1x96xf32, #tpu.memory_space<vmem>>, %arg15: memref<1x32x32xf32, #tpu.memory_space<vmem>>, %arg16: memref<1x1x32xf32, #tpu.memory_space<vmem>>, %arg17: memref<1x1x32xf32, #tpu.memory_space<vmem>>, %arg18: memref<1x1x32xf32, #tpu.memory_space<vmem>>, %arg19: memref<1x32x32xf32, #tpu.memory_space<vmem>>, %arg20: memref<1x1x32xf32, #tpu.memory_space<vmem>>, %arg21: memref<1x32x32xf32, #tpu.memory_space<vmem>>, %arg22: memref<1x1x32xf32, #tpu.memory_space<vmem>>, %arg23: memref<1x1x32xf32, #tpu.memory_space<vmem>>, %arg24: memref<1x1x32xf32, #tpu.memory_space<vmem>>, %arg25: memref<32x256xf32, #tpu.memory_space<vmem>>, %arg26: memref<1x256xf32, #tpu.memory_space<vmem>>, %arg27: memref<1x256xf32, #tpu.memory_space<vmem>>, %arg28: memref<14x32xf32, #tpu.memory_space<vmem>>, %arg29: memref<14x32xf32, #tpu.memory_space<vmem>>) attributes {dimension_semantics = [#tpu.dimension_semantics<arbitrary>], iteration_bounds = array<i64: 2>, scalar_prefetch = 0 : i64, scratch_operands = 2 : i64, tpu.core_type = #tpu.core_type<tc>, window_params = [{pipeline_mode = #tpu.pipeline_mode<synchronous>, transform_indices = @transform_0, window_bounds = array<i64: 14, 32>}, {pipeline_mode = #tpu.pipeline_mode<synchronous>, transform_indices = @transform_1, window_bounds = array<i64: 2, 24>}, {pipeline_mode = #tpu.pipeline_mode<synchronous>, transform_indices = @transform_2, window_bounds = array<i64: 24, 32>}, {pipeline_mode = #tpu.pipeline_mode<synchronous>, transform_indices = @transform_3, window_bounds = array<i64: 1, 32>}, {pipeline_mode = #tpu.pipeline_mode<synchronous>, transform_indices = @transform_4, window_bounds = array<i64: 1, 16>}, {pipeline_mode = #tpu.pipeline_mode<synchronous>, transform_indices = @transform_5, window_bounds = array<i64: 16, 32>}, {pipeline_mode = #tpu.pipeline_mode<synchronous>, transform_indices = @transform_6, window_bounds = array<i64: 1, 32>}, {pipeline_mode = #tpu.pipeline_mode<synchronous>, transform_indices = @transform_7, window_bounds = array<i64: 2, 128>}, {pipeline_mode = #tpu.pipeline_mode<synchronous>, transform_indices = @transform_8, window_bounds = array<i64: 128, 32>}, {pipeline_mode = #tpu.pipeline_mode<synchronous>, transform_indices = @transform_9, window_bounds = array<i64: 1, 32>}, {pipeline_mode = #tpu.pipeline_mode<synchronous>, transform_indices = @transform_10, window_bounds = array<i64: 1, 32>}, {pipeline_mode = #tpu.pipeline_mode<synchronous>, transform_indices = @transform_11, window_bounds = array<i64: 1, 32>}, {transform_indices = @transform_12, window_bounds = array<i64: 1, 32, 96>}, {transform_indices = @transform_13, window_bounds = array<i64: 1, 1, 96>}, {transform_indices = @transform_14, window_bounds = array<i64: 1, 32, 32>}, {transform_indices = @transform_15, window_bounds = array<i64: 1, 1, 32>}, {transform_indices = @transform_16, window_bounds = array<i64: 1, 1, 32>}, {transform_indices = @transform_17, window_bounds = array<i64: 1, 1, 32>}, {transform_indices = @transform_18, window_bounds = array<i64: 1, 32, 32>}, {transform_indices = @transform_19, window_bounds = array<i64: 1, 1, 32>}, {transform_indices = @transform_20, window_bounds = array<i64: 1, 32, 32>}, {transform_indices = @transform_21, window_bounds = array<i64: 1, 1, 32>}, {transform_indices = @transform_22, window_bounds = array<i64: 1, 1, 32>}, {transform_indices = @transform_23, window_bounds = array<i64: 1, 1, 32>}, {pipeline_mode = #tpu.pipeline_mode<synchronous>, transform_indices = @transform_24, window_bounds = array<i64: 32, 256>}, {pipeline_mode = #tpu.pipeline_mode<synchronous>, transform_indices = @transform_25, window_bounds = array<i64: 1, 256>}, {pipeline_mode = #tpu.pipeline_mode<synchronous>, transform_indices = @transform_26, window_bounds = array<i64: 1, 256>}]} {
    %c0_i32 = arith.constant 0 : i32
    %0 = arith.cmpi eq, %arg0, %c0_i32 : i32
    %1 = arith.extui %0 : i1 to i32
    %c0_i32_0 = arith.constant 0 : i32
    %2 = arith.cmpi ne, %1, %c0_i32_0 : i32
    scf.if %2 {
      %c0_82 = arith.constant 0 : index
      %c0_83 = arith.constant 0 : index
      %169 = vector.load %arg1[%c0_82, %c0_83] : memref<14x32xf32, #tpu.memory_space<vmem>>, vector<9x32xf32>
      %c0_84 = arith.constant 0 : index
      %c0_85 = arith.constant 0 : index
      %170 = vector.load %arg28[%c0_84, %c0_85] : memref<14x32xf32, #tpu.memory_space<vmem>>, vector<9x32xf32>
      tpu.vector_store %arg28[%c0_84, %c0_85], %169 {strides = array<i32>} : memref<14x32xf32, #tpu.memory_space<vmem>>, vector<9x32xf32>,
      %c9 = arith.constant 9 : index
      %c0_86 = arith.constant 0 : index
      %171 = vector.load %arg1[%c9, %c0_86] : memref<14x32xf32, #tpu.memory_space<vmem>>, vector<2x32xf32>
      %c0_87 = arith.constant 0 : index
      %c0_88 = arith.constant 0 : index
      %172 = vector.load %arg2[%c0_87, %c0_88] : memref<2x24xf32, #tpu.memory_space<vmem>>, vector<2x24xf32>
      %c0_89 = arith.constant 0 : index
      %c0_90 = arith.constant 0 : index
      %173 = vector.load %arg3[%c0_89, %c0_90] : memref<24x32xf32, #tpu.memory_space<vmem>>, vector<24x32xf32>
      %cst_91 = arith.constant dense<0.000000e+00> : vector<2x32xf32>
      %174 = tpu.matmul %172, %173, %cst_91 {dimension_numbers = #tpu.dot_dimension_numbers<[1], [0], [0], [1], [0, 0, 1, 1], [], []>} : vector<2x24xf32>, vector<24x32xf32>, vector<2x32xf32> -> vector<2x32xf32>
      %c0_92 = arith.constant 0 : index
      %c0_93 = arith.constant 0 : index
      %175 = vector.load %arg4[%c0_92, %c0_93] : memref<1x32xf32, #tpu.memory_space<vmem>>, vector<1x32xf32>
      %176 = vector.broadcast %175 : vector<1x32xf32> to vector<2x32xf32>
      %177 = arith.addf %174, %176 : vector<2x32xf32>
      %cst_94 = arith.constant 5.000000e-01 : f32
      %178 = vector.broadcast %cst_94 : f32 to vector<2x32xf32>
      %179 = arith.mulf %178, %177 : vector<2x32xf32>
      %cst_95 = arith.constant 0.707106769 : f32
      %180 = vector.broadcast %cst_95 : f32 to vector<2x32xf32>
      %181 = arith.mulf %177, %180 : vector<2x32xf32>
      %182 = math.erf %181 : vector<2x32xf32>
      %cst_96 = arith.constant 1.000000e+00 : f32
      %183 = vector.broadcast %cst_96 : f32 to vector<2x32xf32>
      %184 = arith.addf %183, %182 : vector<2x32xf32>
      %185 = arith.mulf %179, %184 : vector<2x32xf32>
      %186 = arith.addf %171, %185 : vector<2x32xf32>
      %c9_97 = arith.constant 9 : index
      %c0_98 = arith.constant 0 : index
      %187 = vector.load %arg28[%c9_97, %c0_98] : memref<14x32xf32, #tpu.memory_space<vmem>>, vector<2x32xf32>
      tpu.vector_store %arg28[%c9_97, %c0_98], %186 {strides = array<i32>} : memref<14x32xf32, #tpu.memory_space<vmem>>, vector<2x32xf32>,
      %c11 = arith.constant 11 : index
      %c0_99 = arith.constant 0 : index
      %188 = vector.load %arg1[%c11, %c0_99] : memref<14x32xf32, #tpu.memory_space<vmem>>, vector<1x32xf32>
      %c0_100 = arith.constant 0 : index
      %c0_101 = arith.constant 0 : index
      %189 = vector.load %arg5[%c0_100, %c0_101] : memref<1x16xf32, #tpu.memory_space<vmem>>, vector<1x16xf32>
      %c0_102 = arith.constant 0 : index
      %c0_103 = arith.constant 0 : index
      %190 = vector.load %arg6[%c0_102, %c0_103] : memref<16x32xf32, #tpu.memory_space<vmem>>, vector<16x32xf32>
      %cst_104 = arith.constant dense<0.000000e+00> : vector<1x32xf32>
      %191 = tpu.matmul %189, %190, %cst_104 {dimension_numbers = #tpu.dot_dimension_numbers<[1], [0], [0], [1], [0, 0, 1, 1], [], []>} : vector<1x16xf32>, vector<16x32xf32>, vector<1x32xf32> -> vector<1x32xf32>
      %c0_105 = arith.constant 0 : index
      %c0_106 = arith.constant 0 : index
      %192 = vector.load %arg7[%c0_105, %c0_106] : memref<1x32xf32, #tpu.memory_space<vmem>>, vector<1x32xf32>
      %193 = arith.addf %191, %192 : vector<1x32xf32>
      %cst_107 = arith.constant 5.000000e-01 : f32
      %194 = vector.broadcast %cst_107 : f32 to vector<1x32xf32>
      %195 = arith.mulf %194, %193 : vector<1x32xf32>
      %cst_108 = arith.constant 0.707106769 : f32
      %196 = vector.broadcast %cst_108 : f32 to vector<1x32xf32>
      %197 = arith.mulf %193, %196 : vector<1x32xf32>
      %198 = math.erf %197 : vector<1x32xf32>
      %cst_109 = arith.constant 1.000000e+00 : f32
      %199 = vector.broadcast %cst_109 : f32 to vector<1x32xf32>
      %200 = arith.addf %199, %198 : vector<1x32xf32>
      %201 = arith.mulf %195, %200 : vector<1x32xf32>
      %202 = arith.addf %188, %201 : vector<1x32xf32>
      %c11_110 = arith.constant 11 : index
      %c0_111 = arith.constant 0 : index
      %203 = vector.load %arg28[%c11_110, %c0_111] : memref<14x32xf32, #tpu.memory_space<vmem>>, vector<1x32xf32>
      tpu.vector_store %arg28[%c11_110, %c0_111], %202 {strides = array<i32>} : memref<14x32xf32, #tpu.memory_space<vmem>>, vector<1x32xf32>,
      %c12 = arith.constant 12 : index
      %c0_112 = arith.constant 0 : index
      %204 = vector.load %arg1[%c12, %c0_112] : memref<14x32xf32, #tpu.memory_space<vmem>>, vector<2x32xf32>
      %c0_113 = arith.constant 0 : index
      %c0_114 = arith.constant 0 : index
      %205 = vector.load %arg8[%c0_113, %c0_114] : memref<2x128xf32, #tpu.memory_space<vmem>>, vector<2x128xf32>
      %c0_115 = arith.constant 0 : index
      %c0_116 = arith.constant 0 : index
      %206 = vector.load %arg9[%c0_115, %c0_116] : memref<128x32xf32, #tpu.memory_space<vmem>>, vector<128x32xf32>
      %cst_117 = arith.constant dense<0.000000e+00> : vector<2x32xf32>
      %207 = tpu.matmul %205, %206, %cst_117 {dimension_numbers = #tpu.dot_dimension_numbers<[1], [0], [0], [1], [0, 0, 1, 1], [], []>} : vector<2x128xf32>, vector<128x32xf32>, vector<2x32xf32> -> vector<2x32xf32>
      %c0_118 = arith.constant 0 : index
      %c0_119 = arith.constant 0 : index
      %208 = vector.load %arg10[%c0_118, %c0_119] : memref<1x32xf32, #tpu.memory_space<vmem>>, vector<1x32xf32>
      %209 = vector.broadcast %208 : vector<1x32xf32> to vector<2x32xf32>
      %210 = arith.addf %207, %209 : vector<2x32xf32>
      %cst_120 = arith.constant 5.000000e-01 : f32
      %211 = vector.broadcast %cst_120 : f32 to vector<2x32xf32>
      %212 = arith.mulf %211, %210 : vector<2x32xf32>
      %cst_121 = arith.constant 0.707106769 : f32
      %213 = vector.broadcast %cst_121 : f32 to vector<2x32xf32>
      %214 = arith.mulf %210, %213 : vector<2x32xf32>
      %215 = math.erf %214 : vector<2x32xf32>
      %cst_122 = arith.constant 1.000000e+00 : f32
      %216 = vector.broadcast %cst_122 : f32 to vector<2x32xf32>
      %217 = arith.addf %216, %215 : vector<2x32xf32>
      %218 = arith.mulf %212, %217 : vector<2x32xf32>
      %219 = arith.addf %204, %218 : vector<2x32xf32>
      %c12_123 = arith.constant 12 : index
      %c0_124 = arith.constant 0 : index
      %220 = vector.load %arg28[%c12_123, %c0_124] : memref<14x32xf32, #tpu.memory_space<vmem>>, vector<2x32xf32>
      tpu.vector_store %arg28[%c12_123, %c0_124], %219 {strides = array<i32>} : memref<14x32xf32, #tpu.memory_space<vmem>>, vector<2x32xf32>,
      %c0_125 = arith.constant 0 : index
      %c0_126 = arith.constant 0 : index
      %221 = vector.load %arg28[%c0_125, %c0_126] : memref<14x32xf32, #tpu.memory_space<vmem>>, vector<14x32xf32>
      %c0_127 = arith.constant 0 : index
      %c0_128 = arith.constant 0 : index
      %222 = vector.load %arg11[%c0_127, %c0_128] : memref<1x32xf32, #tpu.memory_space<vmem>>, vector<1x32xf32>
      %c0_129 = arith.constant 0 : index
      %c0_130 = arith.constant 0 : index
      %223 = vector.load %arg12[%c0_129, %c0_130] : memref<1x32xf32, #tpu.memory_space<vmem>>, vector<1x32xf32>
      %cst_131 = arith.constant dense<0.000000e+00> : vector<14xf32>
      %224 = vector.multi_reduction <add>, %221, %cst_131 [1] : vector<14x32xf32> to vector<14xf32>
      %225 = vector.shape_cast %224 : vector<14xf32> to vector<14x1xf32>
      %cst_132 = arith.constant 3.200000e+01 : f32
      %226 = vector.broadcast %cst_132 : f32 to vector<14x1xf32>
      %227 = arith.divf %225, %226 : vector<14x1xf32>
      %228 = vector.broadcast %227 : vector<14x1xf32> to vector<14x32xf32>
      %229 = arith.subf %221, %228 : vector<14x32xf32>
      %230 = arith.mulf %229, %229 : vector<14x32xf32>
      %cst_133 = arith.constant dense<0.000000e+00> : vector<14xf32>
      %231 = vector.multi_reduction <add>, %230, %cst_133 [1] : vector<14x32xf32> to vector<14xf32>
      %232 = vector.shape_cast %231 : vector<14xf32> to vector<14x1xf32>
      %cst_134 = arith.constant 3.200000e+01 : f32
      %233 = vector.broadcast %cst_134 : f32 to vector<14x1xf32>
      %234 = arith.divf %232, %233 : vector<14x1xf32>
      %235 = vector.broadcast %227 : vector<14x1xf32> to vector<14x32xf32>
      %236 = arith.subf %221, %235 : vector<14x32xf32>
      %cst_135 = arith.constant 9.99999974E-6 : f32
      %237 = vector.broadcast %cst_135 : f32 to vector<14x1xf32>
      %238 = arith.addf %234, %237 : vector<14x1xf32>
      %239 = math.rsqrt %238 : vector<14x1xf32>
      %240 = vector.broadcast %239 : vector<14x1xf32> to vector<14x32xf32>
      %241 = arith.mulf %236, %240 : vector<14x32xf32>
      %242 = vector.broadcast %222 : vector<1x32xf32> to vector<14x32xf32>
      %243 = arith.mulf %241, %242 : vector<14x32xf32>
      %244 = vector.broadcast %223 : vector<1x32xf32> to vector<14x32xf32>
      %245 = arith.addf %243, %244 : vector<14x32xf32>
      %c0_136 = arith.constant 0 : index
      %c0_137 = arith.constant 0 : index
      %246 = vector.load %arg28[%c0_136, %c0_137] : memref<14x32xf32, #tpu.memory_space<vmem>>, vector<14x32xf32>
      tpu.vector_store %arg28[%c0_136, %c0_137], %245 {strides = array<i32>} : memref<14x32xf32, #tpu.memory_space<vmem>>, vector<14x32xf32>,
    } else {
    }
    %c0 = arith.constant 0 : index
    %c0_1 = arith.constant 0 : index
    %3 = vector.load %arg28[%c0, %c0_1] : memref<14x32xf32, #tpu.memory_space<vmem>>, vector<14x32xf32>
    %c0_2 = arith.constant 0 : index
    %c0_3 = arith.constant 0 : index
    %c0_4 = arith.constant 0 : index
    %4 = vector.load %arg13[%c0_2, %c0_3, %c0_4] : memref<1x32x96xf32, #tpu.memory_space<vmem>>, vector<1x32x96xf32>
    %5 = vector.shape_cast %4 : vector<1x32x96xf32> to vector<32x96xf32>
    %cst = arith.constant dense<0.000000e+00> : vector<14x96xf32>
    %6 = tpu.matmul %3, %5, %cst {dimension_numbers = #tpu.dot_dimension_numbers<[1], [0], [0], [1], [0, 0, 1, 1], [], []>} : vector<14x32xf32>, vector<32x96xf32>, vector<14x96xf32> -> vector<14x96xf32>
    %c0_5 = arith.constant 0 : index
    %c0_6 = arith.constant 0 : index
    %c0_7 = arith.constant 0 : index
    %7 = vector.load %arg14[%c0_5, %c0_6, %c0_7] : memref<1x1x96xf32, #tpu.memory_space<vmem>>, vector<1x1x96xf32>
    %8 = vector.shape_cast %7 : vector<1x1x96xf32> to vector<1x96xf32>
    %9 = vector.broadcast %8 : vector<1x96xf32> to vector<14x96xf32>
    %10 = arith.addf %6, %9 : vector<14x96xf32>
    %11 = vector.extract_strided_slice %10 {offsets = [0, 0], sizes = [14, 8], strides = [1, 1]} : vector<14x96xf32> to vector<14x8xf32>
    %12 = vector.extract_strided_slice %10 {offsets = [0, 32], sizes = [14, 8], strides = [1, 1]} : vector<14x96xf32> to vector<14x8xf32>
    %13 = vector.extract_strided_slice %10 {offsets = [0, 64], sizes = [14, 8], strides = [1, 1]} : vector<14x96xf32> to vector<14x8xf32>
    %14 = tpu.transpose %12, [1, 0] : vector<14x8xf32> -> vector<8x14xf32>
    %cst_8 = arith.constant dense<0.000000e+00> : vector<14x14xf32>
    %15 = tpu.matmul %11, %14, %cst_8 {dimension_numbers = #tpu.dot_dimension_numbers<[1], [0], [0], [1], [0, 0, 1, 1], [], []>} : vector<14x8xf32>, vector<8x14xf32>, vector<14x14xf32> -> vector<14x14xf32>
    %cst_9 = arith.constant 0.353553385 : f32
    %16 = vector.broadcast %cst_9 : f32 to vector<14x14xf32>
    %17 = arith.mulf %15, %16 : vector<14x14xf32>
    %cst_10 = arith.constant dense<0xFF800000> : vector<14xf32>
    %18 = vector.multi_reduction <maximumf>, %17, %cst_10 [1] : vector<14x14xf32> to vector<14xf32>
    %19 = vector.shape_cast %18 : vector<14xf32> to vector<14x1xf32>
    %20 = vector.broadcast %19 : vector<14x1xf32> to vector<14x14xf32>
    %21 = arith.subf %17, %20 : vector<14x14xf32>
    %22 = math.exp %21 : vector<14x14xf32>
    %cst_11 = arith.constant dense<0.000000e+00> : vector<14xf32>
    %23 = vector.multi_reduction <add>, %22, %cst_11 [1] : vector<14x14xf32> to vector<14xf32>
    %24 = vector.shape_cast %23 : vector<14xf32> to vector<14x1xf32>
    %25 = tpu.reciprocal %24 {approx = true} : vector<14x1xf32> -> vector<14x1xf32>
    %26 = vector.broadcast %25 : vector<14x1xf32> to vector<14x14xf32>
    %27 = arith.mulf %22, %26 : vector<14x14xf32>
    %cst_12 = arith.constant dense<0.000000e+00> : vector<14x8xf32>
    %28 = tpu.matmul %27, %13, %cst_12 {dimension_numbers = #tpu.dot_dimension_numbers<[1], [0], [0], [1], [0, 0, 1, 1], [], []>} : vector<14x14xf32>, vector<14x8xf32>, vector<14x8xf32> -> vector<14x8xf32>
    %c0_13 = arith.constant 0 : index
    %c0_14 = arith.constant 0 : index
    %29 = vector.load %arg29[%c0_13, %c0_14] : memref<14x32xf32, #tpu.memory_space<vmem>>, vector<14x8xf32>
    tpu.vector_store %arg29[%c0_13, %c0_14], %28 {strides = array<i32>} : memref<14x32xf32, #tpu.memory_space<vmem>>, vector<14x8xf32>,
    %30 = vector.extract_strided_slice %10 {offsets = [0, 8], sizes = [14, 8], strides = [1, 1]} : vector<14x96xf32> to vector<14x8xf32>
    %31 = vector.extract_strided_slice %10 {offsets = [0, 40], sizes = [14, 8], strides = [1, 1]} : vector<14x96xf32> to vector<14x8xf32>
    %32 = vector.extract_strided_slice %10 {offsets = [0, 72], sizes = [14, 8], strides = [1, 1]} : vector<14x96xf32> to vector<14x8xf32>
    %33 = tpu.transpose %31, [1, 0] : vector<14x8xf32> -> vector<8x14xf32>
    %cst_15 = arith.constant dense<0.000000e+00> : vector<14x14xf32>
    %34 = tpu.matmul %30, %33, %cst_15 {dimension_numbers = #tpu.dot_dimension_numbers<[1], [0], [0], [1], [0, 0, 1, 1], [], []>} : vector<14x8xf32>, vector<8x14xf32>, vector<14x14xf32> -> vector<14x14xf32>
    %cst_16 = arith.constant 0.353553385 : f32
    %35 = vector.broadcast %cst_16 : f32 to vector<14x14xf32>
    %36 = arith.mulf %34, %35 : vector<14x14xf32>
    %cst_17 = arith.constant dense<0xFF800000> : vector<14xf32>
    %37 = vector.multi_reduction <maximumf>, %36, %cst_17 [1] : vector<14x14xf32> to vector<14xf32>
    %38 = vector.shape_cast %37 : vector<14xf32> to vector<14x1xf32>
    %39 = vector.broadcast %38 : vector<14x1xf32> to vector<14x14xf32>
    %40 = arith.subf %36, %39 : vector<14x14xf32>
    %41 = math.exp %40 : vector<14x14xf32>
    %cst_18 = arith.constant dense<0.000000e+00> : vector<14xf32>
    %42 = vector.multi_reduction <add>, %41, %cst_18 [1] : vector<14x14xf32> to vector<14xf32>
    %43 = vector.shape_cast %42 : vector<14xf32> to vector<14x1xf32>
    %44 = tpu.reciprocal %43 {approx = true} : vector<14x1xf32> -> vector<14x1xf32>
    %45 = vector.broadcast %44 : vector<14x1xf32> to vector<14x14xf32>
    %46 = arith.mulf %41, %45 : vector<14x14xf32>
    %cst_19 = arith.constant dense<0.000000e+00> : vector<14x8xf32>
    %47 = tpu.matmul %46, %32, %cst_19 {dimension_numbers = #tpu.dot_dimension_numbers<[1], [0], [0], [1], [0, 0, 1, 1], [], []>} : vector<14x14xf32>, vector<14x8xf32>, vector<14x8xf32> -> vector<14x8xf32>
    %c0_20 = arith.constant 0 : index
    %c8 = arith.constant 8 : index
    %48 = vector.load %arg29[%c0_20, %c8] : memref<14x32xf32, #tpu.memory_space<vmem>>, vector<14x8xf32>
    tpu.vector_store %arg29[%c0_20, %c8], %47 {strides = array<i32>} : memref<14x32xf32, #tpu.memory_space<vmem>>, vector<14x8xf32>,
    %49 = vector.extract_strided_slice %10 {offsets = [0, 16], sizes = [14, 8], strides = [1, 1]} : vector<14x96xf32> to vector<14x8xf32>
    %50 = vector.extract_strided_slice %10 {offsets = [0, 48], sizes = [14, 8], strides = [1, 1]} : vector<14x96xf32> to vector<14x8xf32>
    %51 = vector.extract_strided_slice %10 {offsets = [0, 80], sizes = [14, 8], strides = [1, 1]} : vector<14x96xf32> to vector<14x8xf32>
    %52 = tpu.transpose %50, [1, 0] : vector<14x8xf32> -> vector<8x14xf32>
    %cst_21 = arith.constant dense<0.000000e+00> : vector<14x14xf32>
    %53 = tpu.matmul %49, %52, %cst_21 {dimension_numbers = #tpu.dot_dimension_numbers<[1], [0], [0], [1], [0, 0, 1, 1], [], []>} : vector<14x8xf32>, vector<8x14xf32>, vector<14x14xf32> -> vector<14x14xf32>
    %cst_22 = arith.constant 0.353553385 : f32
    %54 = vector.broadcast %cst_22 : f32 to vector<14x14xf32>
    %55 = arith.mulf %53, %54 : vector<14x14xf32>
    %cst_23 = arith.constant dense<0xFF800000> : vector<14xf32>
    %56 = vector.multi_reduction <maximumf>, %55, %cst_23 [1] : vector<14x14xf32> to vector<14xf32>
    %57 = vector.shape_cast %56 : vector<14xf32> to vector<14x1xf32>
    %58 = vector.broadcast %57 : vector<14x1xf32> to vector<14x14xf32>
    %59 = arith.subf %55, %58 : vector<14x14xf32>
    %60 = math.exp %59 : vector<14x14xf32>
    %cst_24 = arith.constant dense<0.000000e+00> : vector<14xf32>
    %61 = vector.multi_reduction <add>, %60, %cst_24 [1] : vector<14x14xf32> to vector<14xf32>
    %62 = vector.shape_cast %61 : vector<14xf32> to vector<14x1xf32>
    %63 = tpu.reciprocal %62 {approx = true} : vector<14x1xf32> -> vector<14x1xf32>
    %64 = vector.broadcast %63 : vector<14x1xf32> to vector<14x14xf32>
    %65 = arith.mulf %60, %64 : vector<14x14xf32>
    %cst_25 = arith.constant dense<0.000000e+00> : vector<14x8xf32>
    %66 = tpu.matmul %65, %51, %cst_25 {dimension_numbers = #tpu.dot_dimension_numbers<[1], [0], [0], [1], [0, 0, 1, 1], [], []>} : vector<14x14xf32>, vector<14x8xf32>, vector<14x8xf32> -> vector<14x8xf32>
    %c0_26 = arith.constant 0 : index
    %c16 = arith.constant 16 : index
    %67 = vector.load %arg29[%c0_26, %c16] : memref<14x32xf32, #tpu.memory_space<vmem>>, vector<14x8xf32>
    tpu.vector_store %arg29[%c0_26, %c16], %66 {strides = array<i32>} : memref<14x32xf32, #tpu.memory_space<vmem>>, vector<14x8xf32>,
    %68 = vector.extract_strided_slice %10 {offsets = [0, 24], sizes = [14, 8], strides = [1, 1]} : vector<14x96xf32> to vector<14x8xf32>
    %69 = vector.extract_strided_slice %10 {offsets = [0, 56], sizes = [14, 8], strides = [1, 1]} : vector<14x96xf32> to vector<14x8xf32>
    %70 = vector.extract_strided_slice %10 {offsets = [0, 88], sizes = [14, 8], strides = [1, 1]} : vector<14x96xf32> to vector<14x8xf32>
    %71 = tpu.transpose %69, [1, 0] : vector<14x8xf32> -> vector<8x14xf32>
    %cst_27 = arith.constant dense<0.000000e+00> : vector<14x14xf32>
    %72 = tpu.matmul %68, %71, %cst_27 {dimension_numbers = #tpu.dot_dimension_numbers<[1], [0], [0], [1], [0, 0, 1, 1], [], []>} : vector<14x8xf32>, vector<8x14xf32>, vector<14x14xf32> -> vector<14x14xf32>
    %cst_28 = arith.constant 0.353553385 : f32
    %73 = vector.broadcast %cst_28 : f32 to vector<14x14xf32>
    %74 = arith.mulf %72, %73 : vector<14x14xf32>
    %cst_29 = arith.constant dense<0xFF800000> : vector<14xf32>
    %75 = vector.multi_reduction <maximumf>, %74, %cst_29 [1] : vector<14x14xf32> to vector<14xf32>
    %76 = vector.shape_cast %75 : vector<14xf32> to vector<14x1xf32>
    %77 = vector.broadcast %76 : vector<14x1xf32> to vector<14x14xf32>
    %78 = arith.subf %74, %77 : vector<14x14xf32>
    %79 = math.exp %78 : vector<14x14xf32>
    %cst_30 = arith.constant dense<0.000000e+00> : vector<14xf32>
    %80 = vector.multi_reduction <add>, %79, %cst_30 [1] : vector<14x14xf32> to vector<14xf32>
    %81 = vector.shape_cast %80 : vector<14xf32> to vector<14x1xf32>
    %82 = tpu.reciprocal %81 {approx = true} : vector<14x1xf32> -> vector<14x1xf32>
    %83 = vector.broadcast %82 : vector<14x1xf32> to vector<14x14xf32>
    %84 = arith.mulf %79, %83 : vector<14x14xf32>
    %cst_31 = arith.constant dense<0.000000e+00> : vector<14x8xf32>
    %85 = tpu.matmul %84, %70, %cst_31 {dimension_numbers = #tpu.dot_dimension_numbers<[1], [0], [0], [1], [0, 0, 1, 1], [], []>} : vector<14x14xf32>, vector<14x8xf32>, vector<14x8xf32> -> vector<14x8xf32>
    %c0_32 = arith.constant 0 : index
    %c24 = arith.constant 24 : index
    %86 = vector.load %arg29[%c0_32, %c24] : memref<14x32xf32, #tpu.memory_space<vmem>>, vector<14x8xf32>
    tpu.vector_store %arg29[%c0_32, %c24], %85 {strides = array<i32>} : memref<14x32xf32, #tpu.memory_space<vmem>>, vector<14x8xf32>,
    %c0_33 = arith.constant 0 : index
    %c0_34 = arith.constant 0 : index
    %87 = vector.load %arg29[%c0_33, %c0_34] : memref<14x32xf32, #tpu.memory_space<vmem>>, vector<14x32xf32>
    %c0_35 = arith.constant 0 : index
    %c0_36 = arith.constant 0 : index
    %c0_37 = arith.constant 0 : index
    %88 = vector.load %arg15[%c0_35, %c0_36, %c0_37] : memref<1x32x32xf32, #tpu.memory_space<vmem>>, vector<1x32x32xf32>
    %89 = vector.shape_cast %88 : vector<1x32x32xf32> to vector<32x32xf32>
    %cst_38 = arith.constant dense<0.000000e+00> : vector<14x32xf32>
    %90 = tpu.matmul %87, %89, %cst_38 {dimension_numbers = #tpu.dot_dimension_numbers<[1], [0], [0], [1], [0, 0, 1, 1], [], []>} : vector<14x32xf32>, vector<32x32xf32>, vector<14x32xf32> -> vector<14x32xf32>
    %c0_39 = arith.constant 0 : index
    %c0_40 = arith.constant 0 : index
    %c0_41 = arith.constant 0 : index
    %91 = vector.load %arg16[%c0_39, %c0_40, %c0_41] : memref<1x1x32xf32, #tpu.memory_space<vmem>>, vector<1x1x32xf32>
    %92 = vector.shape_cast %91 : vector<1x1x32xf32> to vector<1x32xf32>
    %93 = vector.broadcast %92 : vector<1x32xf32> to vector<14x32xf32>
    %94 = arith.addf %90, %93 : vector<14x32xf32>
    %95 = arith.addf %3, %94 : vector<14x32xf32>
    %c0_42 = arith.constant 0 : index
    %c0_43 = arith.constant 0 : index
    %c0_44 = arith.constant 0 : index
    %96 = vector.load %arg17[%c0_42, %c0_43, %c0_44] : memref<1x1x32xf32, #tpu.memory_space<vmem>>, vector<1x1x32xf32>
    %97 = vector.shape_cast %96 : vector<1x1x32xf32> to vector<1x32xf32>
    %c0_45 = arith.constant 0 : index
    %c0_46 = arith.constant 0 : index
    %c0_47 = arith.constant 0 : index
    %98 = vector.load %arg18[%c0_45, %c0_46, %c0_47] : memref<1x1x32xf32, #tpu.memory_space<vmem>>, vector<1x1x32xf32>
    %99 = vector.shape_cast %98 : vector<1x1x32xf32> to vector<1x32xf32>
    %cst_48 = arith.constant dense<0.000000e+00> : vector<14xf32>
    %100 = vector.multi_reduction <add>, %95, %cst_48 [1] : vector<14x32xf32> to vector<14xf32>
    %101 = vector.shape_cast %100 : vector<14xf32> to vector<14x1xf32>
    %cst_49 = arith.constant 3.200000e+01 : f32
    %102 = vector.broadcast %cst_49 : f32 to vector<14x1xf32>
    %103 = arith.divf %101, %102 : vector<14x1xf32>
    %104 = vector.broadcast %103 : vector<14x1xf32> to vector<14x32xf32>
    %105 = arith.subf %95, %104 : vector<14x32xf32>
    %106 = arith.mulf %105, %105 : vector<14x32xf32>
    %cst_50 = arith.constant dense<0.000000e+00> : vector<14xf32>
    %107 = vector.multi_reduction <add>, %106, %cst_50 [1] : vector<14x32xf32> to vector<14xf32>
    %108 = vector.shape_cast %107 : vector<14xf32> to vector<14x1xf32>
    %cst_51 = arith.constant 3.200000e+01 : f32
    %109 = vector.broadcast %cst_51 : f32 to vector<14x1xf32>
    %110 = arith.divf %108, %109 : vector<14x1xf32>
    %111 = vector.broadcast %103 : vector<14x1xf32> to vector<14x32xf32>
    %112 = arith.subf %95, %111 : vector<14x32xf32>
    %cst_52 = arith.constant 9.99999974E-6 : f32
    %113 = vector.broadcast %cst_52 : f32 to vector<14x1xf32>
    %114 = arith.addf %110, %113 : vector<14x1xf32>
    %115 = math.rsqrt %114 : vector<14x1xf32>
    %116 = vector.broadcast %115 : vector<14x1xf32> to vector<14x32xf32>
    %117 = arith.mulf %112, %116 : vector<14x32xf32>
    %118 = vector.broadcast %97 : vector<1x32xf32> to vector<14x32xf32>
    %119 = arith.mulf %117, %118 : vector<14x32xf32>
    %120 = vector.broadcast %99 : vector<1x32xf32> to vector<14x32xf32>
    %121 = arith.addf %119, %120 : vector<14x32xf32>
    %c0_53 = arith.constant 0 : index
    %c0_54 = arith.constant 0 : index
    %c0_55 = arith.constant 0 : index
    %122 = vector.load %arg19[%c0_53, %c0_54, %c0_55] : memref<1x32x32xf32, #tpu.memory_space<vmem>>, vector<1x32x32xf32>
    %123 = vector.shape_cast %122 : vector<1x32x32xf32> to vector<32x32xf32>
    %cst_56 = arith.constant dense<0.000000e+00> : vector<14x32xf32>
    %124 = tpu.matmul %121, %123, %cst_56 {dimension_numbers = #tpu.dot_dimension_numbers<[1], [0], [0], [1], [0, 0, 1, 1], [], []>} : vector<14x32xf32>, vector<32x32xf32>, vector<14x32xf32> -> vector<14x32xf32>
    %c0_57 = arith.constant 0 : index
    %c0_58 = arith.constant 0 : index
    %c0_59 = arith.constant 0 : index
    %125 = vector.load %arg20[%c0_57, %c0_58, %c0_59] : memref<1x1x32xf32, #tpu.memory_space<vmem>>, vector<1x1x32xf32>
    %126 = vector.shape_cast %125 : vector<1x1x32xf32> to vector<1x32xf32>
    %127 = vector.broadcast %126 : vector<1x32xf32> to vector<14x32xf32>
    %128 = arith.addf %124, %127 : vector<14x32xf32>
    %cst_60 = arith.constant 0.000000e+00 : f32
    %129 = vector.broadcast %cst_60 : f32 to vector<14x32xf32>
    %130 = arith.maximumf %128, %129 : vector<14x32xf32>
    %c0_61 = arith.constant 0 : index
    %c0_62 = arith.constant 0 : index
    %c0_63 = arith.constant 0 : index
    %131 = vector.load %arg21[%c0_61, %c0_62, %c0_63] : memref<1x32x32xf32, #tpu.memory_space<vmem>>, vector<1x32x32xf32>
    %132 = vector.shape_cast %131 : vector<1x32x32xf32> to vector<32x32xf32>
    %cst_64 = arith.constant dense<0.000000e+00> : vector<14x32xf32>
    %133 = tpu.matmul %130, %132, %cst_64 {dimension_numbers = #tpu.dot_dimension_numbers<[1], [0], [0], [1], [0, 0, 1, 1], [], []>} : vector<14x32xf32>, vector<32x32xf32>, vector<14x32xf32> -> vector<14x32xf32>
    %c0_65 = arith.constant 0 : index
    %c0_66 = arith.constant 0 : index
    %c0_67 = arith.constant 0 : index
    %134 = vector.load %arg22[%c0_65, %c0_66, %c0_67] : memref<1x1x32xf32, #tpu.memory_space<vmem>>, vector<1x1x32xf32>
    %135 = vector.shape_cast %134 : vector<1x1x32xf32> to vector<1x32xf32>
    %136 = vector.broadcast %135 : vector<1x32xf32> to vector<14x32xf32>
    %137 = arith.addf %133, %136 : vector<14x32xf32>
    %138 = arith.addf %121, %137 : vector<14x32xf32>
    %c0_68 = arith.constant 0 : index
    %c0_69 = arith.constant 0 : index
    %c0_70 = arith.constant 0 : index
    %139 = vector.load %arg23[%c0_68, %c0_69, %c0_70] : memref<1x1x32xf32, #tpu.memory_space<vmem>>, vector<1x1x32xf32>
    %140 = vector.shape_cast %139 : vector<1x1x32xf32> to vector<1x32xf32>
    %c0_71 = arith.constant 0 : index
    %c0_72 = arith.constant 0 : index
    %c0_73 = arith.constant 0 : index
    %141 = vector.load %arg24[%c0_71, %c0_72, %c0_73] : memref<1x1x32xf32, #tpu.memory_space<vmem>>, vector<1x1x32xf32>
    %142 = vector.shape_cast %141 : vector<1x1x32xf32> to vector<1x32xf32>
    %cst_74 = arith.constant dense<0.000000e+00> : vector<14xf32>
    %143 = vector.multi_reduction <add>, %138, %cst_74 [1] : vector<14x32xf32> to vector<14xf32>
    %144 = vector.shape_cast %143 : vector<14xf32> to vector<14x1xf32>
    %cst_75 = arith.constant 3.200000e+01 : f32
    %145 = vector.broadcast %cst_75 : f32 to vector<14x1xf32>
    %146 = arith.divf %144, %145 : vector<14x1xf32>
    %147 = vector.broadcast %146 : vector<14x1xf32> to vector<14x32xf32>
    %148 = arith.subf %138, %147 : vector<14x32xf32>
    %149 = arith.mulf %148, %148 : vector<14x32xf32>
    %cst_76 = arith.constant dense<0.000000e+00> : vector<14xf32>
    %150 = vector.multi_reduction <add>, %149, %cst_76 [1] : vector<14x32xf32> to vector<14xf32>
    %151 = vector.shape_cast %150 : vector<14xf32> to vector<14x1xf32>
    %cst_77 = arith.constant 3.200000e+01 : f32
    %152 = vector.broadcast %cst_77 : f32 to vector<14x1xf32>
    %153 = arith.divf %151, %152 : vector<14x1xf32>
    %154 = vector.broadcast %146 : vector<14x1xf32> to vector<14x32xf32>
    %155 = arith.subf %138, %154 : vector<14x32xf32>
    %cst_78 = arith.constant 9.99999974E-6 : f32
    %156 = vector.broadcast %cst_78 : f32 to vector<14x1xf32>
    %157 = arith.addf %153, %156 : vector<14x1xf32>
    %158 = math.rsqrt %157 : vector<14x1xf32>
    %159 = vector.broadcast %158 : vector<14x1xf32> to vector<14x32xf32>
    %160 = arith.mulf %155, %159 : vector<14x32xf32>
    %161 = vector.broadcast %140 : vector<1x32xf32> to vector<14x32xf32>
    %162 = arith.mulf %160, %161 : vector<14x32xf32>
    %163 = vector.broadcast %142 : vector<1x32xf32> to vector<14x32xf32>
    %164 = arith.addf %162, %163 : vector<14x32xf32>
    %c0_79 = arith.constant 0 : index
    %c0_80 = arith.constant 0 : index
    %165 = vector.load %arg28[%c0_79, %c0_80] : memref<14x32xf32, #tpu.memory_space<vmem>>, vector<14x32xf32>
    tpu.vector_store %arg28[%c0_79, %c0_80], %164 {strides = array<i32>} : memref<14x32xf32, #tpu.memory_space<vmem>>, vector<14x32xf32>,
    %c1_i32 = arith.constant 1 : i32
    %166 = arith.cmpi eq, %arg0, %c1_i32 : i32
    %167 = arith.extui %166 : i1 to i32
    %c0_i32_81 = arith.constant 0 : i32
    %168 = arith.cmpi ne, %167, %c0_i32_81 : i32
    scf.if %168 {
      %169 = vector.extract_strided_slice %164 {offsets = [13, 0], sizes = [1, 32], strides = [1, 1]} : vector<14x32xf32> to vector<1x32xf32>
      %c0_82 = arith.constant 0 : index
      %c0_83 = arith.constant 0 : index
      %170 = vector.load %arg25[%c0_82, %c0_83] : memref<32x256xf32, #tpu.memory_space<vmem>>, vector<32x256xf32>
      %cst_84 = arith.constant dense<0.000000e+00> : vector<1x256xf32>
      %171 = tpu.matmul %169, %170, %cst_84 {dimension_numbers = #tpu.dot_dimension_numbers<[1], [0], [0], [1], [0, 0, 1, 1], [], []>} : vector<1x32xf32>, vector<32x256xf32>, vector<1x256xf32> -> vector<1x256xf32>
      %c0_85 = arith.constant 0 : index
      %c0_86 = arith.constant 0 : index
      %172 = vector.load %arg26[%c0_85, %c0_86] : memref<1x256xf32, #tpu.memory_space<vmem>>, vector<1x256xf32>
      %173 = arith.addf %171, %172 : vector<1x256xf32>
      %174 = tpu.iota {dimensions = array<i32: 1>} : vector<1x256xi32>
      %c11_i32 = arith.constant 11 : i32
      %175 = vector.broadcast %c11_i32 : i32 to vector<1x256xi32>
      %176 = arith.cmpi eq, %174, %175 : vector<1x256xi32>
      %177 = math.tanh %173 : vector<1x256xf32>
      %cst_87 = arith.constant 1.800000e+02 : f32
      %178 = vector.broadcast %cst_87 : f32 to vector<1x256xf32>
      %179 = arith.mulf %178, %177 : vector<1x256xf32>
      %180 = arith.select %176, %179, %173 : vector<1x256xi1>, vector<1x256xf32>
      %c0_88 = arith.constant 0 : index
      %c0_89 = arith.constant 0 : index
      %181 = vector.load %arg27[%c0_88, %c0_89] : memref<1x256xf32, #tpu.memory_space<vmem>>, vector<1x256xf32>
      tpu.vector_store %arg27[%c0_88, %c0_89], %180 {strides = array<i32>} : memref<1x256xf32, #tpu.memory_space<vmem>>, vector<1x256xf32>,
    } else {
    }
    return
  }
  func.func @transform_0(%arg0: i32) -> (i32, i32) {
    %c0_i32 = arith.constant 0 : i32
    %c0_i32_0 = arith.constant 0 : i32
    %c0_i32_1 = arith.constant 0 : i32
    return %c0_i32, %c0_i32_0 : i32, i32
  }
  func.func @transform_1(%arg0: i32) -> (i32, i32) {
    %c0_i32 = arith.constant 0 : i32
    %c0_i32_0 = arith.constant 0 : i32
    %c0_i32_1 = arith.constant 0 : i32
    return %c0_i32, %c0_i32_0 : i32, i32
  }
  func.func @transform_2(%arg0: i32) -> (i32, i32) {
    %c0_i32 = arith.constant 0 : i32
    %c0_i32_0 = arith.constant 0 : i32
    %c0_i32_1 = arith.constant 0 : i32
    return %c0_i32, %c0_i32_0 : i32, i32
  }
  func.func @transform_3(%arg0: i32) -> (i32, i32) {
    %c0_i32 = arith.constant 0 : i32
    %c0_i32_0 = arith.constant 0 : i32
    %c0_i32_1 = arith.constant 0 : i32
    return %c0_i32, %c0_i32_0 : i32, i32
  }
  func.func @transform_4(%arg0: i32) -> (i32, i32) {
    %c0_i32 = arith.constant 0 : i32
    %c0_i32_0 = arith.constant 0 : i32
    %c0_i32_1 = arith.constant 0 : i32
    return %c0_i32, %c0_i32_0 : i32, i32
  }
  func.func @transform_5(%arg0: i32) -> (i32, i32) {
    %c0_i32 = arith.constant 0 : i32
    %c0_i32_0 = arith.constant 0 : i32
    %c0_i32_1 = arith.constant 0 : i32
    return %c0_i32, %c0_i32_0 : i32, i32
  }
  func.func @transform_6(%arg0: i32) -> (i32, i32) {
    %c0_i32 = arith.constant 0 : i32
    %c0_i32_0 = arith.constant 0 : i32
    %c0_i32_1 = arith.constant 0 : i32
    return %c0_i32, %c0_i32_0 : i32, i32
  }
  func.func @transform_7(%arg0: i32) -> (i32, i32) {
    %c0_i32 = arith.constant 0 : i32
    %c0_i32_0 = arith.constant 0 : i32
    %c0_i32_1 = arith.constant 0 : i32
    return %c0_i32, %c0_i32_0 : i32, i32
  }
  func.func @transform_8(%arg0: i32) -> (i32, i32) {
    %c0_i32 = arith.constant 0 : i32
    %c0_i32_0 = arith.constant 0 : i32
    %c0_i32_1 = arith.constant 0 : i32
    return %c0_i32, %c0_i32_0 : i32, i32
  }
  func.func @transform_9(%arg0: i32) -> (i32, i32) {
    %c0_i32 = arith.constant 0 : i32
    %c0_i32_0 = arith.constant 0 : i32
    %c0_i32_1 = arith.constant 0 : i32
    return %c0_i32, %c0_i32_0 : i32, i32
  }
  func.func @transform_10(%arg0: i32) -> (i32, i32) {
    %c0_i32 = arith.constant 0 : i32
    %c0_i32_0 = arith.constant 0 : i32
    %c0_i32_1 = arith.constant 0 : i32
    return %c0_i32, %c0_i32_0 : i32, i32
  }
  func.func @transform_11(%arg0: i32) -> (i32, i32) {
    %c0_i32 = arith.constant 0 : i32
    %c0_i32_0 = arith.constant 0 : i32
    %c0_i32_1 = arith.constant 0 : i32
    return %c0_i32, %c0_i32_0 : i32, i32
  }
  func.func @transform_12(%arg0: i32) -> (i32, i32, i32) {
    %c0_i32 = arith.constant 0 : i32
    %c0_i32_0 = arith.constant 0 : i32
    %c0_i32_1 = arith.constant 0 : i32
    return %arg0, %c0_i32, %c0_i32_0 : i32, i32, i32
  }
  func.func @transform_13(%arg0: i32) -> (i32, i32, i32) {
    %c0_i32 = arith.constant 0 : i32
    %c0_i32_0 = arith.constant 0 : i32
    %c0_i32_1 = arith.constant 0 : i32
    return %arg0, %c0_i32, %c0_i32_0 : i32, i32, i32
  }
  func.func @transform_14(%arg0: i32) -> (i32, i32, i32) {
    %c0_i32 = arith.constant 0 : i32
    %c0_i32_0 = arith.constant 0 : i32
    %c0_i32_1 = arith.constant 0 : i32
    return %arg0, %c0_i32, %c0_i32_0 : i32, i32, i32
  }
  func.func @transform_15(%arg0: i32) -> (i32, i32, i32) {
    %c0_i32 = arith.constant 0 : i32
    %c0_i32_0 = arith.constant 0 : i32
    %c0_i32_1 = arith.constant 0 : i32
    return %arg0, %c0_i32, %c0_i32_0 : i32, i32, i32
  }
  func.func @transform_16(%arg0: i32) -> (i32, i32, i32) {
    %c0_i32 = arith.constant 0 : i32
    %c0_i32_0 = arith.constant 0 : i32
    %c0_i32_1 = arith.constant 0 : i32
    return %arg0, %c0_i32, %c0_i32_0 : i32, i32, i32
  }
  func.func @transform_17(%arg0: i32) -> (i32, i32, i32) {
    %c0_i32 = arith.constant 0 : i32
    %c0_i32_0 = arith.constant 0 : i32
    %c0_i32_1 = arith.constant 0 : i32
    return %arg0, %c0_i32, %c0_i32_0 : i32, i32, i32
  }
  func.func @transform_18(%arg0: i32) -> (i32, i32, i32) {
    %c0_i32 = arith.constant 0 : i32
    %c0_i32_0 = arith.constant 0 : i32
    %c0_i32_1 = arith.constant 0 : i32
    return %arg0, %c0_i32, %c0_i32_0 : i32, i32, i32
  }
  func.func @transform_19(%arg0: i32) -> (i32, i32, i32) {
    %c0_i32 = arith.constant 0 : i32
    %c0_i32_0 = arith.constant 0 : i32
    %c0_i32_1 = arith.constant 0 : i32
    return %arg0, %c0_i32, %c0_i32_0 : i32, i32, i32
  }
  func.func @transform_20(%arg0: i32) -> (i32, i32, i32) {
    %c0_i32 = arith.constant 0 : i32
    %c0_i32_0 = arith.constant 0 : i32
    %c0_i32_1 = arith.constant 0 : i32
    return %arg0, %c0_i32, %c0_i32_0 : i32, i32, i32
  }
  func.func @transform_21(%arg0: i32) -> (i32, i32, i32) {
    %c0_i32 = arith.constant 0 : i32
    %c0_i32_0 = arith.constant 0 : i32
    %c0_i32_1 = arith.constant 0 : i32
    return %arg0, %c0_i32, %c0_i32_0 : i32, i32, i32
  }
  func.func @transform_22(%arg0: i32) -> (i32, i32, i32) {
    %c0_i32 = arith.constant 0 : i32
    %c0_i32_0 = arith.constant 0 : i32
    %c0_i32_1 = arith.constant 0 : i32
    return %arg0, %c0_i32, %c0_i32_0 : i32, i32, i32
  }
  func.func @transform_23(%arg0: i32) -> (i32, i32, i32) {
    %c0_i32 = arith.constant 0 : i32
    %c0_i32_0 = arith.constant 0 : i32
    %c0_i32_1 = arith.constant 0 : i32
    return %arg0, %c0_i32, %c0_i32_0 : i32, i32, i32
  }
  func.func @transform_24(%arg0: i32) -> (i32, i32) {
    %c0_i32 = arith.constant 0 : i32
    %c0_i32_0 = arith.constant 0 : i32
    %c0_i32_1 = arith.constant 0 : i32
    return %c0_i32, %c0_i32_0 : i32, i32
  }
  func.func @transform_25(%arg0: i32) -> (i32, i32) {
    %c0_i32 = arith.constant 0 : i32
    %c0_i32_0 = arith.constant 0 : i32
    %c0_i32_1 = arith.constant 0 : i32
    return %c0_i32, %c0_i32_0 : i32, i32
  }
  func.func @transform_26(%arg0: i32) -> (i32, i32) {
    %c0_i32 = arith.constant 0 : i32
    %c0_i32_0 = arith.constant 0 : i32
    %c0_i32_1 = arith.constant 0 : i32
    return %c0_i32, %c0_i32_0 : i32, i32
  }
}

</mosaic_0001>

<llo_original>
// kernel: tpu_custom_call.1
$region0: #{tpu_custom_call.1}
  #allocation0 [shape = 'u32[]', space=smem, size = 0x4, offset = 0x4, fixed_abs, tag = 'smem constant byte address 0x4 - core index']
  #allocation1 [shape = 'u32[72,128]{1,0:T(1,128)}', space=vmem, size = 0x9000, scoped, tag = 'internal scratch']
  #allocation2 [shape = 'f32[14,32]{1,0:T(8,128)}', space=vmem, size = 0x2000, scoped, tag = 'scratch operand']
  #allocation3 [shape = 'f32[14,32]{1,0:T(8,128)}', space=vmem, size = 0x2000, scoped, tag = 'scratch operand']
  %s0 = inlined_call_operand.hbm [shape: f32[14,32], index: 0, kind: input, shape index: {}]
  %s1 = inlined_call_operand.vmem [shape: f32[2,24], index: 1, kind: input, shape index: {}]
  %s2 = inlined_call_operand.vmem [shape: f32[24,32], index: 2, kind: input, shape index: {}]
  %s3 = inlined_call_operand.vmem [shape: f32[1,32], index: 3, kind: input, shape index: {}]
  %s4 = inlined_call_operand.hbm [shape: f32[1,16], index: 4, kind: input, shape index: {}]
  %s5 = inlined_call_operand.hbm [shape: f32[16,32], index: 5, kind: input, shape index: {}]
  %s6 = inlined_call_operand.hbm [shape: f32[1,32], index: 6, kind: input, shape index: {}]
  %s7 = inlined_call_operand.vmem [shape: f32[2,128], index: 7, kind: input, shape index: {}]
  %s8 = inlined_call_operand.vmem [shape: f32[128,32], index: 8, kind: input, shape index: {}]
  %s9 = inlined_call_operand.hbm [shape: f32[1,32], index: 9, kind: input, shape index: {}]
  %s10 = inlined_call_operand.hbm [shape: f32[1,32], index: 10, kind: input, shape index: {}]
  %s11 = inlined_call_operand.hbm [shape: f32[1,32], index: 11, kind: input, shape index: {}]
  %s12 = inlined_call_operand.vmem [shape: f32[2,32,96], index: 12, kind: input, shape index: {}]
  %s13 = inlined_call_operand.vmem [shape: f32[2,1,96], index: 13, kind: input, shape index: {}]
  %s14 = inlined_call_operand.vmem [shape: f32[2,32,32], index: 14, kind: input, shape index: {}]
  %s15 = inlined_call_operand.vmem [shape: f32[2,1,32], index: 15, kind: input, shape index: {}]
  %s16 = inlined_call_operand.vmem [shape: f32[2,1,32], index: 16, kind: input, shape index: {}]
  %s17 = inlined_call_operand.vmem [shape: f32[2,1,32], index: 17, kind: input, shape index: {}]
  %s18 = inlined_call_operand.hbm [shape: f32[2,32,32], index: 18, kind: input, shape index: {}]
  %s19 = inlined_call_operand.vmem [shape: f32[2,1,32], index: 19, kind: input, shape index: {}]
  %s20 = inlined_call_operand.hbm [shape: f32[2,32,32], index: 20, kind: input, shape index: {}]
  %s21 = inlined_call_operand.vmem [shape: f32[2,1,32], index: 21, kind: input, shape index: {}]
  %s22 = inlined_call_operand.vmem [shape: f32[2,1,32], index: 22, kind: input, shape index: {}]
  %s23 = inlined_call_operand.vmem [shape: f32[2,1,32], index: 23, kind: input, shape index: {}]
  %s24 = inlined_call_operand.hbm [shape: f32[32,256], index: 24, kind: input, shape index: {}]
  %s25 = inlined_call_operand.vmem [shape: f32[1,256], index: 25, kind: input, shape index: {}]
  %s26 = inlined_call_operand.hbm [shape: f32[1,256], index: 26, kind: output, shape index: {}]
  %s27 = sld [smem:[#allocation0]]
  $region185: #{tpu_custom_call.1} parent=0
    _
  %s29 = ssub.s32 1, %s27
  %s30 = scalar_select 0, %s29, %s27
  $region1: #{tpu_custom_call.1} parent=0
    #allocation4 [shape = 'u8[8192]{0}', space=vmem, size = 0x2000, scoped, tag = 'input window, operand 0, single buffered']
    #allocation5 [shape = 's32[2]{0}', space=sflag, size = 0x8, scoped, tag = 'scoped memory for tpu_custom_call.1']
    #allocation6 [shape = 's32[2]{0}', space=sflag, size = 0x8, scoped, tag = 'scoped memory for tpu_custom_call.1']
    #allocation7 [shape = 'u8[512]{0}', space=vmem, size = 0x400, scoped, tag = 'input window, operand 4, single buffered']
    #allocation8 [shape = 's32[1]{0}', space=sflag, size = 0x4, scoped, tag = 'scoped memory for tpu_custom_call.1']
    #allocation9 [shape = 'u8[8192]{0}', space=vmem, size = 0x2000, scoped, tag = 'input window, operand 5, single buffered']
    #allocation10 [shape = 'u8[512]{0}', space=vmem, size = 0x400, scoped, tag = 'input window, operand 6, single buffered']
    #allocation11 [shape = 's32[1]{0}', space=sflag, size = 0x4, scoped, tag = 'scoped memory for tpu_custom_call.1']
    #allocation12 [shape = 'u8[512]{0}', space=vmem, size = 0x400, scoped, tag = 'input window, operand 9, single buffered']
    #allocation13 [shape = 'u8[512]{0}', space=vmem, size = 0x400, scoped, tag = 'input window, operand 10, single buffered']
    #allocation14 [shape = 's32[1]{0}', space=sflag, size = 0x4, scoped, tag = 'scoped memory for tpu_custom_call.1']
    #allocation15 [shape = 'u8[512]{0}', space=vmem, size = 0x400, scoped, tag = 'input window, operand 11, single buffered']
    #allocation16 [shape = 'u8[32768]{0}', space=vmem, size = 0x8000, scoped, tag = 'input window, operand 18']
    #allocation17 [shape = 's32[2]{0}', space=sflag, size = 0x8, scoped, tag = 'scoped memory for tpu_custom_call.1']
    #allocation18 [shape = 'u8[32768]{0}', space=vmem, size = 0x8000, scoped, tag = 'input window, operand 20']
    #allocation19 [shape = 'u8[32768]{0}', space=vmem, size = 0x8000, scoped, tag = 'input window, operand 24, single buffered']
    #allocation20 [shape = 's32[1]{0}', space=sflag, size = 0x4, scoped, tag = 'scoped memory for tpu_custom_call.1']
    #allocation21 [shape = 'u8[1024]{0}', space=vmem, size = 0x400, scoped, tag = 'output window, operand 0, single buffered']
    %31 = vsyncpa [#allocation5], 0
    %32 = vsyncpa [#allocation8], 0
    %33 = vsyncpa [#allocation11], 0
    %34 = vsyncpa [#allocation14], 0
    %35 = vsyncpa [#allocation17], 0
    %s36 = scalar_lea.sflag [#allocation17], 1
    %37 = vsyncpa %s36, 0
    %38 = vsyncpa [#allocation20], 0
    %39 = vsyncpa [#allocation6], 0
    loop: start=0, step=1, limit=4
    $region2: #{tpu_custom_call.1} parent=1 // loop_pre_header
      _
    $region3: #{tpu_custom_call.1} parent=1 // loop_header
      %s41 = sphi 0, %s45
      %p42 = scmp.ge.s32.totalorder %s41, 4
      %s49 = sphi 0, %s49
      %s51 = sphi 0, %s49
      %s52 = sphi 0, %s51
      %s66 = sphi 0, %s52
      %s70 = sphi 0, %s70
      %s72 = sphi 0, %s70
      %s73 = sphi 0, %s72
      %s87 = sphi 0, %s73
      %s91 = sphi 0, %s91
      %s93 = sphi 0, %s91
      %s94 = sphi 0, %s93
      %s108 = sphi 0, %s94
      %s112 = sphi 0, %s112
      %s114 = sphi 0, %s112
      %s115 = sphi 0, %s114
      %s129 = sphi 0, %s115
      %s133 = sphi 0, %s133
      %s135 = sphi 0, %s133
      %s136 = sphi 0, %s135
      %s150 = sphi 0, %s136
      %s154 = sphi 0, %s154
      %s156 = sphi 0, %s154
      %s157 = sphi 0, %s156
      %s171 = sphi 0, %s157
      %s175 = sphi 0, %s175
      %s177 = sphi 0, %s175
      %s178 = sphi 0, %s177
      %s192 = sphi 0, %s178
      %s196 = sphi 0, %s196
      %s198 = sphi 0, %s196
      %s199 = sphi 0, %s198
      %s213 = sphi 0, %s199
      %s217 = sphi 0, %s217
      %s219 = sphi 0, %s217
      %s220 = sphi 0, %s219
      %s234 = sphi 0, %s220
      %s238 = sphi 0, %s238
      %s240 = sphi 0, %s238
      %s241 = sphi 0, %s240
      %s255 = sphi 0, %s241
      %s259 = sphi 0, %s259
      %s261 = sphi 0, %s259
      %s262 = sphi 0, %s261
      %s276 = sphi 0, %s262
      %s280 = sphi 0, %s280
      %s282 = sphi 0, %s280
      %s283 = sphi 0, %s282
      %s297 = sphi 0, %s283
      %s303 = sphi 0, %s305
      %s306 = sphi 0, %s303
      %s307 = sphi 0, %s306
      %s323 = sphi 0, %s307
      %s329 = sphi 0, %s331
      %s332 = sphi 0, %s329
      %s333 = sphi 0, %s332
      %s349 = sphi 0, %s333
      %s355 = sphi 0, %s357
      %s358 = sphi 0, %s355
      %s359 = sphi 0, %s358
      %s375 = sphi 0, %s359
      %s381 = sphi 0, %s383
      %s384 = sphi 0, %s381
      %s385 = sphi 0, %s384
      %s401 = sphi 0, %s385
      %s407 = sphi 0, %s409
      %s410 = sphi 0, %s407
      %s411 = sphi 0, %s410
      %s427 = sphi 0, %s411
      %s433 = sphi 0, %s435
      %s436 = sphi 0, %s433
      %s437 = sphi 0, %s436
      %s453 = sphi 0, %s437
      %s459 = sphi 0, %s461
      %s462 = sphi 0, %s459
      %s463 = sphi 0, %s462
      %s479 = sphi 0, %s463
      %s485 = sphi 0, %s487
      %s488 = sphi 0, %s485
      %s489 = sphi 0, %s488
      %s505 = sphi 0, %s489
      %s511 = sphi 0, %s513
      %s514 = sphi 0, %s511
      %s515 = sphi 0, %s514
      %s531 = sphi 0, %s515
      %s537 = sphi 0, %s539
      %s540 = sphi 0, %s537
      %s541 = sphi 0, %s540
      %s557 = sphi 0, %s541
      %s563 = sphi 0, %s565
      %s566 = sphi 0, %s563
      %s567 = sphi 0, %s566
      %s583 = sphi 0, %s567
      %s589 = sphi 0, %s591
      %s592 = sphi 0, %s589
      %s593 = sphi 0, %s592
      %s609 = sphi 0, %s593
      %s613 = sphi 0, %s613
      %s615 = sphi 0, %s613
      %s616 = sphi 0, %s615
      %s630 = sphi 0, %s616
      %s634 = sphi 0, %s634
      %s636 = sphi 0, %s634
      %s637 = sphi 0, %s636
      %s651 = sphi 0, %s637
      %s655 = sphi 0, %s655
      %s657 = sphi 0, %s655
      %s658 = sphi 0, %s657
      %s672 = sphi 0, %s658
    $region4: #{tpu_custom_call.1} parent=1 // loop_header_branch
      %44 = sbr.rel (%p42) target = $region8
    $region5: #{tpu_custom_call.1} parent=1 // loop_body
      %s46 = ssub.s32 %s41, 1
      %s47 = ssub.s32 %s41, 2
      %s48 = sadd.s32 %s41, 1
      %s50 = sadd.s32 %s49, 1
      %p53 = scmp.eq.s32.totalorder %s41, 1
      %p54 = scmp.ne.s32.totalorder %s49, %s51
      %p55 = scmp.eq.s32.totalorder %s41, 0
      %p56 = por %p54, %p55
      %p57 = scmp.ne.s32.totalorder %s49, %s51
      %p58 = scmp.eq.s32.totalorder %s46, 1
      %p59 = por %p57, %p58
      %p60 = scmp.ne.s32.totalorder %s51, %s52
      %p61 = scmp.eq.s32.totalorder %s46, 0
      %p62 = por %p60, %p61
      %p63 = scmp.ne.s32.totalorder %s51, %s52
      %p64 = scmp.eq.s32.totalorder %s47, 1
      %p65 = por %p63, %p64
      %p67 = scmp.ne.s32.totalorder %s52, %s66
      %p68 = scmp.eq.s32.totalorder %s47, 0
      %p69 = por %p67, %p68
      %s71 = sadd.s32 %s70, 1
      %p74 = scmp.eq.s32.totalorder %s41, 1
      %p75 = scmp.ne.s32.totalorder %s70, %s72
      %p76 = scmp.eq.s32.totalorder %s41, 0
      %p77 = por %p75, %p76
      %p78 = scmp.ne.s32.totalorder %s70, %s72
      %p79 = scmp.eq.s32.totalorder %s46, 1
      %p80 = por %p78, %p79
      %p81 = scmp.ne.s32.totalorder %s72, %s73
      %p82 = scmp.eq.s32.totalorder %s46, 0
      %p83 = por %p81, %p82
      %p84 = scmp.ne.s32.totalorder %s72, %s73
      %p85 = scmp.eq.s32.totalorder %s47, 1
      %p86 = por %p84, %p85
      %p88 = scmp.ne.s32.totalorder %s73, %s87
      %p89 = scmp.eq.s32.totalorder %s47, 0
      %p90 = por %p88, %p89
      %s92 = sadd.s32 %s91, 1
      %p95 = scmp.eq.s32.totalorder %s41, 1
      %p96 = scmp.ne.s32.totalorder %s91, %s93
      %p97 = scmp.eq.s32.totalorder %s41, 0
      %p98 = por %p96, %p97
      %p99 = scmp.ne.s32.totalorder %s91, %s93
      %p100 = scmp.eq.s32.totalorder %s46, 1
      %p101 = por %p99, %p100
      %p102 = scmp.ne.s32.totalorder %s93, %s94
      %p103 = scmp.eq.s32.totalorder %s46, 0
      %p104 = por %p102, %p103
      %p105 = scmp.ne.s32.totalorder %s93, %s94
      %p106 = scmp.eq.s32.totalorder %s47, 1
      %p107 = por %p105, %p106
      %p109 = scmp.ne.s32.totalorder %s94, %s108
      %p110 = scmp.eq.s32.totalorder %s47, 0
      %p111 = por %p109, %p110
      %s113 = sadd.s32 %s112, 1
      %p116 = scmp.eq.s32.totalorder %s41, 1
      %p117 = scmp.ne.s32.totalorder %s112, %s114
      %p118 = scmp.eq.s32.totalorder %s41, 0
      %p119 = por %p117, %p118
      %p120 = scmp.ne.s32.totalorder %s112, %s114
      %p121 = scmp.eq.s32.totalorder %s46, 1
      %p122 = por %p120, %p121
      %p123 = scmp.ne.s32.totalorder %s114, %s115
      %p124 = scmp.eq.s32.totalorder %s46, 0
      %p125 = por %p123, %p124
      %p126 = scmp.ne.s32.totalorder %s114, %s115
      %p127 = scmp.eq.s32.totalorder %s47, 1
      %p128 = por %p126, %p127
      %p130 = scmp.ne.s32.totalorder %s115, %s129
      %p131 = scmp.eq.s32.totalorder %s47, 0
      %p132 = por %p130, %p131
      %s134 = sadd.s32 %s133, 1
      %p137 = scmp.eq.s32.totalorder %s41, 1
      %p138 = scmp.ne.s32.totalorder %s133, %s135
      %p139 = scmp.eq.s32.totalorder %s41, 0
      %p140 = por %p138, %p139
      %p141 = scmp.ne.s32.totalorder %s133, %s135
      %p142 = scmp.eq.s32.totalorder %s46, 1
      %p143 = por %p141, %p142
      %p144 = scmp.ne.s32.totalorder %s135, %s136
      %p145 = scmp.eq.s32.totalorder %s46, 0
      %p146 = por %p144, %p145
      %p147 = scmp.ne.s32.totalorder %s135, %s136
      %p148 = scmp.eq.s32.totalorder %s47, 1
      %p149 = por %p147, %p148
      %p151 = scmp.ne.s32.totalorder %s136, %s150
      %p152 = scmp.eq.s32.totalorder %s47, 0
      %p153 = por %p151, %p152
      %s155 = sadd.s32 %s154, 1
      %p158 = scmp.eq.s32.totalorder %s41, 1
      %p159 = scmp.ne.s32.totalorder %s154, %s156
      %p160 = scmp.eq.s32.totalorder %s41, 0
      %p161 = por %p159, %p160
      %p162 = scmp.ne.s32.totalorder %s154, %s156
      %p163 = scmp.eq.s32.totalorder %s46, 1
      %p164 = por %p162, %p163
      %p165 = scmp.ne.s32.totalorder %s156, %s157
      %p166 = scmp.eq.s32.totalorder %s46, 0
      %p167 = por %p165, %p166
      %p168 = scmp.ne.s32.totalorder %s156, %s157
      %p169 = scmp.eq.s32.totalorder %s47, 1
      %p170 = por %p168, %p169
      %p172 = scmp.ne.s32.totalorder %s157, %s171
      %p173 = scmp.eq.s32.totalorder %s47, 0
      %p174 = por %p172, %p173
      %s176 = sadd.s32 %s175, 1
      %p179 = scmp.eq.s32.totalorder %s41, 1
      %p180 = scmp.ne.s32.totalorder %s175, %s177
      %p181 = scmp.eq.s32.totalorder %s41, 0
      %p182 = por %p180, %p181
      %p183 = scmp.ne.s32.totalorder %s175, %s177
      %p184 = scmp.eq.s32.totalorder %s46, 1
      %p185 = por %p183, %p184
      %p186 = scmp.ne.s32.totalorder %s177, %s178
      %p187 = scmp.eq.s32.totalorder %s46, 0
      %p188 = por %p186, %p187
      %p189 = scmp.ne.s32.totalorder %s177, %s178
      %p190 = scmp.eq.s32.totalorder %s47, 1
      %p191 = por %p189, %p190
      %p193 = scmp.ne.s32.totalorder %s178, %s192
      %p194 = scmp.eq.s32.totalorder %s47, 0
      %p195 = por %p193, %p194
      %s197 = sadd.s32 %s196, 1
      %p200 = scmp.eq.s32.totalorder %s41, 1
      %p201 = scmp.ne.s32.totalorder %s196, %s198
      %p202 = scmp.eq.s32.totalorder %s41, 0
      %p203 = por %p201, %p202
      %p204 = scmp.ne.s32.totalorder %s196, %s198
      %p205 = scmp.eq.s32.totalorder %s46, 1
      %p206 = por %p204, %p205
      %p207 = scmp.ne.s32.totalorder %s198, %s199
      %p208 = scmp.eq.s32.totalorder %s46, 0
      %p209 = por %p207, %p208
      %p210 = scmp.ne.s32.totalorder %s198, %s199
      %p211 = scmp.eq.s32.totalorder %s47, 1
      %p212 = por %p210, %p211
      %p214 = scmp.ne.s32.totalorder %s199, %s213
      %p215 = scmp.eq.s32.totalorder %s47, 0
      %p216 = por %p214, %p215
      %s218 = sadd.s32 %s217, 1
      %p221 = scmp.eq.s32.totalorder %s41, 1
      %p222 = scmp.ne.s32.totalorder %s217, %s219
      %p223 = scmp.eq.s32.totalorder %s41, 0
      %p224 = por %p222, %p223
      %p225 = scmp.ne.s32.totalorder %s217, %s219
      %p226 = scmp.eq.s32.totalorder %s46, 1
      %p227 = por %p225, %p226
      %p228 = scmp.ne.s32.totalorder %s219, %s220
      %p229 = scmp.eq.s32.totalorder %s46, 0
      %p230 = por %p228, %p229
      %p231 = scmp.ne.s32.totalorder %s219, %s220
      %p232 = scmp.eq.s32.totalorder %s47, 1
      %p233 = por %p231, %p232
      %p235 = scmp.ne.s32.totalorder %s220, %s234
      %p236 = scmp.eq.s32.totalorder %s47, 0
      %p237 = por %p235, %p236
      %s239 = sadd.s32 %s238, 1
      %p242 = scmp.eq.s32.totalorder %s41, 1
      %p243 = scmp.ne.s32.totalorder %s238, %s240
      %p244 = scmp.eq.s32.totalorder %s41, 0
      %p245 = por %p243, %p244
      %p246 = scmp.ne.s32.totalorder %s238, %s240
      %p247 = scmp.eq.s32.totalorder %s46, 1
      %p248 = por %p246, %p247
      %p249 = scmp.ne.s32.totalorder %s240, %s241
      %p250 = scmp.eq.s32.totalorder %s46, 0
      %p251 = por %p249, %p250
      %p252 = scmp.ne.s32.totalorder %s240, %s241
      %p253 = scmp.eq.s32.totalorder %s47, 1
      %p254 = por %p252, %p253
      %p256 = scmp.ne.s32.totalorder %s241, %s255
      %p257 = scmp.eq.s32.totalorder %s47, 0
      %p258 = por %p256, %p257
      %s260 = sadd.s32 %s259, 1
      %p263 = scmp.eq.s32.totalorder %s41, 1
      %p264 = scmp.ne.s32.totalorder %s259, %s261
      %p265 = scmp.eq.s32.totalorder %s41, 0
      %p266 = por %p264, %p265
      %p267 = scmp.ne.s32.totalorder %s259, %s261
      %p268 = scmp.eq.s32.totalorder %s46, 1
      %p269 = por %p267, %p268
      %p270 = scmp.ne.s32.totalorder %s261, %s262
      %p271 = scmp.eq.s32.totalorder %s46, 0
      %p272 = por %p270, %p271
      %p273 = scmp.ne.s32.totalorder %s261, %s262
      %p274 = scmp.eq.s32.totalorder %s47, 1
      %p275 = por %p273, %p274
      %p277 = scmp.ne.s32.totalorder %s262, %s276
      %p278 = scmp.eq.s32.totalorder %s47, 0
      %p279 = por %p277, %p278
      %s281 = sadd.s32 %s280, 1
      %p284 = scmp.eq.s32.totalorder %s41, 1
      %p285 = scmp.ne.s32.totalorder %s280, %s282
      %p286 = scmp.eq.s32.totalorder %s41, 0
      %p287 = por %p285, %p286
      %p288 = scmp.ne.s32.totalorder %s280, %s282
      %p289 = scmp.eq.s32.totalorder %s46, 1
      %p290 = por %p288, %p289
      %p291 = scmp.ne.s32.totalorder %s282, %s283
      %p292 = scmp.eq.s32.totalorder %s46, 0
      %p293 = por %p291, %p292
      %p294 = scmp.ne.s32.totalorder %s282, %s283
      %p295 = scmp.eq.s32.totalorder %s47, 1
      %p296 = por %p294, %p295
      %p298 = scmp.ne.s32.totalorder %s283, %s297
      %p299 = scmp.eq.s32.totalorder %s47, 0
      %p300 = por %p298, %p299
      %s301 = ssub.s32 %s41, %s48
      %p302 = scmp.eq.s32.totalorder %s301, 0
      %s304 = sadd.s32 %s303, 1
      %s305 = scalar_select %p302, %s303, %s304
      %p308 = pneg %p302
      %p309 = scmp.eq.s32.totalorder %s41, 1
      %p310 = por %p308, %p309
      %p311 = scmp.ne.s32.totalorder %s303, %s306
      %p312 = scmp.eq.s32.totalorder %s41, 0
      %p313 = por %p311, %p312
      %p314 = scmp.ne.s32.totalorder %s303, %s306
      %p315 = scmp.eq.s32.totalorder %s46, 1
      %p316 = por %p314, %p315
      %p317 = scmp.ne.s32.totalorder %s306, %s307
      %p318 = scmp.eq.s32.totalorder %s46, 0
      %p319 = por %p317, %p318
      %p320 = scmp.ne.s32.totalorder %s306, %s307
      %p321 = scmp.eq.s32.totalorder %s47, 1
      %p322 = por %p320, %p321
      %p324 = scmp.ne.s32.totalorder %s307, %s323
      %p325 = scmp.eq.s32.totalorder %s47, 0
      %p326 = por %p324, %p325
      %s327 = ssub.s32 %s41, %s48
      %p328 = scmp.eq.s32.totalorder %s327, 0
      %s330 = sadd.s32 %s329, 1
      %s331 = scalar_select %p328, %s329, %s330
      %p334 = pneg %p328
      %p335 = scmp.eq.s32.totalorder %s41, 1
      %p336 = por %p334, %p335
      %p337 = scmp.ne.s32.totalorder %s329, %s332
      %p338 = scmp.eq.s32.totalorder %s41, 0
      %p339 = por %p337, %p338
      %p340 = scmp.ne.s32.totalorder %s329, %s332
      %p341 = scmp.eq.s32.totalorder %s46, 1
      %p342 = por %p340, %p341
      %p343 = scmp.ne.s32.totalorder %s332, %s333
      %p344 = scmp.eq.s32.totalorder %s46, 0
      %p345 = por %p343, %p344
      %p346 = scmp.ne.s32.totalorder %s332, %s333
      %p347 = scmp.eq.s32.totalorder %s47, 1
      %p348 = por %p346, %p347
      %p350 = scmp.ne.s32.totalorder %s333, %s349
      %p351 = scmp.eq.s32.totalorder %s47, 0
      %p352 = por %p350, %p351
      %s353 = ssub.s32 %s41, %s48
      %p354 = scmp.eq.s32.totalorder %s353, 0
      %s356 = sadd.s32 %s355, 1
      %s357 = scalar_select %p354, %s355, %s356
      %p360 = pneg %p354
      %p361 = scmp.eq.s32.totalorder %s41, 1
      %p362 = por %p360, %p361
      %p363 = scmp.ne.s32.totalorder %s355, %s358
      %p364 = scmp.eq.s32.totalorder %s41, 0
      %p365 = por %p363, %p364
      %p366 = scmp.ne.s32.totalorder %s355, %s358
      %p367 = scmp.eq.s32.totalorder %s46, 1
      %p368 = por %p366, %p367
      %p369 = scmp.ne.s32.totalorder %s358, %s359
      %p370 = scmp.eq.s32.totalorder %s46, 0
      %p371 = por %p369, %p370
      %p372 = scmp.ne.s32.totalorder %s358, %s359
      %p373 = scmp.eq.s32.totalorder %s47, 1
      %p374 = por %p372, %p373
      %p376 = scmp.ne.s32.totalorder %s359, %s375
      %p377 = scmp.eq.s32.totalorder %s47, 0
      %p378 = por %p376, %p377
      %s379 = ssub.s32 %s41, %s48
      %p380 = scmp.eq.s32.totalorder %s379, 0
      %s382 = sadd.s32 %s381, 1
      %s383 = scalar_select %p380, %s381, %s382
      %p386 = pneg %p380
      %p387 = scmp.eq.s32.totalorder %s41, 1
      %p388 = por %p386, %p387
      %p389 = scmp.ne.s32.totalorder %s381, %s384
      %p390 = scmp.eq.s32.totalorder %s41, 0
      %p391 = por %p389, %p390
      %p392 = scmp.ne.s32.totalorder %s381, %s384
      %p393 = scmp.eq.s32.totalorder %s46, 1
      %p394 = por %p392, %p393
      %p395 = scmp.ne.s32.totalorder %s384, %s385
      %p396 = scmp.eq.s32.totalorder %s46, 0
      %p397 = por %p395, %p396
      %p398 = scmp.ne.s32.totalorder %s384, %s385
      %p399 = scmp.eq.s32.totalorder %s47, 1
      %p400 = por %p398, %p399
      %p402 = scmp.ne.s32.totalorder %s385, %s401
      %p403 = scmp.eq.s32.totalorder %s47, 0
      %p404 = por %p402, %p403
      %s405 = ssub.s32 %s41, %s48
      %p406 = scmp.eq.s32.totalorder %s405, 0
      %s408 = sadd.s32 %s407, 1
      %s409 = scalar_select %p406, %s407, %s408
      %p412 = pneg %p406
      %p413 = scmp.eq.s32.totalorder %s41, 1
      %p414 = por %p412, %p413
      %p415 = scmp.ne.s32.totalorder %s407, %s410
      %p416 = scmp.eq.s32.totalorder %s41, 0
      %p417 = por %p415, %p416
      %p418 = scmp.ne.s32.totalorder %s407, %s410
      %p419 = scmp.eq.s32.totalorder %s46, 1
      %p420 = por %p418, %p419
      %p421 = scmp.ne.s32.totalorder %s410, %s411
      %p422 = scmp.eq.s32.totalorder %s46, 0
      %p423 = por %p421, %p422
      %p424 = scmp.ne.s32.totalorder %s410, %s411
      %p425 = scmp.eq.s32.totalorder %s47, 1
      %p426 = por %p424, %p425
      %p428 = scmp.ne.s32.totalorder %s411, %s427
      %p429 = scmp.eq.s32.totalorder %s47, 0
      %p430 = por %p428, %p429
      %s431 = ssub.s32 %s41, %s48
      %p432 = scmp.eq.s32.totalorder %s431, 0
      %s434 = sadd.s32 %s433, 1
      %s435 = scalar_select %p432, %s433, %s434
      %p438 = pneg %p432
      %p439 = scmp.eq.s32.totalorder %s41, 1
      %p440 = por %p438, %p439
      %p441 = scmp.ne.s32.totalorder %s433, %s436
      %p442 = scmp.eq.s32.totalorder %s41, 0
      %p443 = por %p441, %p442
      %p444 = scmp.ne.s32.totalorder %s433, %s436
      %p445 = scmp.eq.s32.totalorder %s46, 1
      %p446 = por %p444, %p445
      %p447 = scmp.ne.s32.totalorder %s436, %s437
      %p448 = scmp.eq.s32.totalorder %s46, 0
      %p449 = por %p447, %p448
      %p450 = scmp.ne.s32.totalorder %s436, %s437
      %p451 = scmp.eq.s32.totalorder %s47, 1
      %p452 = por %p450, %p451
      %p454 = scmp.ne.s32.totalorder %s437, %s453
      %p455 = scmp.eq.s32.totalorder %s47, 0
      %p456 = por %p454, %p455
      %s457 = ssub.s32 %s41, %s48
      %p458 = scmp.eq.s32.totalorder %s457, 0
      %s460 = sadd.s32 %s459, 1
      %s461 = scalar_select %p458, %s459, %s460
      %p464 = pneg %p458
      %p465 = scmp.eq.s32.totalorder %s41, 1
      %p466 = por %p464, %p465
      %p467 = scmp.ne.s32.totalorder %s459, %s462
      %p468 = scmp.eq.s32.totalorder %s41, 0
      %p469 = por %p467, %p468
      %p470 = scmp.ne.s32.totalorder %s459, %s462
      %p471 = scmp.eq.s32.totalorder %s46, 1
      %p472 = por %p470, %p471
      %p473 = scmp.ne.s32.totalorder %s462, %s463
      %p474 = scmp.eq.s32.totalorder %s46, 0
      %p475 = por %p473, %p474
      %p476 = scmp.ne.s32.totalorder %s462, %s463
      %p477 = scmp.eq.s32.totalorder %s47, 1
      %p478 = por %p476, %p477
      %p480 = scmp.ne.s32.totalorder %s463, %s479
      %p481 = scmp.eq.s32.totalorder %s47, 0
      %p482 = por %p480, %p481
      %s483 = ssub.s32 %s41, %s48
      %p484 = scmp.eq.s32.totalorder %s483, 0
      %s486 = sadd.s32 %s485, 1
      %s487 = scalar_select %p484, %s485, %s486
      %p490 = pneg %p484
      %p491 = scmp.eq.s32.totalorder %s41, 1
      %p492 = por %p490, %p491
      %p493 = scmp.ne.s32.totalorder %s485, %s488
      %p494 = scmp.eq.s32.totalorder %s41, 0
      %p495 = por %p493, %p494
      %p496 = scmp.ne.s32.totalorder %s485, %s488
      %p497 = scmp.eq.s32.totalorder %s46, 1
      %p498 = por %p496, %p497
      %p499 = scmp.ne.s32.totalorder %s488, %s489
      %p500 = scmp.eq.s32.totalorder %s46, 0
      %p501 = por %p499, %p500
      %p502 = scmp.ne.s32.totalorder %s488, %s489
      %p503 = scmp.eq.s32.totalorder %s47, 1
      %p504 = por %p502, %p503
      %p506 = scmp.ne.s32.totalorder %s489, %s505
      %p507 = scmp.eq.s32.totalorder %s47, 0
      %p508 = por %p506, %p507
      %s509 = ssub.s32 %s41, %s48
      %p510 = scmp.eq.s32.totalorder %s509, 0
      %s512 = sadd.s32 %s511, 1
      %s513 = scalar_select %p510, %s511, %s512
      %p516 = pneg %p510
      %p517 = scmp.eq.s32.totalorder %s41, 1
      %p518 = por %p516, %p517
      %p519 = scmp.ne.s32.totalorder %s511, %s514
      %p520 = scmp.eq.s32.totalorder %s41, 0
      %p521 = por %p519, %p520
      %p522 = scmp.ne.s32.totalorder %s511, %s514
      %p523 = scmp.eq.s32.totalorder %s46, 1
      %p524 = por %p522, %p523
      %p525 = scmp.ne.s32.totalorder %s514, %s515
      %p526 = scmp.eq.s32.totalorder %s46, 0
      %p527 = por %p525, %p526
      %p528 = scmp.ne.s32.totalorder %s514, %s515
      %p529 = scmp.eq.s32.totalorder %s47, 1
      %p530 = por %p528, %p529
      %p532 = scmp.ne.s32.totalorder %s515, %s531
      %p533 = scmp.eq.s32.totalorder %s47, 0
      %p534 = por %p532, %p533
      %s535 = ssub.s32 %s41, %s48
      %p536 = scmp.eq.s32.totalorder %s535, 0
      %s538 = sadd.s32 %s537, 1
      %s539 = scalar_select %p536, %s537, %s538
      %p542 = pneg %p536
      %p543 = scmp.eq.s32.totalorder %s41, 1
      %p544 = por %p542, %p543
      %p545 = scmp.ne.s32.totalorder %s537, %s540
      %p546 = scmp.eq.s32.totalorder %s41, 0
      %p547 = por %p545, %p546
      %p548 = scmp.ne.s32.totalorder %s537, %s540
      %p549 = scmp.eq.s32.totalorder %s46, 1
      %p550 = por %p548, %p549
      %p551 = scmp.ne.s32.totalorder %s540, %s541
      %p552 = scmp.eq.s32.totalorder %s46, 0
      %p553 = por %p551, %p552
      %p554 = scmp.ne.s32.totalorder %s540, %s541
      %p555 = scmp.eq.s32.totalorder %s47, 1
      %p556 = por %p554, %p555
      %p558 = scmp.ne.s32.totalorder %s541, %s557
      %p559 = scmp.eq.s32.totalorder %s47, 0
      %p560 = por %p558, %p559
      %s561 = ssub.s32 %s41, %s48
      %p562 = scmp.eq.s32.totalorder %s561, 0
      %s564 = sadd.s32 %s563, 1
      %s565 = scalar_select %p562, %s563, %s564
      %p568 = pneg %p562
      %p569 = scmp.eq.s32.totalorder %s41, 1
      %p570 = por %p568, %p569
      %p571 = scmp.ne.s32.totalorder %s563, %s566
      %p572 = scmp.eq.s32.totalorder %s41, 0
      %p573 = por %p571, %p572
      %p574 = scmp.ne.s32.totalorder %s563, %s566
      %p575 = scmp.eq.s32.totalorder %s46, 1
      %p576 = por %p574, %p575
      %p577 = scmp.ne.s32.totalorder %s566, %s567
      %p578 = scmp.eq.s32.totalorder %s46, 0
      %p579 = por %p577, %p578
      %p580 = scmp.ne.s32.totalorder %s566, %s567
      %p581 = scmp.eq.s32.totalorder %s47, 1
      %p582 = por %p580, %p581
      %p584 = scmp.ne.s32.totalorder %s567, %s583
      %p585 = scmp.eq.s32.totalorder %s47, 0
      %p586 = por %p584, %p585
      %s587 = ssub.s32 %s41, %s48
      %p588 = scmp.eq.s32.totalorder %s587, 0
      %s590 = sadd.s32 %s589, 1
      %s591 = scalar_select %p588, %s589, %s590
      %p594 = pneg %p588
      %p595 = scmp.eq.s32.totalorder %s41, 1
      %p596 = por %p594, %p595
      %p597 = scmp.ne.s32.totalorder %s589, %s592
      %p598 = scmp.eq.s32.totalorder %s41, 0
      %p599 = por %p597, %p598
      %p600 = scmp.ne.s32.totalorder %s589, %s592
      %p601 = scmp.eq.s32.totalorder %s46, 1
      %p602 = por %p600, %p601
      %p603 = scmp.ne.s32.totalorder %s592, %s593
      %p604 = scmp.eq.s32.totalorder %s46, 0
      %p605 = por %p603, %p604
      %p606 = scmp.ne.s32.totalorder %s592, %s593
      %p607 = scmp.eq.s32.totalorder %s47, 1
      %p608 = por %p606, %p607
      %p610 = scmp.ne.s32.totalorder %s593, %s609
      %p611 = scmp.eq.s32.totalorder %s47, 0
      %p612 = por %p610, %p611
      %s614 = sadd.s32 %s613, 1
      %p617 = scmp.eq.s32.totalorder %s41, 1
      %p618 = scmp.ne.s32.totalorder %s613, %s615
      %p619 = scmp.eq.s32.totalorder %s41, 0
      %p620 = por %p618, %p619
      %p621 = scmp.ne.s32.totalorder %s613, %s615
      %p622 = scmp.eq.s32.totalorder %s46, 1
      %p623 = por %p621, %p622
      %p624 = scmp.ne.s32.totalorder %s615, %s616
      %p625 = scmp.eq.s32.totalorder %s46, 0
      %p626 = por %p624, %p625
      %p627 = scmp.ne.s32.totalorder %s615, %s616
      %p628 = scmp.eq.s32.totalorder %s47, 1
      %p629 = por %p627, %p628
      %p631 = scmp.ne.s32.totalorder %s616, %s630
      %p632 = scmp.eq.s32.totalorder %s47, 0
      %p633 = por %p631, %p632
      %s635 = sadd.s32 %s634, 1
      %p638 = scmp.eq.s32.totalorder %s41, 1
      %p639 = scmp.ne.s32.totalorder %s634, %s636
      %p640 = scmp.eq.s32.totalorder %s41, 0
      %p641 = por %p639, %p640
      %p642 = scmp.ne.s32.totalorder %s634, %s636
      %p643 = scmp.eq.s32.totalorder %s46, 1
      %p644 = por %p642, %p643
      %p645 = scmp.ne.s32.totalorder %s636, %s637
      %p646 = scmp.eq.s32.totalorder %s46, 0
      %p647 = por %p645, %p646
      %p648 = scmp.ne.s32.totalorder %s636, %s637
      %p649 = scmp.eq.s32.totalorder %s47, 1
      %p650 = por %p648, %p649
      %p652 = scmp.ne.s32.totalorder %s637, %s651
      %p653 = scmp.eq.s32.totalorder %s47, 0
      %p654 = por %p652, %p653
      %s656 = sadd.s32 %s655, 1
      %p659 = scmp.eq.s32.totalorder %s41, 1
      %p660 = scmp.ne.s32.totalorder %s655, %s657
      %p661 = scmp.eq.s32.totalorder %s41, 0
      %p662 = por %p660, %p661
      %p663 = scmp.ne.s32.totalorder %s655, %s657
      %p664 = scmp.eq.s32.totalorder %s46, 1
      %p665 = por %p663, %p664
      %p666 = scmp.ne.s32.totalorder %s657, %s658
      %p667 = scmp.eq.s32.totalorder %s46, 0
      %p668 = por %p666, %p667
      %p669 = scmp.ne.s32.totalorder %s657, %s658
      %p670 = scmp.eq.s32.totalorder %s47, 1
      %p671 = por %p669, %p670
      %p673 = scmp.ne.s32.totalorder %s658, %s672
      %p674 = scmp.eq.s32.totalorder %s47, 0
      %p675 = por %p673, %p674
      %p676 = scmp.le.s32.totalorder 1, %s41
      %p677 = scmp.lt.s32.totalorder %s41, 3
      %p678 = pnand %p676, %p677
      %p679 = pneg %p678
      // Predicated region
      $region9: #{tpu_custom_call.1} parent=5 // pred_check
        _
      $region10: #{tpu_custom_call.1} parent=5 // pred_check_branch
        %681 = sbr.rel (%p678) target = $region12
      $region11: #{tpu_custom_call.1} parent=5 // pred_region
        %s682 = ssub.s32 %s41, 1
        // Predicated region
        $region13: #{tpu_custom_call.1} parent=11 // pred_check
          %p683 = pneg %p62
        $region14: #{tpu_custom_call.1} parent=11 // pred_check_branch
          %685 = sbr.rel (%p683) target = $region16
        $region15: #{tpu_custom_call.1} parent=11 // pred_region
          %687 = vsyncadd [#allocation5], 0
          %s688 = sshll.u32 %s0, 4
          %s689 = int_to_ptr.hbm [resolvable:$true] %s688
          %s690 = sshll.u32 [#allocation4], 4
          %s691 = int_to_ptr.vmem [resolvable:$true] %s690
          %696 = dma.hbm_to_vmem [thread:$0]  %s689, 256, %s691, [#allocation5], 128, 128, 8
        $region16: #{tpu_custom_call.1} parent=11 // pred_fallthru
          _
        // Predicated region
        $region17: #{tpu_custom_call.1} parent=11 // pred_check
          %p697 = pneg %p83
        $region18: #{tpu_custom_call.1} parent=11 // pred_check_branch
          %699 = sbr.rel (%p697) target = $region20
        $region19: #{tpu_custom_call.1} parent=11 // pred_region
          _
        $region20: #{tpu_custom_call.1} parent=11 // pred_fallthru
          _
        // Predicated region
        $region21: #{tpu_custom_call.1} parent=11 // pred_check
          %p700 = pneg %p104
        $region22: #{tpu_custom_call.1} parent=11 // pred_check_branch
          %702 = sbr.rel (%p700) target = $region24
        $region23: #{tpu_custom_call.1} parent=11 // pred_region
          _
        $region24: #{tpu_custom_call.1} parent=11 // pred_fallthru
          _
        // Predicated region
        $region25: #{tpu_custom_call.1} parent=11 // pred_check
          %p703 = pneg %p125
        $region26: #{tpu_custom_call.1} parent=11 // pred_check_branch
          %705 = sbr.rel (%p703) target = $region28
        $region27: #{tpu_custom_call.1} parent=11 // pred_region
          _
        $region28: #{tpu_custom_call.1} parent=11 // pred_fallthru
          _
        // Predicated region
        $region29: #{tpu_custom_call.1} parent=11 // pred_check
          %p706 = pneg %p146
        $region30: #{tpu_custom_call.1} parent=11 // pred_check_branch
          %708 = sbr.rel (%p706) target = $region32
        $region31: #{tpu_custom_call.1} parent=11 // pred_region
          %710 = vsyncadd [#allocation8], 0
          %s712 = sshll.u32 %s4, 4
          %s713 = int_to_ptr.hbm [resolvable:$true] %s712
          %s714 = sshll.u32 [#allocation7], 4
          %s715 = int_to_ptr.vmem [resolvable:$true] %s714
          %717 = dma.hbm_to_vmem [thread:$0]  %s713, 16, %s715, [#allocation8]
        $region32: #{tpu_custom_call.1} parent=11 // pred_fallthru
          _
        // Predicated region
        $region33: #{tpu_custom_call.1} parent=11 // pred_check
          %p718 = pneg %p167
        $region34: #{tpu_custom_call.1} parent=11 // pred_check_branch
          %720 = sbr.rel (%p718) target = $region36
        $region35: #{tpu_custom_call.1} parent=11 // pred_region
          %722 = vsyncadd [#allocation8], 0
          %s723 = sshll.u32 %s5, 4
          %s724 = int_to_ptr.hbm [resolvable:$true] %s723
          %s725 = sshll.u32 [#allocation9], 4
          %s726 = int_to_ptr.vmem [resolvable:$true] %s725
          %731 = dma.hbm_to_vmem [thread:$0]  %s724, 256, %s726, [#allocation8], 128, 128, 8
        $region36: #{tpu_custom_call.1} parent=11 // pred_fallthru
          _
        // Predicated region
        $region37: #{tpu_custom_call.1} parent=11 // pred_check
          %p732 = pneg %p188
        $region38: #{tpu_custom_call.1} parent=11 // pred_check_branch
          %734 = sbr.rel (%p732) target = $region40
        $region39: #{tpu_custom_call.1} parent=11 // pred_region
          %736 = vsyncadd [#allocation11], 0
          %s738 = sshll.u32 %s6, 4
          %s739 = int_to_ptr.hbm [resolvable:$true] %s738
          %s740 = sshll.u32 [#allocation10], 4
          %s741 = int_to_ptr.vmem [resolvable:$true] %s740
          %743 = dma.hbm_to_vmem [thread:$0]  %s739, 16, %s741, [#allocation11]
        $region40: #{tpu_custom_call.1} parent=11 // pred_fallthru
          _
        // Predicated region
        $region41: #{tpu_custom_call.1} parent=11 // pred_check
          %p744 = pneg %p209
        $region42: #{tpu_custom_call.1} parent=11 // pred_check_branch
          %746 = sbr.rel (%p744) target = $region44
        $region43: #{tpu_custom_call.1} parent=11 // pred_region
          _
        $region44: #{tpu_custom_call.1} parent=11 // pred_fallthru
          _
        // Predicated region
        $region45: #{tpu_custom_call.1} parent=11 // pred_check
          %p747 = pneg %p230
        $region46: #{tpu_custom_call.1} parent=11 // pred_check_branch
          %749 = sbr.rel (%p747) target = $region48
        $region47: #{tpu_custom_call.1} parent=11 // pred_region
          _
        $region48: #{tpu_custom_call.1} parent=11 // pred_fallthru
          _
        // Predicated region
        $region49: #{tpu_custom_call.1} parent=11 // pred_check
          %p750 = pneg %p251
        $region50: #{tpu_custom_call.1} parent=11 // pred_check_branch
          %752 = sbr.rel (%p750) target = $region52
        $region51: #{tpu_custom_call.1} parent=11 // pred_region
          %754 = vsyncadd [#allocation11], 0
          %s756 = sshll.u32 %s9, 4
          %s757 = int_to_ptr.hbm [resolvable:$true] %s756
          %s758 = sshll.u32 [#allocation12], 4
          %s759 = int_to_ptr.vmem [resolvable:$true] %s758
          %761 = dma.hbm_to_vmem [thread:$0]  %s757, 16, %s759, [#allocation11]
        $region52: #{tpu_custom_call.1} parent=11 // pred_fallthru
          _
        // Predicated region
        $region53: #{tpu_custom_call.1} parent=11 // pred_check
          %p762 = pneg %p272
        $region54: #{tpu_custom_call.1} parent=11 // pred_check_branch
          %764 = sbr.rel (%p762) target = $region56
        $region55: #{tpu_custom_call.1} parent=11 // pred_region
          %766 = vsyncadd [#allocation14], 0
          %s768 = sshll.u32 %s10, 4
          %s769 = int_to_ptr.hbm [resolvable:$true] %s768
          %s770 = sshll.u32 [#allocation13], 4
          %s771 = int_to_ptr.vmem [resolvable:$true] %s770
          %773 = dma.hbm_to_vmem [thread:$0]  %s769, 16, %s771, [#allocation14]
        $region56: #{tpu_custom_call.1} parent=11 // pred_fallthru
          _
        // Predicated region
        $region57: #{tpu_custom_call.1} parent=11 // pred_check
          %p774 = pneg %p293
        $region58: #{tpu_custom_call.1} parent=11 // pred_check_branch
          %776 = sbr.rel (%p774) target = $region60
        $region59: #{tpu_custom_call.1} parent=11 // pred_region
          %778 = vsyncadd [#allocation14], 0
          %s780 = sshll.u32 %s11, 4
          %s781 = int_to_ptr.hbm [resolvable:$true] %s780
          %s782 = sshll.u32 [#allocation15], 4
          %s783 = int_to_ptr.vmem [resolvable:$true] %s782
          %785 = dma.hbm_to_vmem [thread:$0]  %s781, 16, %s783, [#allocation14]
        $region60: #{tpu_custom_call.1} parent=11 // pred_fallthru
          _
        // Predicated region
        $region61: #{tpu_custom_call.1} parent=11 // pred_check
          %p786 = pneg %p626
        $region62: #{tpu_custom_call.1} parent=11 // pred_check_branch
          %788 = sbr.rel (%p786) target = $region64
        $region63: #{tpu_custom_call.1} parent=11 // pred_region
          %790 = vsyncadd [#allocation20], 0
          %s791 = sshll.u32 %s24, 4
          %s792 = int_to_ptr.hbm [resolvable:$true] %s791
          %s793 = sshll.u32 [#allocation19], 4
          %s794 = int_to_ptr.vmem [resolvable:$true] %s793
          %799 = dma.hbm_to_vmem [thread:$0]  %s792, 1024, %s794, [#allocation20], 256, 256, 16
        $region64: #{tpu_custom_call.1} parent=11 // pred_fallthru
          _
        // Predicated region
        $region65: #{tpu_custom_call.1} parent=11 // pred_check
          %p800 = pneg %p647
        $region66: #{tpu_custom_call.1} parent=11 // pred_check_branch
          %802 = sbr.rel (%p800) target = $region68
        $region67: #{tpu_custom_call.1} parent=11 // pred_region
          _
        $region68: #{tpu_custom_call.1} parent=11 // pred_fallthru
          _
      $region12: #{tpu_custom_call.1} parent=5 // pred_fallthru
        _
      %p803 = scmp.lt.s32.totalorder %s41, 2
      // Predicated region
      $region69: #{tpu_custom_call.1} parent=5 // pred_check
        %p804 = pneg %p803
      $region70: #{tpu_custom_call.1} parent=5 // pred_check_branch
        %806 = sbr.rel (%p804) target = $region72
      $region71: #{tpu_custom_call.1} parent=5 // pred_region
        // Predicated region
        $region73: #{tpu_custom_call.1} parent=71 // pred_check
          %p807 = pneg %p313
        $region74: #{tpu_custom_call.1} parent=71 // pred_check_branch
          %809 = sbr.rel (%p807) target = $region76
        $region75: #{tpu_custom_call.1} parent=71 // pred_region
          %p810 = scmp.lt.s32.totalorder %s41, 1
          %s811 = scalar_select %p810, %s41, 1
          %s812 = smul.addr %s811, 4
          %s813 = smul.addr %s812, 8
          %s814 = scalar_lea.vmem %s12, %s813
        $region76: #{tpu_custom_call.1} parent=71 // pred_fallthru
          _
        // Predicated region
        $region77: #{tpu_custom_call.1} parent=71 // pred_check
          %p815 = pneg %p339
        $region78: #{tpu_custom_call.1} parent=71 // pred_check_branch
          %817 = sbr.rel (%p815) target = $region80
        $region79: #{tpu_custom_call.1} parent=71 // pred_region
          %p818 = scmp.lt.s32.totalorder %s41, 1
          %s819 = scalar_select %p818, %s41, 1
          %s820 = scalar_lea.vmem %s13, %s819
        $region80: #{tpu_custom_call.1} parent=71 // pred_fallthru
          _
        // Predicated region
        $region81: #{tpu_custom_call.1} parent=71 // pred_check
          %p821 = pneg %p365
        $region82: #{tpu_custom_call.1} parent=71 // pred_check_branch
          %823 = sbr.rel (%p821) target = $region84
        $region83: #{tpu_custom_call.1} parent=71 // pred_region
          %p824 = scmp.lt.s32.totalorder %s41, 1
          %s825 = scalar_select %p824, %s41, 1
          %s826 = smul.addr %s825, 4
          %s827 = smul.addr %s826, 8
          %s828 = scalar_lea.vmem %s14, %s827
        $region84: #{tpu_custom_call.1} parent=71 // pred_fallthru
          _
        // Predicated region
        $region85: #{tpu_custom_call.1} parent=71 // pred_check
          %p829 = pneg %p391
        $region86: #{tpu_custom_call.1} parent=71 // pred_check_branch
          %831 = sbr.rel (%p829) target = $region88
        $region87: #{tpu_custom_call.1} parent=71 // pred_region
          %p832 = scmp.lt.s32.totalorder %s41, 1
          %s833 = scalar_select %p832, %s41, 1
          %s834 = scalar_lea.vmem %s15, %s833
        $region88: #{tpu_custom_call.1} parent=71 // pred_fallthru
          _
        // Predicated region
        $region89: #{tpu_custom_call.1} parent=71 // pred_check
          %p835 = pneg %p417
        $region90: #{tpu_custom_call.1} parent=71 // pred_check_branch
          %837 = sbr.rel (%p835) target = $region92
        $region91: #{tpu_custom_call.1} parent=71 // pred_region
          %p838 = scmp.lt.s32.totalorder %s41, 1
          %s839 = scalar_select %p838, %s41, 1
          %s840 = scalar_lea.vmem %s16, %s839
        $region92: #{tpu_custom_call.1} parent=71 // pred_fallthru
          _
        // Predicated region
        $region93: #{tpu_custom_call.1} parent=71 // pred_check
          %p841 = pneg %p443
        $region94: #{tpu_custom_call.1} parent=71 // pred_check_branch
          %843 = sbr.rel (%p841) target = $region96
        $region95: #{tpu_custom_call.1} parent=71 // pred_region
          %p844 = scmp.lt.s32.totalorder %s41, 1
          %s845 = scalar_select %p844, %s41, 1
          %s846 = scalar_lea.vmem %s17, %s845
        $region96: #{tpu_custom_call.1} parent=71 // pred_fallthru
          _
        // Predicated region
        $region97: #{tpu_custom_call.1} parent=71 // pred_check
          %p847 = pneg %p469
        $region98: #{tpu_custom_call.1} parent=71 // pred_check_branch
          %849 = sbr.rel (%p847) target = $region100
        $region99: #{tpu_custom_call.1} parent=71 // pred_region
          %s850 = sand.u32 %s41, 1
          %s851 = scalar_lea.sflag [#allocation17], %s850
          %s852 = sand.u32 %s459, 1
          %s853 = smul.addr %s852, 32
          %s854 = scalar_lea.vmem [#allocation16], %s853
          %856 = vsyncadd %s851, 0
          %s857 = smul.addr %s41, 4
          %s858 = smul.addr %s857, 8
          %s859 = scalar_lea.hbm %s18, %s858
          %s860 = sshll.u32 %s859, 4
          %s861 = int_to_ptr.hbm [resolvable:$true] %s860
          %s862 = sshll.u32 %s854, 4
          %s863 = int_to_ptr.vmem [resolvable:$true] %s862
          %868 = dma.hbm_to_vmem [thread:$0]  %s861, 512, %s863, %s851, 128, 128, 8
        $region100: #{tpu_custom_call.1} parent=71 // pred_fallthru
          _
        // Predicated region
        $region101: #{tpu_custom_call.1} parent=71 // pred_check
          %p869 = pneg %p495
        $region102: #{tpu_custom_call.1} parent=71 // pred_check_branch
          %871 = sbr.rel (%p869) target = $region104
        $region103: #{tpu_custom_call.1} parent=71 // pred_region
          %p872 = scmp.lt.s32.totalorder %s41, 1
          %s873 = scalar_select %p872, %s41, 1
          %s874 = scalar_lea.vmem %s19, %s873
        $region104: #{tpu_custom_call.1} parent=71 // pred_fallthru
          _
        // Predicated region
        $region105: #{tpu_custom_call.1} parent=71 // pred_check
          %p875 = pneg %p521
        $region106: #{tpu_custom_call.1} parent=71 // pred_check_branch
          %877 = sbr.rel (%p875) target = $region108
        $region107: #{tpu_custom_call.1} parent=71 // pred_region
          %s878 = sand.u32 %s41, 1
          %s879 = scalar_lea.sflag [#allocation17], %s878
          %s880 = sand.u32 %s511, 1
          %s881 = smul.addr %s880, 32
          %s882 = scalar_lea.vmem [#allocation18], %s881
          %884 = vsyncadd %s879, 0
          %s885 = smul.addr %s41, 4
          %s886 = smul.addr %s885, 8
          %s887 = scalar_lea.hbm %s20, %s886
          %s888 = sshll.u32 %s887, 4
          %s889 = int_to_ptr.hbm [resolvable:$true] %s888
          %s890 = sshll.u32 %s882, 4
          %s891 = int_to_ptr.vmem [resolvable:$true] %s890
          %896 = dma.hbm_to_vmem [thread:$0]  %s889, 512, %s891, %s879, 128, 128, 8
        $region108: #{tpu_custom_call.1} parent=71 // pred_fallthru
          _
        // Predicated region
        $region109: #{tpu_custom_call.1} parent=71 // pred_check
          %p897 = pneg %p547
        $region110: #{tpu_custom_call.1} parent=71 // pred_check_branch
          %899 = sbr.rel (%p897) target = $region112
        $region111: #{tpu_custom_call.1} parent=71 // pred_region
          %p900 = scmp.lt.s32.totalorder %s41, 1
          %s901 = scalar_select %p900, %s41, 1
          %s902 = scalar_lea.vmem %s21, %s901
        $region112: #{tpu_custom_call.1} parent=71 // pred_fallthru
          _
        // Predicated region
        $region113: #{tpu_custom_call.1} parent=71 // pred_check
          %p903 = pneg %p573
        $region114: #{tpu_custom_call.1} parent=71 // pred_check_branch
          %905 = sbr.rel (%p903) target = $region116
        $region115: #{tpu_custom_call.1} parent=71 // pred_region
          %p906 = scmp.lt.s32.totalorder %s41, 1
          %s907 = scalar_select %p906, %s41, 1
          %s908 = scalar_lea.vmem %s22, %s907
        $region116: #{tpu_custom_call.1} parent=71 // pred_fallthru
          _
        // Predicated region
        $region117: #{tpu_custom_call.1} parent=71 // pred_check
          %p909 = pneg %p599
        $region118: #{tpu_custom_call.1} parent=71 // pred_check_branch
          %911 = sbr.rel (%p909) target = $region120
        $region119: #{tpu_custom_call.1} parent=71 // pred_region
          %p912 = scmp.lt.s32.totalorder %s41, 1
          %s913 = scalar_select %p912, %s41, 1
          %s914 = scalar_lea.vmem %s23, %s913
        $region120: #{tpu_custom_call.1} parent=71 // pred_fallthru
          _
      $region72: #{tpu_custom_call.1} parent=5 // pred_fallthru
        _
      %p915 = scmp.le.s32.totalorder 1, %s41
      %p916 = scmp.lt.s32.totalorder %s41, 3
      %p917 = pnand %p915, %p916
      %p918 = pneg %p917
      // Predicated region
      $region121: #{tpu_custom_call.1} parent=5 // pred_check
        _
      $region122: #{tpu_custom_call.1} parent=5 // pred_check_branch
        %920 = sbr.rel (%p917) target = $region124
      $region123: #{tpu_custom_call.1} parent=5 // pred_region
        %s921 = ssub.s32 %s41, 1
        // Predicated region
        $region125: #{tpu_custom_call.1} parent=123 // pred_check
          %p922 = pneg %p62
        $region126: #{tpu_custom_call.1} parent=123 // pred_check_branch
          %924 = sbr.rel (%p922) target = $region128
        $region127: #{tpu_custom_call.1} parent=123 // pred_region
          %926 = dma.done [#allocation5], 256
        $region128: #{tpu_custom_call.1} parent=123 // pred_fallthru
          _
        // Predicated region
        $region129: #{tpu_custom_call.1} parent=123 // pred_check
          %p927 = pneg %p146
        $region130: #{tpu_custom_call.1} parent=123 // pred_check_branch
          %929 = sbr.rel (%p927) target = $region132
        $region131: #{tpu_custom_call.1} parent=123 // pred_region
          %931 = dma.done [#allocation8], 16
        $region132: #{tpu_custom_call.1} parent=123 // pred_fallthru
          _
        // Predicated region
        $region133: #{tpu_custom_call.1} parent=123 // pred_check
          %p932 = pneg %p167
        $region134: #{tpu_custom_call.1} parent=123 // pred_check_branch
          %934 = sbr.rel (%p932) target = $region136
        $region135: #{tpu_custom_call.1} parent=123 // pred_region
          %936 = dma.done [#allocation8], 256
        $region136: #{tpu_custom_call.1} parent=123 // pred_fallthru
          _
        // Predicated region
        $region137: #{tpu_custom_call.1} parent=123 // pred_check
          %p937 = pneg %p188
        $region138: #{tpu_custom_call.1} parent=123 // pred_check_branch
          %939 = sbr.rel (%p937) target = $region140
        $region139: #{tpu_custom_call.1} parent=123 // pred_region
          %941 = dma.done [#allocation11], 16
        $region140: #{tpu_custom_call.1} parent=123 // pred_fallthru
          _
        // Predicated region
        $region141: #{tpu_custom_call.1} parent=123 // pred_check
          %p942 = pneg %p251
        $region142: #{tpu_custom_call.1} parent=123 // pred_check_branch
          %944 = sbr.rel (%p942) target = $region144
        $region143: #{tpu_custom_call.1} parent=123 // pred_region
          %946 = dma.done [#allocation11], 16
        $region144: #{tpu_custom_call.1} parent=123 // pred_fallthru
          _
        // Predicated region
        $region145: #{tpu_custom_call.1} parent=123 // pred_check
          %p947 = pneg %p272
        $region146: #{tpu_custom_call.1} parent=123 // pred_check_branch
          %949 = sbr.rel (%p947) target = $region148
        $region147: #{tpu_custom_call.1} parent=123 // pred_region
          %951 = dma.done [#allocation14], 16
        $region148: #{tpu_custom_call.1} parent=123 // pred_fallthru
          _
        // Predicated region
        $region149: #{tpu_custom_call.1} parent=123 // pred_check
          %p952 = pneg %p293
        $region150: #{tpu_custom_call.1} parent=123 // pred_check_branch
          %954 = sbr.rel (%p952) target = $region152
        $region151: #{tpu_custom_call.1} parent=123 // pred_region
          %956 = dma.done [#allocation14], 16
        $region152: #{tpu_custom_call.1} parent=123 // pred_fallthru
          _
        %s957 = sand.u32 %s46, 1
        %s958 = scalar_lea.sflag [#allocation17], %s957
        %s959 = sand.u32 %s462, 1
        %s960 = smul.addr %s959, 32
        %s961 = scalar_lea.vmem [#allocation16], %s960
        // Predicated region
        $region153: #{tpu_custom_call.1} parent=123 // pred_check
          %p962 = pneg %p475
        $region154: #{tpu_custom_call.1} parent=123 // pred_check_branch
          %964 = sbr.rel (%p962) target = $region156
        $region155: #{tpu_custom_call.1} parent=123 // pred_region
          %966 = dma.done %s958, 512
        $region156: #{tpu_custom_call.1} parent=123 // pred_fallthru
          _
        %s967 = sand.u32 %s46, 1
        %s968 = scalar_lea.sflag [#allocation17], %s967
        %s969 = sand.u32 %s514, 1
        %s970 = smul.addr %s969, 32
        %s971 = scalar_lea.vmem [#allocation18], %s970
        // Predicated region
        $region157: #{tpu_custom_call.1} parent=123 // pred_check
          %p972 = pneg %p527
        $region158: #{tpu_custom_call.1} parent=123 // pred_check_branch
          %974 = sbr.rel (%p972) target = $region160
        $region159: #{tpu_custom_call.1} parent=123 // pred_region
          %976 = dma.done %s968, 512
        $region160: #{tpu_custom_call.1} parent=123 // pred_fallthru
          _
        // Predicated region
        $region161: #{tpu_custom_call.1} parent=123 // pred_check
          %p977 = pneg %p626
        $region162: #{tpu_custom_call.1} parent=123 // pred_check_branch
          %979 = sbr.rel (%p977) target = $region164
        $region163: #{tpu_custom_call.1} parent=123 // pred_region
          %981 = dma.done [#allocation20], 1024
        $region164: #{tpu_custom_call.1} parent=123 // pred_fallthru
          _
        %p982 = pneg %p62
        %p983 = pneg %p59
        %p984 = pneg %p83
        %p985 = pneg %p80
        %p986 = pneg %p104
        %p987 = pneg %p101
        %p988 = pneg %p125
        %p989 = pneg %p122
        %p990 = pneg %p146
        %p991 = pneg %p143
        %p992 = pneg %p167
        %p993 = pneg %p164
        %p994 = pneg %p188
        %p995 = pneg %p185
        %p996 = pneg %p209
        %p997 = pneg %p206
        %p998 = pneg %p230
        %p999 = pneg %p227
        %p1000 = pneg %p251
        %p1001 = pneg %p248
        %p1002 = pneg %p272
        %p1003 = pneg %p269
        %p1004 = pneg %p293
        %p1005 = pneg %p290
        %p1006 = scmp.lt.s32.totalorder %s46, 1
        %s1007 = scalar_select %p1006, %s46, 1
        %s1008 = smul.addr %s1007, 4
        %s1009 = smul.addr %s1008, 8
        %s1010 = scalar_lea.vmem %s12, %s1009
        %p1011 = pneg %p319
        %p1012 = pneg %p316
        %p1013 = scmp.lt.s32.totalorder %s46, 1
        %s1014 = scalar_select %p1013, %s46, 1
        %s1015 = scalar_lea.vmem %s13, %s1014
        %p1016 = pneg %p345
        %p1017 = pneg %p342
        %p1018 = scmp.lt.s32.totalorder %s46, 1
        %s1019 = scalar_select %p1018, %s46, 1
        %s1020 = smul.addr %s1019, 4
        %s1021 = smul.addr %s1020, 8
        %s1022 = scalar_lea.vmem %s14, %s1021
        %p1023 = pneg %p371
        %p1024 = pneg %p368
        %p1025 = scmp.lt.s32.totalorder %s46, 1
        %s1026 = scalar_select %p1025, %s46, 1
        %s1027 = scalar_lea.vmem %s15, %s1026
        %p1028 = pneg %p397
        %p1029 = pneg %p394
        %p1030 = scmp.lt.s32.totalorder %s46, 1
        %s1031 = scalar_select %p1030, %s46, 1
        %s1032 = scalar_lea.vmem %s16, %s1031
        %p1033 = pneg %p423
        %p1034 = pneg %p420
        %p1035 = scmp.lt.s32.totalorder %s46, 1
        %s1036 = scalar_select %p1035, %s46, 1
        %s1037 = scalar_lea.vmem %s17, %s1036
        %p1038 = pneg %p449
        %p1039 = pneg %p446
        %s1040 = sand.u32 %s46, 1
        %s1041 = scalar_lea.sflag [#allocation17], %s1040
        %s1042 = sand.u32 %s462, 1
        %s1043 = smul.addr %s1042, 32
        %s1044 = scalar_lea.vmem [#allocation16], %s1043
        %p1045 = pneg %p475
        %p1046 = pneg %p472
        %p1047 = scmp.lt.s32.totalorder %s46, 1
        %s1048 = scalar_select %p1047, %s46, 1
        %s1049 = scalar_lea.vmem %s19, %s1048
        %p1050 = pneg %p501
        %p1051 = pneg %p498
        %s1052 = sand.u32 %s46, 1
        %s1053 = scalar_lea.sflag [#allocation17], %s1052
        %s1054 = sand.u32 %s514, 1
        %s1055 = smul.addr %s1054, 32
        %s1056 = scalar_lea.vmem [#allocation18], %s1055
        %p1057 = pneg %p527
        %p1058 = pneg %p524
        %p1059 = scmp.lt.s32.totalorder %s46, 1
        %s1060 = scalar_select %p1059, %s46, 1
        %s1061 = scalar_lea.vmem %s21, %s1060
        %p1062 = pneg %p553
        %p1063 = pneg %p550
        %p1064 = scmp.lt.s32.totalorder %s46, 1
        %s1065 = scalar_select %p1064, %s46, 1
        %s1066 = scalar_lea.vmem %s22, %s1065
        %p1067 = pneg %p579
        %p1068 = pneg %p576
        %p1069 = scmp.lt.s32.totalorder %s46, 1
        %s1070 = scalar_select %p1069, %s46, 1
        %s1071 = scalar_lea.vmem %s23, %s1070
        %p1072 = pneg %p605
        %p1073 = pneg %p602
        %p1074 = pneg %p626
        %p1075 = pneg %p623
        %p1076 = pneg %p647
        %p1077 = pneg %p644
        %p1078 = pneg %p668
        %p1079 = pneg %p665
        %p1080 = scmp.lt.s32.totalorder %s46, 1
        %s1081 = scalar_select %p1080, %s46, 1
        %s1082 = smul.addr %s1081, 4
        %s1083 = smul.addr %s1082, 8
        %s1084 = scalar_lea.vmem %s12, %s1083
        %p1085 = scmp.lt.s32.totalorder %s46, 1
        %s1086 = scalar_select %p1085, %s46, 1
        %s1087 = scalar_lea.vmem %s13, %s1086
        %p1088 = scmp.lt.s32.totalorder %s46, 1
        %s1089 = scalar_select %p1088, %s46, 1
        %s1090 = smul.addr %s1089, 4
        %s1091 = smul.addr %s1090, 8
        %s1092 = scalar_lea.vmem %s14, %s1091
        %p1093 = scmp.lt.s32.totalorder %s46, 1
        %s1094 = scalar_select %p1093, %s46, 1
        %s1095 = scalar_lea.vmem %s15, %s1094
        %p1096 = scmp.lt.s32.totalorder %s46, 1
        %s1097 = scalar_select %p1096, %s46, 1
        %s1098 = scalar_lea.vmem %s16, %s1097
        %p1099 = scmp.lt.s32.totalorder %s46, 1
        %s1100 = scalar_select %p1099, %s46, 1
        %s1101 = scalar_lea.vmem %s17, %s1100
        %p1102 = scmp.lt.s32.totalorder %s46, 1
        %s1103 = scalar_select %p1102, %s46, 1
        %s1104 = scalar_lea.vmem %s19, %s1103
        %p1105 = scmp.lt.s32.totalorder %s46, 1
        %s1106 = scalar_select %p1105, %s46, 1
        %s1107 = scalar_lea.vmem %s21, %s1106
        %p1108 = scmp.lt.s32.totalorder %s46, 1
        %s1109 = scalar_select %p1108, %s46, 1
        %s1110 = scalar_lea.vmem %s22, %s1109
        %p1111 = scmp.lt.s32.totalorder %s46, 1
        %s1112 = scalar_select %p1111, %s46, 1
        %s1113 = scalar_lea.vmem %s23, %s1112
        %p1114 = scmp.eq.s32.totalorder %s46, 0
        // Predicated region
        $region165: #{tpu_custom_call.1} parent=123 // pred_check
          %p1115 = pneg %p1114
        $region166: #{tpu_custom_call.1} parent=123 // pred_check_branch
          %1117 = sbr.rel (%p1115) target = $region168
        $region167: #{tpu_custom_call.1} parent=123 // pred_region
          %v1118 = vld [vmem:[#allocation4] sm:$0xff]
          %v1119 = vld [vmem:[#allocation4 + $0x8] sm:$0x1]
          %vm1120 = vcmask 261120
          %1121 = vst.msk [vmem:[#allocation2] sm:$0xff] %vm1120, %v1118
          %vm1122 = vcmask 253952
          %1123 = vst.msk [vmem:[#allocation2 + $0x8] sm:$0x1] %vm1122, %v1119
          %v1124 = vld [vmem:[#allocation4 + $0x9] sm:$0x3]
          %v1125 = vld [vmem:[%s1] sm:$0x3]
          %v1126 = vld [vmem:[%s2] sm:$0xff]
          %v1127 = vld [vmem:[%s2 + $0x8] sm:$0xff]
          %v1128 = vld [vmem:[%s2 + $0x10] sm:$0xff]
          %v1129 = vld [vmem:[%s3] sm:$0x1]
          %v1131 = vperm.slane %v1129, 0
          %vm1133 = vcmask 195584
          %v1135 = vsel %vm1133, %v1125, 0
          %1137 = vmatpush.msra.mxu0 0.0
          %1138 = vmatpush.msra.mxu0 0.0
          %1139 = vmatpush.msra.mxu0 0.0
          %1140 = vmatpush.msra.mxu0 0.0
          %1141 = vmatpush.msra.mxu0 0.0
          %1142 = vmatpush.msra.mxu0 0.0
          %1143 = vmatpush.msra.mxu0 0.0
          %1144 = vmatpush.msra.mxu0 0.0
          %1145 = vmatpush.msra.mxu0 0.0
          %1146 = vmatpush.msra.mxu0 0.0
          %1147 = vmatpush.msra.mxu0 0.0
          %1148 = vmatpush.msra.mxu0 0.0
          %1149 = vmatpush.msra.mxu0 0.0
          %1150 = vmatpush.msra.mxu0 %v1128
          %1151 = vmatpush.msra.mxu0 %v1127
          %1152 = vmatpush.msra.mxu0 %v1126
          %1153 = vmatmul.f32.gmra.mxu0 %v1135
          %v1154 = vpop.f32.mrf.mxu0
          %v1155 = vadd.f32 %v1131, %v1154
          %1156 = vdwg.mxu0
          %v1157 = vmul.f32 %v1155, 0.5
          %v1158 = vmul.f32 %v1155, 0.70710677
          %v1159 = vmul.f32 %v1158, %v1158
          %v1160 = vmin.f32 16.0, %v1159
          %v1161 = vmul.f32 %v1160, 2.1237322e-06
          %v1162 = vadd.f32 %v1161, 0.00028619796
          %v1163 = vmul.f32 %v1160, %v1162
          %v1164 = vadd.f32 %v1163, 0.0036580483
          %v1165 = vmul.f32 %v1160, %v1164
          %v1166 = vadd.f32 %v1165, 0.05243302
          %v1167 = vmul.f32 %v1160, %v1166
          %v1168 = vadd.f32 %v1167, 0.18741608
          %v1169 = vmul.f32 %v1160, %v1168
          %v1170 = vadd.f32 %v1169, 1.1283791
          %v1171 = vmul.f32 %v1158, %v1170
          %v1172 = vmul.f32 %v1160, 3.8918573e-05
          %v1173 = vadd.f32 %v1172, 0.001143296
          %v1174 = vmul.f32 %v1160, %v1173
          %v1175 = vadd.f32 %v1174, 0.014752088
          %v1176 = vmul.f32 %v1160, %v1175
          %v1177 = vadd.f32 %v1176, 0.112945676
          %v1178 = vmul.f32 %v1160, %v1177
          %v1179 = vadd.f32 %v1178, 0.4994258
          %v1180 = vmul.f32 %v1160, %v1179
          %v1181 = vadd.f32 %v1180, 1.0
          %v1182 = vrcp.pop %v1181
          %v1183 = vmul.f32 %v1181, %v1182
          %v1184 = vsub.f32 1.0, %v1183
          %v1185 = vmul.f32 %v1182, %v1184
          %v1186 = vadd.f32 %v1182, %v1185
          %vm1187 = vweird.f32 %v1181
          %vm1188 = vweird.f32 %v1182
          %vm1189 = vmor %vm1187, %vm1188
          %v1190 = vsel %vm1189, %v1182, %v1186
          %v1191 = vand.u32 2147483647, %v1181
          %vm1192 = vcmp.eq.f32.partialorder %v1191, 8.507059e+37
          %v1193 = vand.u32 %v1181, 2147483648
          %v1194 = vor.u32 1.1754944e-38, %v1193
          %v1195 = vsel %vm1192, %v1194, %v1190
          %v1196 = vmul.f32 %v1171, %v1195
          %v1197 = vmin.f32 %v1196, 1.0
          %v1198 = vmax.f32 %v1197, -1.0
          %v1199 = vadd.f32 %v1198, 1.0
          %v1200 = vmul.f32 %v1157, %v1199
          %v1201 = vadd.f32 %v1124, %v1200
          %vm1202 = vcmask 254976
          %1203 = vst.msk [vmem:[#allocation2 + $0x9] sm:$0x3] %vm1202, %v1201
          %v1204 = vld [vmem:[#allocation4 + $0xb] sm:$0x1]
          %v1205 = vld [vmem:[#allocation7] sm:$0x1]
          %v1206 = vld [vmem:[#allocation9] sm:$0xff]
          %v1207 = vld [vmem:[#allocation9 + $0x8] sm:$0xff]
          %v1208 = vld [vmem:[#allocation10] sm:$0x1]
          %vm1209 = vcmask 130048
          %v1211 = vsel %vm1209, %v1205, 0
          %1213 = vmatpush.msra.mxu0 0.0
          %1214 = vmatpush.msra.mxu0 0.0
          %1215 = vmatpush.msra.mxu0 0.0
          %1216 = vmatpush.msra.mxu0 0.0
          %1217 = vmatpush.msra.mxu0 0.0
          %1218 = vmatpush.msra.mxu0 0.0
          %1219 = vmatpush.msra.mxu0 0.0
          %1220 = vmatpush.msra.mxu0 0.0
          %1221 = vmatpush.msra.mxu0 0.0
          %1222 = vmatpush.msra.mxu0 0.0
          %1223 = vmatpush.msra.mxu0 0.0
          %1224 = vmatpush.msra.mxu0 0.0
          %1225 = vmatpush.msra.mxu0 0.0
          %1226 = vmatpush.msra.mxu0 0.0
          %1227 = vmatpush.msra.mxu0 %v1207
          %1228 = vmatpush.msra.mxu0 %v1206
          %1229 = vmatmul.f32.gmra.mxu0 %v1211
          %v1230 = vpop.f32.mrf.mxu0
          %v1231 = vadd.f32 %v1208, %v1230
          %1232 = vdwg.mxu0
          %v1233 = vmul.f32 %v1231, 0.5
          %v1234 = vmul.f32 %v1231, 0.70710677
          %v1235 = vmul.f32 %v1234, %v1234
          %v1236 = vmin.f32 16.0, %v1235
          %v1237 = vmul.f32 %v1236, 2.1237322e-06
          %v1238 = vadd.f32 %v1237, 0.00028619796
          %v1239 = vmul.f32 %v1236, %v1238
          %v1240 = vadd.f32 %v1239, 0.0036580483
          %v1241 = vmul.f32 %v1236, %v1240
          %v1242 = vadd.f32 %v1241, 0.05243302
          %v1243 = vmul.f32 %v1236, %v1242
          %v1244 = vadd.f32 %v1243, 0.18741608
          %v1245 = vmul.f32 %v1236, %v1244
          %v1246 = vadd.f32 %v1245, 1.1283791
          %v1247 = vmul.f32 %v1234, %v1246
          %v1248 = vmul.f32 %v1236, 3.8918573e-05
          %v1249 = vadd.f32 %v1248, 0.001143296
          %v1250 = vmul.f32 %v1236, %v1249
          %v1251 = vadd.f32 %v1250, 0.014752088
          %v1252 = vmul.f32 %v1236, %v1251
          %v1253 = vadd.f32 %v1252, 0.112945676
          %v1254 = vmul.f32 %v1236, %v1253
          %v1255 = vadd.f32 %v1254, 0.4994258
          %v1256 = vmul.f32 %v1236, %v1255
          %v1257 = vadd.f32 %v1256, 1.0
          %v1258 = vrcp.pop %v1257
          %v1259 = vmul.f32 %v1257, %v1258
          %v1260 = vsub.f32 1.0, %v1259
          %v1261 = vmul.f32 %v1258, %v1260
          %v1262 = vadd.f32 %v1258, %v1261
          %vm1263 = vweird.f32 %v1257
          %vm1264 = vweird.f32 %v1258
          %vm1265 = vmor %vm1263, %vm1264
          %v1266 = vsel %vm1265, %v1258, %v1262
          %v1267 = vand.u32 2147483647, %v1257
          %vm1268 = vcmp.eq.f32.partialorder %v1267, 8.507059e+37
          %v1269 = vand.u32 %v1257, 2147483648
          %v1270 = vor.u32 1.1754944e-38, %v1269
          %v1271 = vsel %vm1268, %v1270, %v1266
          %v1272 = vmul.f32 %v1247, %v1271
          %v1273 = vmin.f32 %v1272, 1.0
          %v1274 = vmax.f32 %v1273, -1.0
          %v1275 = vadd.f32 %v1274, 1.0
          %v1276 = vmul.f32 %v1233, %v1275
          %v1277 = vadd.f32 %v1204, %v1276
          %1278 = vst.msk [vmem:[#allocation2 + $0xb] sm:$0x1] %vm1122, %v1277
          %v1279 = vld [vmem:[#allocation4 + $0xc] sm:$0x3]
          %v1280 = vld [vmem:[%s7] sm:$0x3]
          %v1281 = vld [vmem:[%s8] sm:$0xff]
          %v1282 = vld [vmem:[%s8 + $0x8] sm:$0xff]
          %v1283 = vld [vmem:[%s8 + $0x10] sm:$0xff]
          %v1284 = vld [vmem:[%s8 + $0x18] sm:$0xff]
          %v1285 = vld [vmem:[%s8 + $0x20] sm:$0xff]
          %v1286 = vld [vmem:[%s8 + $0x28] sm:$0xff]
          %v1287 = vld [vmem:[%s8 + $0x30] sm:$0xff]
          %v1288 = vld [vmem:[%s8 + $0x38] sm:$0xff]
          %v1289 = vld [vmem:[%s8 + $0x40] sm:$0xff]
          %v1290 = vld [vmem:[%s8 + $0x48] sm:$0xff]
          %v1291 = vld [vmem:[%s8 + $0x50] sm:$0xff]
          %v1292 = vld [vmem:[%s8 + $0x58] sm:$0xff]
          %v1293 = vld [vmem:[%s8 + $0x60] sm:$0xff]
          %v1294 = vld [vmem:[%s8 + $0x68] sm:$0xff]
          %v1295 = vld [vmem:[%s8 + $0x70] sm:$0xff]
          %v1296 = vld [vmem:[%s8 + $0x78] sm:$0xff]
          %v1297 = vld [vmem:[#allocation12] sm:$0x1]
          %v1299 = vperm.slane %v1297, 0
          %1301 = vmatpush.msra.mxu0 %v1296
          %1302 = vmatpush.msra.mxu0 %v1295
          %1303 = vmatpush.msra.mxu0 %v1294
          %1304 = vmatpush.msra.mxu0 %v1293
          %1305 = vmatpush.msra.mxu0 %v1292
          %1306 = vmatpush.msra.mxu0 %v1291
          %1307 = vmatpush.msra.mxu0 %v1290
          %1308 = vmatpush.msra.mxu0 %v1289
          %1309 = vmatpush.msra.mxu0 %v1288
          %1310 = vmatpush.msra.mxu0 %v1287
          %1311 = vmatpush.msra.mxu0 %v1286
          %1312 = vmatpush.msra.mxu0 %v1285
          %1313 = vmatpush.msra.mxu0 %v1284
          %1314 = vmatpush.msra.mxu0 %v1283
          %1315 = vmatpush.msra.mxu0 %v1282
          %1316 = vmatpush.msra.mxu0 %v1281
          %1317 = vmatmul.f32.gmra.mxu0 %v1280
          %v1318 = vpop.f32.mrf.mxu0
          %v1319 = vadd.f32 %v1299, %v1318
          %1320 = vdwg.mxu0
          %v1321 = vmul.f32 %v1319, 0.5
          %v1322 = vmul.f32 %v1319, 0.70710677
          %v1323 = vmul.f32 %v1322, %v1322
          %v1324 = vmin.f32 16.0, %v1323
          %v1325 = vmul.f32 %v1324, 2.1237322e-06
          %v1326 = vadd.f32 %v1325, 0.00028619796
          %v1327 = vmul.f32 %v1324, %v1326
          %v1328 = vadd.f32 %v1327, 0.0036580483
          %v1329 = vmul.f32 %v1324, %v1328
          %v1330 = vadd.f32 %v1329, 0.05243302
          %v1331 = vmul.f32 %v1324, %v1330
          %v1332 = vadd.f32 %v1331, 0.18741608
          %v1333 = vmul.f32 %v1324, %v1332
          %v1334 = vadd.f32 %v1333, 1.1283791
          %v1335 = vmul.f32 %v1322, %v1334
          %v1336 = vmul.f32 %v1324, 3.8918573e-05
          %v1337 = vadd.f32 %v1336, 0.001143296
          %v1338 = vmul.f32 %v1324, %v1337
          %v1339 = vadd.f32 %v1338, 0.014752088
          %v1340 = vmul.f32 %v1324, %v1339
          %v1341 = vadd.f32 %v1340, 0.112945676
          %v1342 = vmul.f32 %v1324, %v1341
          %v1343 = vadd.f32 %v1342, 0.4994258
          %v1344 = vmul.f32 %v1324, %v1343
          %v1345 = vadd.f32 %v1344, 1.0
          %v1346 = vrcp.pop %v1345
          %v1347 = vmul.f32 %v1345, %v1346
          %v1348 = vsub.f32 1.0, %v1347
          %v1349 = vmul.f32 %v1346, %v1348
          %v1350 = vadd.f32 %v1346, %v1349
          %vm1351 = vweird.f32 %v1345
          %vm1352 = vweird.f32 %v1346
          %vm1353 = vmor %vm1351, %vm1352
          %v1354 = vsel %vm1353, %v1346, %v1350
          %v1355 = vand.u32 2147483647, %v1345
          %vm1356 = vcmp.eq.f32.partialorder %v1355, 8.507059e+37
          %v1357 = vand.u32 %v1345, 2147483648
          %v1358 = vor.u32 1.1754944e-38, %v1357
          %v1359 = vsel %vm1356, %v1358, %v1354
          %v1360 = vmul.f32 %v1335, %v1359
          %v1361 = vmin.f32 %v1360, 1.0
          %v1362 = vmax.f32 %v1361, -1.0
          %v1363 = vadd.f32 %v1362, 1.0
          %v1364 = vmul.f32 %v1321, %v1363
          %v1365 = vadd.f32 %v1279, %v1364
          %1366 = vst.msk [vmem:[#allocation2 + $0xc] sm:$0x3] %vm1202, %v1365
          %v1367 = vld [vmem:[#allocation2] sm:$0xff]
          %v1368 = vld [vmem:[#allocation2 + $0x8] sm:$0x3f]
          %v1369 = vld [vmem:[#allocation13] sm:$0x1]
          %v1370 = vld [vmem:[#allocation15] sm:$0x1]
          %v1371 = vsel %vm1120, %v1367, 0.0
          %1372 = vadd.xlane.f32.xlu0 %v1371
          %v1373 = vpop.xlane.xlu0 %1372
          %vm1374 = vcmask 259072
          %v1375 = vsel %vm1374, %v1368, 0.0
          %1376 = vadd.xlane.f32.xlu0 %v1375
          %v1377 = vpop.xlane.xlu0 %1376
          %v1378 = vrcp.pop 32.0
          %v1379 = vmul.f32 32.0, %v1378
          %v1380 = vsub.f32 1.0, %v1379
          %v1381 = vmul.f32 %v1378, %v1380
          %v1382 = vadd.f32 %v1378, %v1381
          %vm1383 = vweird.f32 %v1378
          %v1384 = vsel %vm1383, %v1378, %v1382
          %v1385 = vmul.f32 %v1373, %v1384
          %v1386 = vmul.f32 %v1377, %v1384
          %v1387 = vsub.f32 %v1367, %v1385
          %v1388 = vsub.f32 %v1368, %v1386
          %v1389 = vmul.f32 %v1387, %v1387
          %v1390 = vmul.f32 %v1388, %v1388
          %v1391 = vsel %vm1120, %v1389, 0.0
          %1392 = vadd.xlane.f32.xlu0 %v1391
          %v1393 = vpop.xlane.xlu0 %1392
          %v1394 = vsel %vm1374, %v1390, 0.0
          %1395 = vadd.xlane.f32.xlu0 %v1394
          %v1396 = vpop.xlane.xlu0 %1395
          %v1397 = vmul.f32 %v1393, %v1384
          %v1398 = vmul.f32 %v1396, %v1384
          %v1399 = vadd.f32 %v1397, 1e-05
          %v1400 = vadd.f32 %v1398, 1e-05
          %v1401 = vrsqrt.pop %v1399
          %v1402 = vmul.f32 %v1401, %v1399
          %v1403 = vmul.f32 %v1402, %v1401
          %v1404 = vmul.f32 0.5, %v1403
          %v1405 = vsub.f32 1.5, %v1404
          %v1406 = vmul.f32 %v1401, %v1405
          %vm1407 = vweird.f32 %v1399
          %vm1408 = vweird.f32 %v1401
          %vm1409 = vmor %vm1407, %vm1408
          %v1410 = vsel %vm1409, %v1401, %v1406
          %v1411 = vrsqrt.pop %v1400
          %v1412 = vmul.f32 %v1411, %v1400
          %v1413 = vmul.f32 %v1412, %v1411
          %v1414 = vmul.f32 0.5, %v1413
          %v1415 = vsub.f32 1.5, %v1414
          %v1416 = vmul.f32 %v1411, %v1415
          %vm1417 = vweird.f32 %v1400
          %vm1418 = vweird.f32 %v1411
          %vm1419 = vmor %vm1417, %vm1418
          %v1420 = vsel %vm1419, %v1411, %v1416
          %v1421 = vmul.f32 %v1387, %v1410
          %v1422 = vmul.f32 %v1388, %v1420
          %v1424 = vperm.slane %v1369, 0
          %v1426 = vmul.f32 %v1421, %v1424
          %v1427 = vmul.f32 %v1422, %v1424
          %v1429 = vperm.slane %v1370, 0
          %v1431 = vadd.f32 %v1426, %v1429
          %v1432 = vadd.f32 %v1427, %v1429
          %1433 = vst.msk [vmem:[#allocation2] sm:$0xff] %vm1120, %v1431
          %1434 = vst.msk [vmem:[#allocation2 + $0x8] sm:$0x3f] %vm1374, %v1432
        $region168: #{tpu_custom_call.1} parent=123 // pred_fallthru
          _
        %v1435 = vld [vmem:[#allocation2] sm:$0xff]
        %v1436 = vld [vmem:[#allocation2 + $0x8] sm:$0x3f]
        %v1437 = vld [vmem:[%s1084] sm:$0xff]
        %v1438 = vld [vmem:[%s1084 + $0x8] sm:$0xff]
        %v1439 = vld [vmem:[%s1084 + $0x10] sm:$0xff]
        %v1440 = vld [vmem:[%s1084 + $0x18] sm:$0xff]
        %v1441 = vld [vmem:[%s1087] sm:$0x1]
        %v1443 = vperm.slane %v1441, 0
        %vm1445 = vcmask 261120
        %v1447 = vsel %vm1445, %v1435, 0
        %v1450 = vsel %vm1445, %v1436, 0
        %1452 = vmatpush.msra.mxu0 0.0
        %1453 = vmatpush.msra.mxu0 0.0
        %1454 = vmatpush.msra.mxu0 0.0
        %1455 = vmatpush.msra.mxu0 0.0
        %1456 = vmatpush.msra.mxu0 0.0
        %1457 = vmatpush.msra.mxu0 0.0
        %1458 = vmatpush.msra.mxu0 0.0
        %1459 = vmatpush.msra.mxu0 0.0
        %1460 = vmatpush.msra.mxu0 0.0
        %1461 = vmatpush.msra.mxu0 0.0
        %1462 = vmatpush.msra.mxu0 0.0
        %1463 = vmatpush.msra.mxu0 0.0
        %1464 = vmatpush.msra.mxu0 %v1440
        %1465 = vmatpush.msra.mxu0 %v1439
        %1466 = vmatpush.msra.mxu0 %v1438
        %1467 = vmatpush.msra.mxu0 %v1437
        %1468 = vmatmul.f32.gmra.mxu0 %v1447
        %v1469 = vpop.f32.mrf.mxu0
        %v1470 = vadd.f32 %v1443, %v1469
        %1471 = vmatmul.f32.gmra.mxu0 %v1450
        %v1472 = vpop.f32.mrf.mxu0
        %v1473 = vadd.f32 %v1443, %v1472
        %1474 = vdwg.mxu0
        %1477 = vrot.lane.b32.xlu0 %v1470, 96
        %v1478 = vpop.permute.xlu0 %1477
        %1479 = vrot.lane.b32.xlu0 %v1473, 96
        %v1480 = vpop.permute.xlu0 %1479
        %vm1481 = vcmask 64512
        %v1482 = vsel %vm1481, %v1470, 0
        %v1484 = vsel %vm1481, %v1473, 0
        %v1486 = vsel %vm1481, %v1478, 0
        %v1488 = vsel %vm1481, %v1480, 0
        %1490 = vmatpush.xpose.msra.mxu0 0.0
        %1491 = vmatpush.xpose.msra.mxu0 0.0
        %1492 = vmatpush.xpose.msra.mxu0 0.0
        %1493 = vmatpush.xpose.msra.mxu0 0.0
        %1494 = vmatpush.xpose.msra.mxu0 0.0
        %1495 = vmatpush.xpose.msra.mxu0 0.0
        %1496 = vmatpush.xpose.msra.mxu0 0.0
        %1497 = vmatpush.xpose.msra.mxu0 0.0
        %1498 = vmatpush.xpose.msra.mxu0 0.0
        %1499 = vmatpush.xpose.msra.mxu0 0.0
        %1500 = vmatpush.xpose.msra.mxu0 0.0
        %1501 = vmatpush.xpose.msra.mxu0 0.0
        %1502 = vmatpush.xpose.msra.mxu0 0.0
        %1503 = vmatpush.xpose.msra.mxu0 0.0
        %1504 = vmatpush.xpose.msra.mxu0 %v1488
        %1505 = vmatpush.xpose.msra.mxu0 %v1486
        %1506 = vmatmul.f32.gmra.mxu0 %v1482
        %v1507 = vpop.f32.mrf.mxu0
        %v1508 = vadd.f32 0.0, %v1507
        %1509 = vmatmul.f32.gmra.mxu0 %v1484
        %v1510 = vpop.f32.mrf.mxu0
        %v1511 = vadd.f32 0.0, %v1510
        %1512 = vdwg.mxu0
        %v1513 = vmul.f32 %v1508, 0.35355338
        %v1514 = vmul.f32 %v1511, 0.35355338
        %vm1515 = vcmask 113664
        %v1516 = vsel %vm1515, %v1513, -inf
        %1517 = vmax.xlane.f32.xlu0 %v1516
        %v1518 = vpop.xlane.xlu0 %1517
        %vm1519 = vcmask 111616
        %v1520 = vsel %vm1519, %v1514, -inf
        %1521 = vmax.xlane.f32.xlu0 %v1520
        %v1522 = vpop.xlane.xlu0 %1521
        %v1523 = vsub.f32 %v1513, %v1518
        %v1524 = vsub.f32 %v1514, %v1522
        %v1525 = vmul.f32 %v1523, 1.442695
        %v1526 = vpow.pop %v1525
        %v1527 = vmul.f32 %v1524, 1.442695
        %v1528 = vpow.pop %v1527
        %v1529 = vsel %vm1515, %v1526, 0.0
        %1530 = vadd.xlane.f32.xlu0 %v1529
        %v1531 = vpop.xlane.xlu0 %1530
        %v1532 = vsel %vm1519, %v1528, 0.0
        %1533 = vadd.xlane.f32.xlu0 %v1532
        %v1534 = vpop.xlane.xlu0 %1533
        %v1535 = vrcp.pop %v1531
        %v1536 = vrcp.pop %v1534
        %v1537 = vmul.f32 %v1526, %v1535
        %v1538 = vmul.f32 %v1528, %v1536
        %1539 = vrot.lane.b32.xlu0 %v1470, 64
        %v1540 = vpop.permute.xlu0 %1539
        %1541 = vrot.lane.b32.xlu0 %v1473, 64
        %v1542 = vpop.permute.xlu0 %1541
        %v1545 = vsel %vm1515, %v1537, 0
        %v1548 = vsel %vm1515, %v1538, 0
        %vm1550 = vcmask 1045504
        %v1551 = vsel %vm1550, %v1542, 0
        %1553 = vmatpush.msra.mxu0 0.0
        %1554 = vmatpush.msra.mxu0 0.0
        %1555 = vmatpush.msra.mxu0 0.0
        %1556 = vmatpush.msra.mxu0 0.0
        %1557 = vmatpush.msra.mxu0 0.0
        %1558 = vmatpush.msra.mxu0 0.0
        %1559 = vmatpush.msra.mxu0 0.0
        %1560 = vmatpush.msra.mxu0 0.0
        %1561 = vmatpush.msra.mxu0 0.0
        %1562 = vmatpush.msra.mxu0 0.0
        %1563 = vmatpush.msra.mxu0 0.0
        %1564 = vmatpush.msra.mxu0 0.0
        %1565 = vmatpush.msra.mxu0 0.0
        %1566 = vmatpush.msra.mxu0 0.0
        %1567 = vmatpush.msra.mxu0 %v1551
        %1568 = vmatpush.msra.mxu0 %v1540
        %1569 = vmatmul.f32.gmra.mxu0 %v1545
        %v1570 = vpop.f32.mrf.mxu0
        %v1571 = vadd.f32 0.0, %v1570
        %1572 = vmatmul.f32.gmra.mxu0 %v1548
        %v1573 = vpop.f32.mrf.mxu0
        %v1574 = vadd.f32 0.0, %v1573
        %1575 = vdwg.mxu0
        %1576 = vst.msk [vmem:[#allocation3] sm:$0xff] %vm1481, %v1571
        %vm1577 = vcmask 62464
        %1578 = vst.msk [vmem:[#allocation3 + $0x8] sm:$0x3f] %vm1577, %v1574
        %1579 = vrot.lane.b32.xlu0 %v1470, 120
        %v1580 = vpop.permute.xlu0 %1579
        %1581 = vrot.lane.b32.xlu0 %v1473, 120
        %v1582 = vpop.permute.xlu0 %1581
        %1583 = vrot.lane.b32.xlu0 %v1470, 88
        %v1584 = vpop.permute.xlu0 %1583
        %1585 = vrot.lane.b32.xlu0 %v1473, 88
        %v1586 = vpop.permute.xlu0 %1585
        %v1587 = vsel %vm1481, %v1580, 0
        %v1589 = vsel %vm1481, %v1582, 0
        %v1591 = vsel %vm1481, %v1584, 0
        %v1593 = vsel %vm1481, %v1586, 0
        %1595 = vmatpush.xpose.msra.mxu0 0.0
        %1596 = vmatpush.xpose.msra.mxu0 0.0
        %1597 = vmatpush.xpose.msra.mxu0 0.0
        %1598 = vmatpush.xpose.msra.mxu0 0.0
        %1599 = vmatpush.xpose.msra.mxu0 0.0
        %1600 = vmatpush.xpose.msra.mxu0 0.0
        %1601 = vmatpush.xpose.msra.mxu0 0.0
        %1602 = vmatpush.xpose.msra.mxu0 0.0
        %1603 = vmatpush.xpose.msra.mxu0 0.0
        %1604 = vmatpush.xpose.msra.mxu0 0.0
        %1605 = vmatpush.xpose.msra.mxu0 0.0
        %1606 = vmatpush.xpose.msra.mxu0 0.0
        %1607 = vmatpush.xpose.msra.mxu0 0.0
        %1608 = vmatpush.xpose.msra.mxu0 0.0
        %1609 = vmatpush.xpose.msra.mxu0 %v1593
        %1610 = vmatpush.xpose.msra.mxu0 %v1591
        %1611 = vmatmul.f32.gmra.mxu0 %v1587
        %v1612 = vpop.f32.mrf.mxu0
        %v1613 = vadd.f32 0.0, %v1612
        %1614 = vmatmul.f32.gmra.mxu0 %v1589
        %v1615 = vpop.f32.mrf.mxu0
        %v1616 = vadd.f32 0.0, %v1615
        %1617 = vdwg.mxu0
        %v1618 = vmul.f32 %v1613, 0.35355338
        %v1619 = vmul.f32 %v1616, 0.35355338
        %v1620 = vsel %vm1515, %v1618, -inf
        %1621 = vmax.xlane.f32.xlu0 %v1620
        %v1622 = vpop.xlane.xlu0 %1621
        %v1623 = vsel %vm1519, %v1619, -inf
        %1624 = vmax.xlane.f32.xlu0 %v1623
        %v1625 = vpop.xlane.xlu0 %1624
        %v1626 = vsub.f32 %v1618, %v1622
        %v1627 = vsub.f32 %v1619, %v1625
        %v1628 = vmul.f32 %v1626, 1.442695
        %v1629 = vpow.pop %v1628
        %v1630 = vmul.f32 %v1627, 1.442695
        %v1631 = vpow.pop %v1630
        %v1632 = vsel %vm1515, %v1629, 0.0
        %1633 = vadd.xlane.f32.xlu0 %v1632
        %v1634 = vpop.xlane.xlu0 %1633
        %v1635 = vsel %vm1519, %v1631, 0.0
        %1636 = vadd.xlane.f32.xlu0 %v1635
        %v1637 = vpop.xlane.xlu0 %1636
        %v1638 = vrcp.pop %v1634
        %v1639 = vrcp.pop %v1637
        %v1640 = vmul.f32 %v1629, %v1638
        %v1641 = vmul.f32 %v1631, %v1639
        %1642 = vrot.lane.b32.xlu0 %v1470, 56
        %v1643 = vpop.permute.xlu0 %1642
        %1644 = vrot.lane.b32.xlu0 %v1473, 56
        %v1645 = vpop.permute.xlu0 %1644
        %v1648 = vsel %vm1515, %v1640, 0
        %v1651 = vsel %vm1515, %v1641, 0
        %v1653 = vsel %vm1550, %v1645, 0
        %1655 = vmatpush.msra.mxu0 0.0
        %1656 = vmatpush.msra.mxu0 0.0
        %1657 = vmatpush.msra.mxu0 0.0
        %1658 = vmatpush.msra.mxu0 0.0
        %1659 = vmatpush.msra.mxu0 0.0
        %1660 = vmatpush.msra.mxu0 0.0
        %1661 = vmatpush.msra.mxu0 0.0
        %1662 = vmatpush.msra.mxu0 0.0
        %1663 = vmatpush.msra.mxu0 0.0
        %1664 = vmatpush.msra.mxu0 0.0
        %1665 = vmatpush.msra.mxu0 0.0
        %1666 = vmatpush.msra.mxu0 0.0
        %1667 = vmatpush.msra.mxu0 0.0
        %1668 = vmatpush.msra.mxu0 0.0
        %1669 = vmatpush.msra.mxu0 %v1653
        %1670 = vmatpush.msra.mxu0 %v1643
        %1671 = vmatmul.f32.gmra.mxu0 %v1648
        %v1672 = vpop.f32.mrf.mxu0
        %v1673 = vadd.f32 0.0, %v1672
        %1674 = vmatmul.f32.gmra.mxu0 %v1651
        %v1675 = vpop.f32.mrf.mxu0
        %v1676 = vadd.f32 0.0, %v1675
        %1677 = vdwg.mxu0
        %1680 = vrot.lane.b32.xlu0 %v1673, 8
        %v1681 = vpop.permute.xlu0 %1680
        %1682 = vrot.lane.b32.xlu0 %v1676, 8
        %v1683 = vpop.permute.xlu0 %1682
        %vm1686 = vcmask 130112
        %1687 = vst.msk [vmem:[#allocation3] sm:$0xff] %vm1686, %v1681
        %vm1688 = vcmask 128064
        %1689 = vst.msk [vmem:[#allocation3 + $0x8] sm:$0x3f] %vm1688, %v1683
        %1690 = vrot.lane.b32.xlu0 %v1470, 112
        %v1691 = vpop.permute.xlu0 %1690
        %1692 = vrot.lane.b32.xlu0 %v1473, 112
        %v1693 = vpop.permute.xlu0 %1692
        %1694 = vrot.lane.b32.xlu0 %v1470, 80
        %v1695 = vpop.permute.xlu0 %1694
        %1696 = vrot.lane.b32.xlu0 %v1473, 80
        %v1697 = vpop.permute.xlu0 %1696
        %v1698 = vsel %vm1481, %v1691, 0
        %v1700 = vsel %vm1481, %v1693, 0
        %v1702 = vsel %vm1481, %v1695, 0
        %v1704 = vsel %vm1481, %v1697, 0
        %1706 = vmatpush.xpose.msra.mxu0 0.0
        %1707 = vmatpush.xpose.msra.mxu0 0.0
        %1708 = vmatpush.xpose.msra.mxu0 0.0
        %1709 = vmatpush.xpose.msra.mxu0 0.0
        %1710 = vmatpush.xpose.msra.mxu0 0.0
        %1711 = vmatpush.xpose.msra.mxu0 0.0
        %1712 = vmatpush.xpose.msra.mxu0 0.0
        %1713 = vmatpush.xpose.msra.mxu0 0.0
        %1714 = vmatpush.xpose.msra.mxu0 0.0
        %1715 = vmatpush.xpose.msra.mxu0 0.0
        %1716 = vmatpush.xpose.msra.mxu0 0.0
        %1717 = vmatpush.xpose.msra.mxu0 0.0
        %1718 = vmatpush.xpose.msra.mxu0 0.0
        %1719 = vmatpush.xpose.msra.mxu0 0.0
        %1720 = vmatpush.xpose.msra.mxu0 %v1704
        %1721 = vmatpush.xpose.msra.mxu0 %v1702
        %1722 = vmatmul.f32.gmra.mxu0 %v1698
        %v1723 = vpop.f32.mrf.mxu0
        %v1724 = vadd.f32 0.0, %v1723
        %1725 = vmatmul.f32.gmra.mxu0 %v1700
        %v1726 = vpop.f32.mrf.mxu0
        %v1727 = vadd.f32 0.0, %v1726
        %1728 = vdwg.mxu0
        %v1729 = vmul.f32 %v1724, 0.35355338
        %v1730 = vmul.f32 %v1727, 0.35355338
        %v1731 = vsel %vm1515, %v1729, -inf
        %1732 = vmax.xlane.f32.xlu0 %v1731
        %v1733 = vpop.xlane.xlu0 %1732
        %v1734 = vsel %vm1519, %v1730, -inf
        %1735 = vmax.xlane.f32.xlu0 %v1734
        %v1736 = vpop.xlane.xlu0 %1735
        %v1737 = vsub.f32 %v1729, %v1733
        %v1738 = vsub.f32 %v1730, %v1736
        %v1739 = vmul.f32 %v1737, 1.442695
        %v1740 = vpow.pop %v1739
        %v1741 = vmul.f32 %v1738, 1.442695
        %v1742 = vpow.pop %v1741
        %v1743 = vsel %vm1515, %v1740, 0.0
        %1744 = vadd.xlane.f32.xlu0 %v1743
        %v1745 = vpop.xlane.xlu0 %1744
        %v1746 = vsel %vm1519, %v1742, 0.0
        %1747 = vadd.xlane.f32.xlu0 %v1746
        %v1748 = vpop.xlane.xlu0 %1747
        %v1749 = vrcp.pop %v1745
        %v1750 = vrcp.pop %v1748
        %v1751 = vmul.f32 %v1740, %v1749
        %v1752 = vmul.f32 %v1742, %v1750
        %1753 = vrot.lane.b32.xlu0 %v1470, 48
        %v1754 = vpop.permute.xlu0 %1753
        %1755 = vrot.lane.b32.xlu0 %v1473, 48
        %v1756 = vpop.permute.xlu0 %1755
        %v1759 = vsel %vm1515, %v1751, 0
        %v1762 = vsel %vm1515, %v1752, 0
        %v1764 = vsel %vm1550, %v1756, 0
        %1766 = vmatpush.msra.mxu0 0.0
        %1767 = vmatpush.msra.mxu0 0.0
        %1768 = vmatpush.msra.mxu0 0.0
        %1769 = vmatpush.msra.mxu0 0.0
        %1770 = vmatpush.msra.mxu0 0.0
        %1771 = vmatpush.msra.mxu0 0.0
        %1772 = vmatpush.msra.mxu0 0.0
        %1773 = vmatpush.msra.mxu0 0.0
        %1774 = vmatpush.msra.mxu0 0.0
        %1775 = vmatpush.msra.mxu0 0.0
        %1776 = vmatpush.msra.mxu0 0.0
        %1777 = vmatpush.msra.mxu0 0.0
        %1778 = vmatpush.msra.mxu0 0.0
        %1779 = vmatpush.msra.mxu0 0.0
        %1780 = vmatpush.msra.mxu0 %v1764
        %1781 = vmatpush.msra.mxu0 %v1754
        %1782 = vmatmul.f32.gmra.mxu0 %v1759
        %v1783 = vpop.f32.mrf.mxu0
        %v1784 = vadd.f32 0.0, %v1783
        %1785 = vmatmul.f32.gmra.mxu0 %v1762
        %v1786 = vpop.f32.mrf.mxu0
        %v1787 = vadd.f32 0.0, %v1786
        %1788 = vdwg.mxu0
        %1791 = vrot.lane.b32.xlu0 %v1784, 16
        %v1792 = vpop.permute.xlu0 %1791
        %1793 = vrot.lane.b32.xlu0 %v1787, 16
        %v1794 = vpop.permute.xlu0 %1793
        %vm1797 = vcmask 195712
        %1798 = vst.msk [vmem:[#allocation3] sm:$0xff] %vm1797, %v1792
        %vm1799 = vcmask 193664
        %1800 = vst.msk [vmem:[#allocation3 + $0x8] sm:$0x3f] %vm1799, %v1794
        %1801 = vrot.lane.b32.xlu0 %v1470, 104
        %v1802 = vpop.permute.xlu0 %1801
        %1803 = vrot.lane.b32.xlu0 %v1473, 104
        %v1804 = vpop.permute.xlu0 %1803
        %1805 = vrot.lane.b32.xlu0 %v1470, 72
        %v1806 = vpop.permute.xlu0 %1805
        %1807 = vrot.lane.b32.xlu0 %v1473, 72
        %v1808 = vpop.permute.xlu0 %1807
        %v1809 = vsel %vm1481, %v1802, 0
        %v1811 = vsel %vm1481, %v1804, 0
        %v1813 = vsel %vm1481, %v1806, 0
        %v1815 = vsel %vm1481, %v1808, 0
        %1817 = vmatpush.xpose.msra.mxu0 0.0
        %1818 = vmatpush.xpose.msra.mxu0 0.0
        %1819 = vmatpush.xpose.msra.mxu0 0.0
        %1820 = vmatpush.xpose.msra.mxu0 0.0
        %1821 = vmatpush.xpose.msra.mxu0 0.0
        %1822 = vmatpush.xpose.msra.mxu0 0.0
        %1823 = vmatpush.xpose.msra.mxu0 0.0
        %1824 = vmatpush.xpose.msra.mxu0 0.0
        %1825 = vmatpush.xpose.msra.mxu0 0.0
        %1826 = vmatpush.xpose.msra.mxu0 0.0
        %1827 = vmatpush.xpose.msra.mxu0 0.0
        %1828 = vmatpush.xpose.msra.mxu0 0.0
        %1829 = vmatpush.xpose.msra.mxu0 0.0
        %1830 = vmatpush.xpose.msra.mxu0 0.0
        %1831 = vmatpush.xpose.msra.mxu0 %v1815
        %1832 = vmatpush.xpose.msra.mxu0 %v1813
        %1833 = vmatmul.f32.gmra.mxu0 %v1809
        %v1834 = vpop.f32.mrf.mxu0
        %v1835 = vadd.f32 0.0, %v1834
        %1836 = vmatmul.f32.gmra.mxu0 %v1811
        %v1837 = vpop.f32.mrf.mxu0
        %v1838 = vadd.f32 0.0, %v1837
        %1839 = vdwg.mxu0
        %v1840 = vmul.f32 %v1835, 0.35355338
        %v1841 = vmul.f32 %v1838, 0.35355338
        %v1842 = vsel %vm1515, %v1840, -inf
        %1843 = vmax.xlane.f32.xlu0 %v1842
        %v1844 = vpop.xlane.xlu0 %1843
        %v1845 = vsel %vm1519, %v1841, -inf
        %1846 = vmax.xlane.f32.xlu0 %v1845
        %v1847 = vpop.xlane.xlu0 %1846
        %v1848 = vsub.f32 %v1840, %v1844
        %v1849 = vsub.f32 %v1841, %v1847
        %v1850 = vmul.f32 %v1848, 1.442695
        %v1851 = vpow.pop %v1850
        %v1852 = vmul.f32 %v1849, 1.442695
        %v1853 = vpow.pop %v1852
        %v1854 = vsel %vm1515, %v1851, 0.0
        %1855 = vadd.xlane.f32.xlu0 %v1854
        %v1856 = vpop.xlane.xlu0 %1855
        %v1857 = vsel %vm1519, %v1853, 0.0
        %1858 = vadd.xlane.f32.xlu0 %v1857
        %v1859 = vpop.xlane.xlu0 %1858
        %v1860 = vrcp.pop %v1856
        %v1861 = vrcp.pop %v1859
        %v1862 = vmul.f32 %v1851, %v1860
        %v1863 = vmul.f32 %v1853, %v1861
        %1864 = vrot.lane.b32.xlu0 %v1470, 40
        %v1865 = vpop.permute.xlu0 %1864
        %1866 = vrot.lane.b32.xlu0 %v1473, 40
        %v1867 = vpop.permute.xlu0 %1866
        %v1870 = vsel %vm1515, %v1862, 0
        %v1873 = vsel %vm1515, %v1863, 0
        %v1875 = vsel %vm1550, %v1867, 0
        %1877 = vmatpush.msra.mxu0 0.0
        %1878 = vmatpush.msra.mxu0 0.0
        %1879 = vmatpush.msra.mxu0 0.0
        %1880 = vmatpush.msra.mxu0 0.0
        %1881 = vmatpush.msra.mxu0 0.0
        %1882 = vmatpush.msra.mxu0 0.0
        %1883 = vmatpush.msra.mxu0 0.0
        %1884 = vmatpush.msra.mxu0 0.0
        %1885 = vmatpush.msra.mxu0 0.0
        %1886 = vmatpush.msra.mxu0 0.0
        %1887 = vmatpush.msra.mxu0 0.0
        %1888 = vmatpush.msra.mxu0 0.0
        %1889 = vmatpush.msra.mxu0 0.0
        %1890 = vmatpush.msra.mxu0 0.0
        %1891 = vmatpush.msra.mxu0 %v1875
        %1892 = vmatpush.msra.mxu0 %v1865
        %1893 = vmatmul.f32.gmra.mxu0 %v1870
        %v1894 = vpop.f32.mrf.mxu0
        %v1895 = vadd.f32 0.0, %v1894
        %1896 = vmatmul.f32.gmra.mxu0 %v1873
        %v1897 = vpop.f32.mrf.mxu0
        %v1898 = vadd.f32 0.0, %v1897
        %1899 = vdwg.mxu0
        %1902 = vrot.lane.b32.xlu0 %v1895, 24
        %v1903 = vpop.permute.xlu0 %1902
        %1904 = vrot.lane.b32.xlu0 %v1898, 24
        %v1905 = vpop.permute.xlu0 %1904
        %vm1908 = vcmask 261312
        %1909 = vst.msk [vmem:[#allocation3] sm:$0xff] %vm1908, %v1903
        %vm1910 = vcmask 259264
        %1911 = vst.msk [vmem:[#allocation3 + $0x8] sm:$0x3f] %vm1910, %v1905
        %v1912 = vld [vmem:[#allocation3] sm:$0xff]
        %v1913 = vld [vmem:[#allocation3 + $0x8] sm:$0x3f]
        %v1914 = vld [vmem:[%s1092] sm:$0xff]
        %v1915 = vld [vmem:[%s1092 + $0x8] sm:$0xff]
        %v1916 = vld [vmem:[%s1092 + $0x10] sm:$0xff]
        %v1917 = vld [vmem:[%s1092 + $0x18] sm:$0xff]
        %v1918 = vld [vmem:[%s1095] sm:$0x1]
        %v1920 = vperm.slane %v1918, 0
        %v1923 = vsel %vm1445, %v1912, 0
        %v1926 = vsel %vm1445, %v1913, 0
        %1928 = vmatpush.msra.mxu0 0.0
        %1929 = vmatpush.msra.mxu0 0.0
        %1930 = vmatpush.msra.mxu0 0.0
        %1931 = vmatpush.msra.mxu0 0.0
        %1932 = vmatpush.msra.mxu0 0.0
        %1933 = vmatpush.msra.mxu0 0.0
        %1934 = vmatpush.msra.mxu0 0.0
        %1935 = vmatpush.msra.mxu0 0.0
        %1936 = vmatpush.msra.mxu0 0.0
        %1937 = vmatpush.msra.mxu0 0.0
        %1938 = vmatpush.msra.mxu0 0.0
        %1939 = vmatpush.msra.mxu0 0.0
        %1940 = vmatpush.msra.mxu0 %v1917
        %1941 = vmatpush.msra.mxu0 %v1916
        %1942 = vmatpush.msra.mxu0 %v1915
        %1943 = vmatpush.msra.mxu0 %v1914
        %1944 = vmatmul.f32.gmra.mxu0 %v1923
        %v1945 = vpop.f32.mrf.mxu0
        %v1946 = vadd.f32 %v1920, %v1945
        %1947 = vmatmul.f32.gmra.mxu0 %v1926
        %v1948 = vpop.f32.mrf.mxu0
        %v1949 = vadd.f32 %v1920, %v1948
        %1950 = vdwg.mxu0
        %v1951 = vadd.f32 %v1435, %v1946
        %v1952 = vadd.f32 %v1436, %v1949
        %v1953 = vld [vmem:[%s1098] sm:$0x1]
        %v1954 = vld [vmem:[%s1101] sm:$0x1]
        %v1955 = vsel %vm1445, %v1951, 0.0
        %1956 = vadd.xlane.f32.xlu0 %v1955
        %v1957 = vpop.xlane.xlu0 %1956
        %vm1958 = vcmask 259072
        %v1959 = vsel %vm1958, %v1952, 0.0
        %1960 = vadd.xlane.f32.xlu0 %v1959
        %v1961 = vpop.xlane.xlu0 %1960
        %v1962 = vrcp.pop 32.0
        %v1963 = vmul.f32 32.0, %v1962
        %v1964 = vsub.f32 1.0, %v1963
        %v1965 = vmul.f32 %v1962, %v1964
        %v1966 = vadd.f32 %v1962, %v1965
        %vm1967 = vweird.f32 %v1962
        %v1968 = vsel %vm1967, %v1962, %v1966
        %v1969 = vmul.f32 %v1957, %v1968
        %v1970 = vmul.f32 %v1961, %v1968
        %v1971 = vsub.f32 %v1951, %v1969
        %v1972 = vsub.f32 %v1952, %v1970
        %v1973 = vmul.f32 %v1971, %v1971
        %v1974 = vmul.f32 %v1972, %v1972
        %v1975 = vsel %vm1445, %v1973, 0.0
        %1976 = vadd.xlane.f32.xlu0 %v1975
        %v1977 = vpop.xlane.xlu0 %1976
        %v1978 = vsel %vm1958, %v1974, 0.0
        %1979 = vadd.xlane.f32.xlu0 %v1978
        %v1980 = vpop.xlane.xlu0 %1979
        %v1981 = vmul.f32 %v1977, %v1968
        %v1982 = vmul.f32 %v1980, %v1968
        %v1983 = vadd.f32 %v1981, 1e-05
        %v1984 = vadd.f32 %v1982, 1e-05
        %v1985 = vrsqrt.pop %v1983
        %v1986 = vmul.f32 %v1985, %v1983
        %v1987 = vmul.f32 %v1986, %v1985
        %v1988 = vmul.f32 0.5, %v1987
        %v1989 = vsub.f32 1.5, %v1988
        %v1990 = vmul.f32 %v1985, %v1989
        %vm1991 = vweird.f32 %v1983
        %vm1992 = vweird.f32 %v1985
        %vm1993 = vmor %vm1991, %vm1992
        %v1994 = vsel %vm1993, %v1985, %v1990
        %v1995 = vrsqrt.pop %v1984
        %v1996 = vmul.f32 %v1995, %v1984
        %v1997 = vmul.f32 %v1996, %v1995
        %v1998 = vmul.f32 0.5, %v1997
        %v1999 = vsub.f32 1.5, %v1998
        %v2000 = vmul.f32 %v1995, %v1999
        %vm2001 = vweird.f32 %v1984
        %vm2002 = vweird.f32 %v1995
        %vm2003 = vmor %vm2001, %vm2002
        %v2004 = vsel %vm2003, %v1995, %v2000
        %v2005 = vmul.f32 %v1971, %v1994
        %v2006 = vmul.f32 %v1972, %v2004
        %v2008 = vperm.slane %v1953, 0
        %v2010 = vmul.f32 %v2005, %v2008
        %v2011 = vmul.f32 %v2006, %v2008
        %v2013 = vperm.slane %v1954, 0
        %v2015 = vadd.f32 %v2010, %v2013
        %v2016 = vadd.f32 %v2011, %v2013
        %v2017 = vld [vmem:[%s961] sm:$0xff]
        %v2018 = vld [vmem:[%s961 + $0x8] sm:$0xff]
        %v2019 = vld [vmem:[%s961 + $0x10] sm:$0xff]
        %v2020 = vld [vmem:[%s961 + $0x18] sm:$0xff]
        %v2021 = vld [vmem:[%s1104] sm:$0x1]
        %v2023 = vperm.slane %v2021, 0
        %v2026 = vsel %vm1445, %v2015, 0
        %v2029 = vsel %vm1445, %v2016, 0
        %2031 = vmatpush.msra.mxu0 0.0
        %2032 = vmatpush.msra.mxu0 0.0
        %2033 = vmatpush.msra.mxu0 0.0
        %2034 = vmatpush.msra.mxu0 0.0
        %2035 = vmatpush.msra.mxu0 0.0
        %2036 = vmatpush.msra.mxu0 0.0
        %2037 = vmatpush.msra.mxu0 0.0
        %2038 = vmatpush.msra.mxu0 0.0
        %2039 = vmatpush.msra.mxu0 0.0
        %2040 = vmatpush.msra.mxu0 0.0
        %2041 = vmatpush.msra.mxu0 0.0
        %2042 = vmatpush.msra.mxu0 0.0
        %2043 = vmatpush.msra.mxu0 %v2020
        %2044 = vmatpush.msra.mxu0 %v2019
        %2045 = vmatpush.msra.mxu0 %v2018
        %2046 = vmatpush.msra.mxu0 %v2017
        %2047 = vmatmul.f32.gmra.mxu0 %v2026
        %v2048 = vpop.f32.mrf.mxu0
        %v2049 = vadd.f32 %v2023, %v2048
        %2050 = vmatmul.f32.gmra.mxu0 %v2029
        %v2051 = vpop.f32.mrf.mxu0
        %v2052 = vadd.f32 %v2023, %v2051
        %2053 = vdwg.mxu0
        %v2054 = vmax.f32 %v2049, 0.0
        %v2055 = vmax.f32 %v2052, 0.0
        %v2056 = vld [vmem:[%s971] sm:$0xff]
        %v2057 = vld [vmem:[%s971 + $0x8] sm:$0xff]
        %v2058 = vld [vmem:[%s971 + $0x10] sm:$0xff]
        %v2059 = vld [vmem:[%s971 + $0x18] sm:$0xff]
        %v2060 = vld [vmem:[%s1107] sm:$0x1]
        %v2062 = vperm.slane %v2060, 0
        %v2065 = vsel %vm1445, %v2054, 0
        %v2068 = vsel %vm1445, %v2055, 0
        %2070 = vmatpush.msra.mxu0 0.0
        %2071 = vmatpush.msra.mxu0 0.0
        %2072 = vmatpush.msra.mxu0 0.0
        %2073 = vmatpush.msra.mxu0 0.0
        %2074 = vmatpush.msra.mxu0 0.0
        %2075 = vmatpush.msra.mxu0 0.0
        %2076 = vmatpush.msra.mxu0 0.0
        %2077 = vmatpush.msra.mxu0 0.0
        %2078 = vmatpush.msra.mxu0 0.0
        %2079 = vmatpush.msra.mxu0 0.0
        %2080 = vmatpush.msra.mxu0 0.0
        %2081 = vmatpush.msra.mxu0 0.0
        %2082 = vmatpush.msra.mxu0 %v2059
        %2083 = vmatpush.msra.mxu0 %v2058
        %2084 = vmatpush.msra.mxu0 %v2057
        %2085 = vmatpush.msra.mxu0 %v2056
        %2086 = vmatmul.f32.gmra.mxu0 %v2065
        %v2087 = vpop.f32.mrf.mxu0
        %v2088 = vadd.f32 %v2062, %v2087
        %2089 = vmatmul.f32.gmra.mxu0 %v2068
        %v2090 = vpop.f32.mrf.mxu0
        %v2091 = vadd.f32 %v2062, %v2090
        %2092 = vdwg.mxu0
        %v2093 = vadd.f32 %v2015, %v2088
        %v2094 = vadd.f32 %v2016, %v2091
        %v2095 = vld [vmem:[%s1110] sm:$0x1]
        %v2096 = vld [vmem:[%s1113] sm:$0x1]
        %v2097 = vsel %vm1445, %v2093, 0.0
        %2098 = vadd.xlane.f32.xlu0 %v2097
        %v2099 = vpop.xlane.xlu0 %2098
        %v2100 = vsel %vm1958, %v2094, 0.0
        %2101 = vadd.xlane.f32.xlu0 %v2100
        %v2102 = vpop.xlane.xlu0 %2101
        %v2103 = vmul.f32 %v2099, %v1968
        %v2104 = vmul.f32 %v2102, %v1968
        %v2105 = vsub.f32 %v2093, %v2103
        %v2106 = vsub.f32 %v2094, %v2104
        %v2107 = vmul.f32 %v2105, %v2105
        %v2108 = vmul.f32 %v2106, %v2106
        %v2109 = vsel %vm1445, %v2107, 0.0
        %2110 = vadd.xlane.f32.xlu0 %v2109
        %v2111 = vpop.xlane.xlu0 %2110
        %v2112 = vsel %vm1958, %v2108, 0.0
        %2113 = vadd.xlane.f32.xlu0 %v2112
        %v2114 = vpop.xlane.xlu0 %2113
        %v2115 = vmul.f32 %v2111, %v1968
        %v2116 = vmul.f32 %v2114, %v1968
        %v2117 = vadd.f32 %v2115, 1e-05
        %v2118 = vadd.f32 %v2116, 1e-05
        %v2119 = vrsqrt.pop %v2117
        %v2120 = vmul.f32 %v2119, %v2117
        %v2121 = vmul.f32 %v2120, %v2119
        %v2122 = vmul.f32 0.5, %v2121
        %v2123 = vsub.f32 1.5, %v2122
        %v2124 = vmul.f32 %v2119, %v2123
        %vm2125 = vweird.f32 %v2117
        %vm2126 = vweird.f32 %v2119
        %vm2127 = vmor %vm2125, %vm2126
        %v2128 = vsel %vm2127, %v2119, %v2124
        %v2129 = vrsqrt.pop %v2118
        %v2130 = vmul.f32 %v2129, %v2118
        %v2131 = vmul.f32 %v2130, %v2129
        %v2132 = vmul.f32 0.5, %v2131
        %v2133 = vsub.f32 1.5, %v2132
        %v2134 = vmul.f32 %v2129, %v2133
        %vm2135 = vweird.f32 %v2118
        %vm2136 = vweird.f32 %v2129
        %vm2137 = vmor %vm2135, %vm2136
        %v2138 = vsel %vm2137, %v2129, %v2134
        %v2139 = vmul.f32 %v2105, %v2128
        %v2140 = vmul.f32 %v2106, %v2138
        %v2142 = vperm.slane %v2095, 0
        %v2144 = vmul.f32 %v2139, %v2142
        %v2145 = vmul.f32 %v2140, %v2142
        %v2147 = vperm.slane %v2096, 0
        %v2149 = vadd.f32 %v2144, %v2147
        %v2150 = vadd.f32 %v2145, %v2147
        %2151 = vst.msk [vmem:[#allocation2] sm:$0xff] %vm1445, %v2149
        %2152 = vst.msk [vmem:[#allocation2 + $0x8] sm:$0x3f] %vm1958, %v2150
        %p2153 = scmp.eq.s32.totalorder %s46, 1
        // Predicated region
        $region169: #{tpu_custom_call.1} parent=123 // pred_check
          %p2154 = pneg %p2153
        $region170: #{tpu_custom_call.1} parent=123 // pred_check_branch
          %2156 = sbr.rel (%p2154) target = $region172
        $region171: #{tpu_custom_call.1} parent=123 // pred_region
          %v2157 = vld [vmem:[#allocation19] sm:$0xff]
          %v2158 = vld [vmem:[#allocation19 + $0x8] sm:$0xff]
          %v2159 = vld [vmem:[#allocation19 + $0x10] sm:$0xff]
          %v2160 = vld [vmem:[#allocation19 + $0x18] sm:$0xff]
          %v2161 = vld [vmem:[#allocation19 + $0x20] sm:$0xff]
          %v2162 = vld [vmem:[#allocation19 + $0x28] sm:$0xff]
          %v2163 = vld [vmem:[#allocation19 + $0x30] sm:$0xff]
          %v2164 = vld [vmem:[#allocation19 + $0x38] sm:$0xff]
          %v2165 = vld [vmem:[%s25] sm:$0x3]
          %v2167 = vrot.slane %v2150, 5
          %v2169 = vperm.slane %v2165, 0
          %v2170 = vperm.slane %v2165, 1
          %v2173 = vsel %vm1445, %v2167, 0
          %2175 = vmatpush.msra.mxu0 0.0
          %2176 = vmatpush.msra.mxu0 0.0
          %2177 = vmatpush.msra.mxu0 0.0
          %2178 = vmatpush.msra.mxu0 0.0
          %2179 = vmatpush.msra.mxu0 0.0
          %2180 = vmatpush.msra.mxu0 0.0
          %2181 = vmatpush.msra.mxu0 0.0
          %2182 = vmatpush.msra.mxu0 0.0
          %2183 = vmatpush.msra.mxu0 0.0
          %2184 = vmatpush.msra.mxu0 0.0
          %2185 = vmatpush.msra.mxu0 0.0
          %2186 = vmatpush.msra.mxu0 0.0
          %2187 = vmatpush.msra.mxu0 %v2163
          %2188 = vmatpush.msra.mxu0 %v2161
          %2189 = vmatpush.msra.mxu0 %v2159
          %2190 = vmatpush.msra.mxu0 %v2157
          %2191 = vmatmul.f32.gmra.mxu0 %v2173
          %v2192 = vpop.f32.mrf.mxu0
          %v2193 = vadd.f32 %v2169, %v2192
          %2194 = vdwg.mxu0
          %2195 = vmatpush.msra.mxu0 0.0
          %2196 = vmatpush.msra.mxu0 0.0
          %2197 = vmatpush.msra.mxu0 0.0
          %2198 = vmatpush.msra.mxu0 0.0
          %2199 = vmatpush.msra.mxu0 0.0
          %2200 = vmatpush.msra.mxu0 0.0
          %2201 = vmatpush.msra.mxu0 0.0
          %2202 = vmatpush.msra.mxu0 0.0
          %2203 = vmatpush.msra.mxu0 0.0
          %2204 = vmatpush.msra.mxu0 0.0
          %2205 = vmatpush.msra.mxu0 0.0
          %2206 = vmatpush.msra.mxu0 0.0
          %2207 = vmatpush.msra.mxu0 %v2164
          %2208 = vmatpush.msra.mxu0 %v2162
          %2209 = vmatpush.msra.mxu0 %v2160
          %2210 = vmatpush.msra.mxu0 %v2158
          %2211 = vmatmul.f32.gmra.mxu0 %v2173
          %v2212 = vpop.f32.mrf.mxu0
          %v2213 = vadd.f32 %v2170, %v2212
          %2214 = vdwg.mxu0
          %v2215 = vlaneseq
          %v2216 = vand.u32 %v2215, 127
          %v2217 = vadd.s32 %v2216, 128
          %vm2218 = vcmp.eq.s32.totalorder %v2216, 11
          %vm2219 = vcmp.eq.s32.totalorder %v2217, 11
          %v2220 = vtanh.pop %v2193
          %v2221 = vtanh.pop %v2213
          %v2222 = vmul.f32 %v2220, 180.0
          %v2223 = vmul.f32 %v2221, 180.0
          %v2224 = vsel %vm2218, %v2222, %v2193
          %v2225 = vsel %vm2219, %v2223, %v2213
          %v2228 = vrot.slane %v2225, 7
          %vm2229 = vcmask 1040384
          %v2230 = vsel %vm2229, %v2224, %v2228
          %v2232 = vlaneseq
          %vm2233 = vcmp.ge.s32.totalorder %v2232, 0
          %vm2234 = vcmp.lt.s32.totalorder %v2232, 256
          %vm2235 = vmand %vm2233, %vm2234
          %2236 = vst.msk [vmem:[#allocation21] sm:$0x3] %vm2235, %v2230
        $region172: #{tpu_custom_call.1} parent=123 // pred_fallthru
          _
        // Predicated region
        $region173: #{tpu_custom_call.1} parent=123 // pred_check
          %p2237 = pneg %p665
        $region174: #{tpu_custom_call.1} parent=123 // pred_check_branch
          %2239 = sbr.rel (%p2237) target = $region176
        $region175: #{tpu_custom_call.1} parent=123 // pred_region
          %2241 = vsyncadd [#allocation6], 0
          %s2243 = sshll.u32 [#allocation21], 4
          %s2244 = int_to_ptr.vmem [resolvable:$true] %s2243
          %s2245 = sshll.u32 %s26, 4
          %s2246 = int_to_ptr.hbm [resolvable:$true] %s2245
          %2248 = dma.vmem_to_hbm [thread:$0]  %s2244, 32, %s2246, [#allocation6]
        $region176: #{tpu_custom_call.1} parent=123 // pred_fallthru
          _
        // Predicated region
        $region177: #{tpu_custom_call.1} parent=123 // pred_check
          %p2249 = pneg %p665
        $region178: #{tpu_custom_call.1} parent=123 // pred_check_branch
          %2251 = sbr.rel (%p2249) target = $region180
        $region179: #{tpu_custom_call.1} parent=123 // pred_region
          %2253 = dma.done [#allocation6], 32
        $region180: #{tpu_custom_call.1} parent=123 // pred_fallthru
          _
      $region124: #{tpu_custom_call.1} parent=5 // pred_fallthru
        _
      %p2254 = scmp.le.s32.totalorder 2, %s41
      // Predicated region
      $region181: #{tpu_custom_call.1} parent=5 // pred_check
        %p2255 = pneg %p2254
      $region182: #{tpu_custom_call.1} parent=5 // pred_check_branch
        %2257 = sbr.rel (%p2255) target = $region184
      $region183: #{tpu_custom_call.1} parent=5 // pred_region
        %s2258 = ssub.s32 %s41, 2
      $region184: #{tpu_custom_call.1} parent=5 // pred_fallthru
        _
    $region6: #{tpu_custom_call.1} parent=1 // loop_footer
      %s45 = sadd.s32 1, %s41
    $region7: #{tpu_custom_call.1} parent=1 // loop_footer_branch
      %40 = sbr.rel target = $region3
    $region8: #{tpu_custom_call.1} parent=1 // loop_exit
      _
    %2259 = vsyncpa [#allocation5], 1
    %s2260 = scalar_lea.sflag [#allocation5], 1
    %2261 = vsyncpa %s2260, 1
    %2262 = vsyncpa [#allocation8], 1
    %2263 = vsyncpa [#allocation11], 1
    %2264 = vsyncpa [#allocation14], 1
    %2265 = vsyncpa [#allocation17], 1
    %s2266 = scalar_lea.sflag [#allocation17], 1
    %2267 = vsyncpa %s2266, 1
    %2268 = vsyncpa [#allocation20], 1
    %2269 = vsyncpa [#allocation6], 1
    %s2270 = scalar_lea.sflag [#allocation6], 1
    %2271 = vsyncpa %s2270, 1

</llo_original>
